<compile_context>
chip_gen: v7x
topology: tpu7x:2x2x1
jax: 0.10.0
libtpu: 0.0.40
codegen_flags: <defaults>
</compile_context>

<pallas_src>
import math

import numpy as np
import jax
import jax.numpy as jnp
from jax.experimental import pallas as pl
from jax.experimental.pallas import tpu as pltpu

MOBILENET_CH = [32, 32, 64, 96]
FE_HIDDEN = 64
FE_OUT = 16


# ----------------------------------------------------------------------------
# math helpers
# ----------------------------------------------------------------------------
def _gelu_tanh(x):
    # matches torch.nn.GELU(approximate='tanh'); f32 epilogue (v5e-safe)
    c = math.sqrt(2.0 / math.pi)
    return 0.5 * x * (1.0 + jnp.tanh(c * (x + 0.044715 * x * x * x)))


# ----------------------------------------------------------------------------
# pixel enumeration: recursive 2x2-block-major order
#   pos[k][q*P_{k+1} + g] == 2*pos[k+1][g] + (q//2, q%2)
# so stage k+1's space-to-depth becomes 4 contiguous row blocks of stage k.
# ----------------------------------------------------------------------------
def _build_pixel_orders(H):
    sizes = []
    s = H
    for _ in MOBILENET_CH:
        s //= 2
        sizes.append(s)
    n = len(sizes)
    pos = [None] * n
    s_last = sizes[-1]
    pos[n - 1] = [(i, j) for i in range(s_last) for j in range(s_last)]
    for k in range(n - 2, -1, -1):
        child = []
        for q in range(4):
            di, dj = q // 2, q % 2
            for (i, j) in pos[k + 1]:
                child.append((2 * i + di, 2 * j + dj))
        pos[k] = child
    return sizes, pos


# ----------------------------------------------------------------------------
# PositionalEncoding2D (constant per shape -> precomputed at init)
# ----------------------------------------------------------------------------
def positional_encoding_2d(channels, H, W):
    ch = int(math.ceil(channels / 4) * 2)
    inv_freq = 1.0 / (10000.0 ** (jnp.arange(0, ch, 2, dtype=jnp.float32) / ch))
    pos_x = jnp.arange(H, dtype=jnp.float32)
    pos_y = jnp.arange(W, dtype=jnp.float32)
    sin_x = pos_x[:, None] * inv_freq[None, :]
    sin_y = pos_y[:, None] * inv_freq[None, :]
    emb_x = jnp.stack([jnp.sin(sin_x), jnp.cos(sin_x)], axis=-1).reshape(H, ch)
    emb_y = jnp.stack([jnp.sin(sin_y), jnp.cos(sin_y)], axis=-1).reshape(W, ch)
    emb = jnp.zeros((H, W, 2 * ch), dtype=jnp.float32)
    emb = emb.at[:, :, :ch].set(emb_x[:, None, :])
    emb = emb.at[:, :, ch:2 * ch].set(emb_y[None, :, :])
    return emb[:, :, :channels]                            # (H, W, C)


# ----------------------------------------------------------------------------
# Pallas kernels
# ----------------------------------------------------------------------------
def _fused_stages_kernel(*refs):
    """All 4 stages fused; one batch tile of TB samples per grid step.

    Row ordering of every activation matrix: row = g*TB + b, where g is the
    pixel index in the 2x2-block-major order of that stage's grid.  The 4
    children of a next-stage pixel therefore live in 4 contiguous row blocks.

    refs:
      x_ref                          (P0*TB, 4*C_in)  bf16  stage-0 s2d input
      per stage k (5 refs):
        ws   (4*C_in, c0) or (4, c_prev, c)  bf16   backbone stub conv weight
        w1x  (c, 64)                         bf16   fe conv1 weight (BN folded)
        pb   (P_k*TB, 64)                    f32    pos-enc @ w1_pos + BN bias
        w2   (64, 16)                        bf16   fe conv2 weight (BN folded)
        b2   (1, 16)                         f32    fe conv2 folded BN bias
      per stage k (1 out ref):
        feat (P_k*TB, 16)                    bf16
    """
    n_stage = len(MOBILENET_CH)
    x_ref = refs[0]
    p_refs = refs[1:1 + 5 * n_stage]
    feat_refs = refs[1 + 5 * n_stage:]

    act = x_ref[...]                                       # (N0, 4*C_in) bf16
    for k in range(n_stage):
        ws_ref, w1x_ref, pb_ref, w2_ref, b2_ref = p_refs[5 * k:5 * k + 5]

        # backbone stub: 2x2 space-to-depth + 1x1 conv (+GELU)
        if k == 0:
            # stage-0 input already has the 4 children packed on the lane dim
            xb = jnp.dot(act, ws_ref[...], preferred_element_type=jnp.float32)
        else:
            # 4 partial matmuls over contiguous row blocks == in-kernel s2d
            n = act.shape[0] // 4
            xb = jnp.dot(act[:n], ws_ref[0],
                         preferred_element_type=jnp.float32)
            for q in range(1, 4):
                xb = xb + jnp.dot(act[q * n:(q + 1) * n], ws_ref[q],
                                  preferred_element_type=jnp.float32)
        act = _gelu_tanh(xb).astype(jnp.bfloat16)          # (N_k, c_k)

        # fe conv1 (+folded BN + positional bias) -> GELU
        h1 = jnp.dot(act, w1x_ref[...], preferred_element_type=jnp.float32)
        h1 = _gelu_tanh(h1 + pb_ref[...]).astype(jnp.bfloat16)

        # fe conv2 (+folded BN) -> GELU
        h2 = jnp.dot(h1, w2_ref[...], preferred_element_type=jnp.float32)
        feat_refs[k][...] = _gelu_tanh(h2 + b2_ref[...]).astype(
            feat_refs[k].dtype)


def _head_kernel(f_ref, w1_ref, b1_ref, w2_ref, b2_ref, o_ref):
    """Head: (concat) -> Linear -> BN -> GELU -> Linear -> BN (BN folded)."""
    y = jnp.dot(f_ref[...], w1_ref[...], preferred_element_type=jnp.float32)
    y = _gelu_tanh(y + b1_ref[...])
    y2 = jnp.dot(y.astype(jnp.bfloat16), w2_ref[...],
                 preferred_element_type=jnp.float32)
    o_ref[...] = (y2 + b2_ref[...]).astype(o_ref.dtype)    # no final activation


# ----------------------------------------------------------------------------
# pallas_call wrappers
# ----------------------------------------------------------------------------
def _stages_call(x_in, stages, pbs, TB, ntiles):
    """x_in: (ntiles*P0*TB, 4*C_in) bf16 -> tuple of (ntiles*P_k*TB, 16) bf16."""
    k_in = x_in.shape[1]
    Ps = [int(st["pb"].shape[0]) for st in stages]
    Ns = [p * TB for p in Ps]

    inputs = [x_in]
    in_specs = [pl.BlockSpec((Ns[0], k_in), lambda i: (i, 0))]
    for k, st in enumerate(stages):
        ws = st["ws"]
        ws_map = (lambda i: (0, 0)) if ws.ndim == 2 else (lambda i: (0, 0, 0))
        in_specs.append(pl.BlockSpec(ws.shape, ws_map))
        inputs.append(ws)
        in_specs.append(pl.BlockSpec(st["w1x"].shape, lambda i: (0, 0)))
        inputs.append(st["w1x"])
        in_specs.append(pl.BlockSpec((Ns[k], FE_HIDDEN), lambda i: (0, 0)))
        inputs.append(pbs[k])
        in_specs.append(pl.BlockSpec(st["w2"].shape, lambda i: (0, 0)))
        inputs.append(st["w2"])
        in_specs.append(pl.BlockSpec(st["b2"].shape, lambda i: (0, 0)))
        inputs.append(st["b2"])

    out_shape = tuple(jax.ShapeDtypeStruct((ntiles * n, FE_OUT), jnp.bfloat16)
                      for n in Ns)
    out_specs = tuple(pl.BlockSpec((n, FE_OUT), lambda i: (i, 0)) for n in Ns)

    return pl.pallas_call(
        _fused_stages_kernel,
        out_shape=out_shape,
        grid=(ntiles,),
        in_specs=in_specs,
        out_specs=out_specs,
        compiler_params=pltpu.CompilerParams(
            dimension_semantics=("parallel",)),
    )(*inputs)


def _head_call(feat_cat, hp, HTB):
    """feat_cat: (B_hpad, K) bf16 -> (B_hpad, embedding_dim) f32."""
    Bh, K = feat_cat.shape
    E = hp["w2"].shape[1]
    return pl.pallas_call(
        _head_kernel,
        out_shape=jax.ShapeDtypeStruct((Bh, E), jnp.float32),
        grid=(Bh // HTB,),
        in_specs=[
            pl.BlockSpec((HTB, K), lambda i: (i, 0)),
            pl.BlockSpec((K, E), lambda i: (0, 0)),
            pl.BlockSpec((1, E), lambda i: (0, 0)),
            pl.BlockSpec((E, E), lambda i: (0, 0)),
            pl.BlockSpec((1, E), lambda i: (0, 0)),
        ],
        out_specs=pl.BlockSpec((HTB, E), lambda i: (i, 0)),
        compiler_params=pltpu.CompilerParams(
            dimension_semantics=("parallel",)),
    )(feat_cat, hp["w1"], hp["b1"], hp["w2"], hp["b2"])


# ----------------------------------------------------------------------------
# Deterministic parameter construction (BN folded, scales folded into weights)
# ----------------------------------------------------------------------------
def _conv_w(key, cin, cout):
    return jax.random.normal(key, (cin, cout), jnp.float32) / math.sqrt(cin)


def _fold_bn(key, n, eps=1e-5):
    k1, k2, k3, k4 = jax.random.split(key, 4)
    gamma = 1.0 + 0.1 * jax.random.normal(k1, (n,), jnp.float32)
    beta = 0.1 * jax.random.normal(k2, (n,), jnp.float32)
    mean = 0.05 * jax.random.normal(k3, (n,), jnp.float32)
    var = 1.0 + 0.1 * jax.random.uniform(k4, (n,), jnp.float32)
    scale = gamma / jnp.sqrt(var + eps)
    bias = beta - mean * scale
    return scale, bias


def init_params(key, obs_shape, embedding_dim):
    c_in, H, W = obs_shape
    assert H == W and H % (2 ** len(MOBILENET_CH)) == 0
    sizes, pos = _build_pixel_orders(H)
    keys = jax.random.split(key, 8 * len(MOBILENET_CH) + 8)
    ki = iter(keys)

    stages = []
    cin = c_in
    for k, c in enumerate(MOBILENET_CH):
        S = sizes[k]
        P = S * S
        raster = np.array([i * S + j for (i, j) in pos[k]], dtype=np.int32)

        if k == 0:
            ws = _conv_w(next(ki), 4 * cin, c)                  # (4*C_in, c)
        else:
            ws = (jax.random.normal(next(ki), (4, cin, c), jnp.float32)
                  / math.sqrt(4 * cin))                         # (4, c_prev, c)
        w1 = _conv_w(next(ki), 2 * c, FE_HIDDEN)                # [x ; pos] rows
        s1, b1 = _fold_bn(next(ki), FE_HIDDEN)
        w2 = _conv_w(next(ki), FE_HIDDEN, FE_OUT)
        s2, b2 = _fold_bn(next(ki), FE_OUT)

        # fold BN scale into weights; precompute positional bias per pixel
        # (rows permuted into the kernel's 2x2-block-major pixel order)
        w1x = w1[:c] * s1[None, :]                              # (c, 64)
        pe = positional_encoding_2d(c, S, S).reshape(P, c)[raster]
        pb = pe @ (w1[c:] * s1[None, :]) + b1[None, :]          # (P, 64)

        stages.append({
            "ws": ws.astype(jnp.bfloat16),
            "w1x": w1x.astype(jnp.bfloat16),
            "pb": pb.astype(jnp.float32),
            "w2": (w2 * s2[None, :]).astype(jnp.bfloat16),
            "b2": b2.reshape(1, FE_OUT).astype(jnp.float32),
        })
        cin = c

    # head: Linear -> BN1d -> GELU -> Linear -> BN1d (BN scales folded)
    P_list = [s * s for s in sizes]
    out_channels = FE_OUT * sum(P_list)
    hw1 = _conv_w(next(ki), out_channels, embedding_dim)        # torch-row order
    hs1, hb1 = _fold_bn(next(ki), embedding_dim)
    hw2 = _conv_w(next(ki), embedding_dim, embedding_dim)
    hs2, hb2 = _fold_bn(next(ki), embedding_dim)
    hw1 = hw1 * hs1[None, :]
    hw2 = hw2 * hs2[None, :]

    # permute head-w1 rows from torch NCHW-flat order to the kernel's
    # (block-major pixel, channel) feature column order
    blocks = []
    off = 0
    for k, (S, pos_k) in enumerate(zip(sizes, pos)):
        P = S * S
        raster = np.array([i * S + j for (i, j) in pos_k], dtype=np.int32)
        perm = (np.arange(FE_OUT)[None, :] * P + raster[:, None]).reshape(-1)
        blocks.append(hw1[off + perm])
        off += FE_OUT * P
    w1_kernel = jnp.concatenate(blocks, axis=0).astype(jnp.bfloat16)

    head = {
        "w1": w1_kernel,                                        # (1360, E) bf16
        "b1": hb1.reshape(1, embedding_dim).astype(jnp.float32),
        "w2": hw2.astype(jnp.bfloat16),
        "b2": hb2.reshape(1, embedding_dim).astype(jnp.float32),
    }

    # gather indices for the stage-0 space-to-depth (raw-image children of
    # every stage-0 pixel, in kernel pixel order)
    P0 = sizes[0] * sizes[0]
    pix_idx = np.zeros((P0, 4), np.int32)
    for g, (i, j) in enumerate(pos[0]):
        for q in range(4):
            di, dj = q // 2, q % 2
            pix_idx[g, q] = (2 * i + di) * W + (2 * j + dj)

    return {"stages": stages, "head": head,
            "pix_idx": jnp.asarray(pix_idx.reshape(-1), dtype=jnp.int32)}


# ----------------------------------------------------------------------------
# Forward pass: 1 fused stage kernel + 1 head kernel (+ tiny XLA glue)
# ----------------------------------------------------------------------------
@jax.jit
def forward(params, x_nchw):
    stages = params["stages"]
    B, c_in, H, W = x_nchw.shape
    Ps = [int(st["pb"].shape[0]) for st in stages]
    P0 = Ps[0]

    # batch tile: batch is folded into the matmul M dimension (rows = P_k*TB)
    TB = B if B <= 32 else 32
    B_pad = (-(-B // TB)) * TB
    ntiles = B_pad // TB

    # stage-0 space-to-depth (single tiny XLA gather on the raw input):
    # rows ordered (pixel-group g, batch b) -> row = g*TB + b within a tile
    x = jnp.transpose(x_nchw, (0, 2, 3, 1)).reshape(B, H * W, c_in)
    if B_pad != B:
        x = jnp.pad(x, ((0, B_pad - B), (0, 0), (0, 0)))
    x = jnp.take(x, params["pix_idx"], axis=1).reshape(B_pad, P0, 4 * c_in)
    x = (x.reshape(ntiles, TB, P0, 4 * c_in)
          .transpose(0, 2, 1, 3)
          .reshape(ntiles * P0 * TB, 4 * c_in)
          .astype(jnp.bfloat16))

    # positional biases expanded over the batch tile (row = g*TB + b)
    pbs = [jnp.repeat(st["pb"], TB, axis=0) for st in stages]

    feats_raw = _stages_call(x, stages, pbs, TB, ntiles)

    # back to per-sample flattened features and concat (tiny XLA reorgs)
    feats = []
    for P, f in zip(Ps, feats_raw):
        f = (f.reshape(ntiles, P, TB, FE_OUT)
              .transpose(0, 2, 1, 3)
              .reshape(B_pad, P * FE_OUT))
        feats.append(f)
    feat_cat = jnp.concatenate(feats, axis=1)                   # (B_pad, 1360)

    # head: batch tile up to 512 rows, pad instead of asserting divisibility
    HTB = B_pad if B_pad <= 512 else 512
    B_hpad = (-(-B_pad // HTB)) * HTB
    if B_hpad != B_pad:
        feat_cat = jnp.pad(feat_cat, ((0, B_hpad - B_pad), (0, 0)))
    out = _head_call(feat_cat, params["head"], HTB)
    return out[:B]


# ----------------------------------------------------------------------------
if __name__ == "__main__":
    obs_shape = (3, 16, 16)          # small (C, H, W), 4 halvings -> 8/4/2/1
    embedding_dim = 256              # module default; lane-dense head output
    batch = 2

    key = jax.random.PRNGKey(0)
    kp, kx = jax.random.split(key)
    params = init_params(kp, obs_shape, embedding_dim)
    x = jax.random.normal(kx, (batch,) + obs_shape, jnp.float32)   # NCHW input

    out = forward(params, x)
    out = jax.block_until_ready(out)

    assert out.shape == (batch, embedding_dim), out.shape
    assert bool(jnp.all(jnp.isfinite(out)))
    print("KERNEL_OK")
</pallas_src>

<mosaic_0001>
module attributes {stable_mosaic.version = 11 : i64} {
  func.func @_head_kernel(%arg0: i32, %arg1: memref<2x1360xbf16, #tpu.memory_space<vmem>>, %arg2: memref<1360x256xbf16, #tpu.memory_space<vmem>>, %arg3: memref<1x256xf32, #tpu.memory_space<vmem>>, %arg4: memref<256x256xbf16, #tpu.memory_space<vmem>>, %arg5: memref<1x256xf32, #tpu.memory_space<vmem>>, %arg6: memref<2x256xf32, #tpu.memory_space<vmem>>) attributes {dimension_semantics = [#tpu.dimension_semantics<parallel>], iteration_bounds = array<i64: 1>, scalar_prefetch = 0 : i64, scratch_operands = 0 : i64, tpu.core_type = #tpu.core_type<tc>, window_params = [{transform_indices = @transform_0, window_bounds = array<i64: 2, 1360>}, {pipeline_mode = #tpu.pipeline_mode<synchronous>, transform_indices = @transform_1, window_bounds = array<i64: 1360, 256>}, {pipeline_mode = #tpu.pipeline_mode<synchronous>, transform_indices = @transform_2, window_bounds = array<i64: 1, 256>}, {pipeline_mode = #tpu.pipeline_mode<synchronous>, transform_indices = @transform_3, window_bounds = array<i64: 256, 256>}, {pipeline_mode = #tpu.pipeline_mode<synchronous>, transform_indices = @transform_4, window_bounds = array<i64: 1, 256>}, {transform_indices = @transform_5, window_bounds = array<i64: 2, 256>}]} {
    %c0 = arith.constant 0 : index
    %c0_0 = arith.constant 0 : index
    %0 = vector.load %arg1[%c0, %c0_0] : memref<2x1360xbf16, #tpu.memory_space<vmem>>, vector<2x1360xbf16>
    %c0_1 = arith.constant 0 : index
    %c0_2 = arith.constant 0 : index
    %1 = vector.load %arg2[%c0_1, %c0_2] : memref<1360x256xbf16, #tpu.memory_space<vmem>>, vector<1360x256xbf16>
    %cst = arith.constant dense<0.000000e+00> : vector<2x256xf32>
    %2 = tpu.matmul %0, %1, %cst {dimension_numbers = #tpu.dot_dimension_numbers<[1], [0], [0], [1], [0, 0, 1, 1], [], []>} : vector<2x1360xbf16>, vector<1360x256xbf16>, vector<2x256xf32> -> vector<2x256xf32>
    %c0_3 = arith.constant 0 : index
    %c0_4 = arith.constant 0 : index
    %3 = vector.load %arg3[%c0_3, %c0_4] : memref<1x256xf32, #tpu.memory_space<vmem>>, vector<1x256xf32>
    %4 = vector.broadcast %3 : vector<1x256xf32> to vector<2x256xf32>
    %5 = arith.addf %2, %4 : vector<2x256xf32>
    %cst_5 = arith.constant 5.000000e-01 : f32
    %6 = vector.broadcast %cst_5 : f32 to vector<2x256xf32>
    %7 = arith.mulf %6, %5 : vector<2x256xf32>
    %cst_6 = arith.constant 4.471500e-02 : f32
    %8 = vector.broadcast %cst_6 : f32 to vector<2x256xf32>
    %9 = arith.mulf %8, %5 : vector<2x256xf32>
    %10 = arith.mulf %9, %5 : vector<2x256xf32>
    %11 = arith.mulf %10, %5 : vector<2x256xf32>
    %12 = arith.addf %5, %11 : vector<2x256xf32>
    %cst_7 = arith.constant 0.797884583 : f32
    %13 = vector.broadcast %cst_7 : f32 to vector<2x256xf32>
    %14 = arith.mulf %13, %12 : vector<2x256xf32>
    %15 = math.tanh %14 : vector<2x256xf32>
    %cst_8 = arith.constant 1.000000e+00 : f32
    %16 = vector.broadcast %cst_8 : f32 to vector<2x256xf32>
    %17 = arith.addf %16, %15 : vector<2x256xf32>
    %18 = arith.mulf %7, %17 : vector<2x256xf32>
    %19 = arith.truncf %18 : vector<2x256xf32> to vector<2x256xbf16>
    %c0_9 = arith.constant 0 : index
    %c0_10 = arith.constant 0 : index
    %20 = vector.load %arg4[%c0_9, %c0_10] : memref<256x256xbf16, #tpu.memory_space<vmem>>, vector<256x256xbf16>
    %cst_11 = arith.constant dense<0.000000e+00> : vector<2x256xf32>
    %21 = tpu.matmul %19, %20, %cst_11 {dimension_numbers = #tpu.dot_dimension_numbers<[1], [0], [0], [1], [0, 0, 1, 1], [], []>} : vector<2x256xbf16>, vector<256x256xbf16>, vector<2x256xf32> -> vector<2x256xf32>
    %c0_12 = arith.constant 0 : index
    %c0_13 = arith.constant 0 : index
    %22 = vector.load %arg5[%c0_12, %c0_13] : memref<1x256xf32, #tpu.memory_space<vmem>>, vector<1x256xf32>
    %23 = vector.broadcast %22 : vector<1x256xf32> to vector<2x256xf32>
    %24 = arith.addf %21, %23 : vector<2x256xf32>
    %c0_14 = arith.constant 0 : index
    %c0_15 = arith.constant 0 : index
    %25 = vector.load %arg6[%c0_14, %c0_15] : memref<2x256xf32, #tpu.memory_space<vmem>>, vector<2x256xf32>
    tpu.vector_store %arg6[%c0_14, %c0_15], %24 {strides = array<i32>} : memref<2x256xf32, #tpu.memory_space<vmem>>, vector<2x256xf32>,
    return
  }
  func.func @transform_0(%arg0: i32) -> (i32, i32) {
    %c0_i32 = arith.constant 0 : i32
    %c0_i32_0 = arith.constant 0 : i32
    return %arg0, %c0_i32 : i32, i32
  }
  func.func @transform_1(%arg0: i32) -> (i32, i32) {
    %c0_i32 = arith.constant 0 : i32
    %c0_i32_0 = arith.constant 0 : i32
    %c0_i32_1 = arith.constant 0 : i32
    return %c0_i32, %c0_i32_0 : i32, i32
  }
  func.func @transform_2(%arg0: i32) -> (i32, i32) {
    %c0_i32 = arith.constant 0 : i32
    %c0_i32_0 = arith.constant 0 : i32
    %c0_i32_1 = arith.constant 0 : i32
    return %c0_i32, %c0_i32_0 : i32, i32
  }
  func.func @transform_3(%arg0: i32) -> (i32, i32) {
    %c0_i32 = arith.constant 0 : i32
    %c0_i32_0 = arith.constant 0 : i32
    %c0_i32_1 = arith.constant 0 : i32
    return %c0_i32, %c0_i32_0 : i32, i32
  }
  func.func @transform_4(%arg0: i32) -> (i32, i32) {
    %c0_i32 = arith.constant 0 : i32
    %c0_i32_0 = arith.constant 0 : i32
    %c0_i32_1 = arith.constant 0 : i32
    return %c0_i32, %c0_i32_0 : i32, i32
  }
  func.func @transform_5(%arg0: i32) -> (i32, i32) {
    %c0_i32 = arith.constant 0 : i32
    %c0_i32_0 = arith.constant 0 : i32
    return %arg0, %c0_i32 : i32, i32
  }
}

module attributes {stable_mosaic.version = 11 : i64} {
  func.func @_fused_stages_kernel(%arg0: i32, %arg1: memref<128x12xbf16, #tpu.memory_space<vmem>>, %arg2: memref<12x32xbf16, #tpu.memory_space<vmem>>, %arg3: memref<32x64xbf16, #tpu.memory_space<vmem>>, %arg4: memref<128x64xf32, #tpu.memory_space<vmem>>, %arg5: memref<64x16xbf16, #tpu.memory_space<vmem>>, %arg6: memref<1x16xf32, #tpu.memory_space<vmem>>, %arg7: memref<4x32x32xbf16, #tpu.memory_space<vmem>>, %arg8: memref<32x64xbf16, #tpu.memory_space<vmem>>, %arg9: memref<32x64xf32, #tpu.memory_space<vmem>>, %arg10: memref<64x16xbf16, #tpu.memory_space<vmem>>, %arg11: memref<1x16xf32, #tpu.memory_space<vmem>>, %arg12: memref<4x32x64xbf16, #tpu.memory_space<vmem>>, %arg13: memref<64x64xbf16, #tpu.memory_space<vmem>>, %arg14: memref<8x64xf32, #tpu.memory_space<vmem>>, %arg15: memref<64x16xbf16, #tpu.memory_space<vmem>>, %arg16: memref<1x16xf32, #tpu.memory_space<vmem>>, %arg17: memref<4x64x96xbf16, #tpu.memory_space<vmem>>, %arg18: memref<96x64xbf16, #tpu.memory_space<vmem>>, %arg19: memref<2x64xf32, #tpu.memory_space<vmem>>, %arg20: memref<64x16xbf16, #tpu.memory_space<vmem>>, %arg21: memref<1x16xf32, #tpu.memory_space<vmem>>, %arg22: memref<128x16xbf16, #tpu.memory_space<vmem>>, %arg23: memref<32x16xbf16, #tpu.memory_space<vmem>>, %arg24: memref<8x16xbf16, #tpu.memory_space<vmem>>, %arg25: memref<2x16xbf16, #tpu.memory_space<vmem>>) attributes {dimension_semantics = [#tpu.dimension_semantics<parallel>], iteration_bounds = array<i64: 1>, scalar_prefetch = 0 : i64, scratch_operands = 0 : i64, tpu.core_type = #tpu.core_type<tc>, window_params = [{transform_indices = @transform_0, window_bounds = array<i64: 128, 12>}, {pipeline_mode = #tpu.pipeline_mode<synchronous>, transform_indices = @transform_1, window_bounds = array<i64: 12, 32>}, {pipeline_mode = #tpu.pipeline_mode<synchronous>, transform_indices = @transform_2, window_bounds = array<i64: 32, 64>}, {pipeline_mode = #tpu.pipeline_mode<synchronous>, transform_indices = @transform_3, window_bounds = array<i64: 128, 64>}, {pipeline_mode = #tpu.pipeline_mode<synchronous>, transform_indices = @transform_4, window_bounds = array<i64: 64, 16>}, {pipeline_mode = #tpu.pipeline_mode<synchronous>, transform_indices = @transform_5, window_bounds = array<i64: 1, 16>}, {pipeline_mode = #tpu.pipeline_mode<synchronous>, transform_indices = @transform_6, window_bounds = array<i64: 4, 32, 32>}, {pipeline_mode = #tpu.pipeline_mode<synchronous>, transform_indices = @transform_7, window_bounds = array<i64: 32, 64>}, {pipeline_mode = #tpu.pipeline_mode<synchronous>, transform_indices = @transform_8, window_bounds = array<i64: 32, 64>}, {pipeline_mode = #tpu.pipeline_mode<synchronous>, transform_indices = @transform_9, window_bounds = array<i64: 64, 16>}, {pipeline_mode = #tpu.pipeline_mode<synchronous>, transform_indices = @transform_10, window_bounds = array<i64: 1, 16>}, {pipeline_mode = #tpu.pipeline_mode<synchronous>, transform_indices = @transform_11, window_bounds = array<i64: 4, 32, 64>}, {pipeline_mode = #tpu.pipeline_mode<synchronous>, transform_indices = @transform_12, window_bounds = array<i64: 64, 64>}, {pipeline_mode = #tpu.pipeline_mode<synchronous>, transform_indices = @transform_13, window_bounds = array<i64: 8, 64>}, {pipeline_mode = #tpu.pipeline_mode<synchronous>, transform_indices = @transform_14, window_bounds = array<i64: 64, 16>}, {pipeline_mode = #tpu.pipeline_mode<synchronous>, transform_indices = @transform_15, window_bounds = array<i64: 1, 16>}, {pipeline_mode = #tpu.pipeline_mode<synchronous>, transform_indices = @transform_16, window_bounds = array<i64: 4, 64, 96>}, {pipeline_mode = #tpu.pipeline_mode<synchronous>, transform_indices = @transform_17, window_bounds = array<i64: 96, 64>}, {pipeline_mode = #tpu.pipeline_mode<synchronous>, transform_indices = @transform_18, window_bounds = array<i64: 2, 64>}, {pipeline_mode = #tpu.pipeline_mode<synchronous>, transform_indices = @transform_19, window_bounds = array<i64: 64, 16>}, {pipeline_mode = #tpu.pipeline_mode<synchronous>, transform_indices = @transform_20, window_bounds = array<i64: 1, 16>}, {transform_indices = @transform_21, window_bounds = array<i64: 128, 16>}, {transform_indices = @transform_22, window_bounds = array<i64: 32, 16>}, {transform_indices = @transform_23, window_bounds = array<i64: 8, 16>}, {transform_indices = @transform_24, window_bounds = array<i64: 2, 16>}]} {
    %c0 = arith.constant 0 : index
    %c0_0 = arith.constant 0 : index
    %0 = vector.load %arg1[%c0, %c0_0] : memref<128x12xbf16, #tpu.memory_space<vmem>>, vector<128x12xbf16>
    %c0_1 = arith.constant 0 : index
    %c0_2 = arith.constant 0 : index
    %1 = vector.load %arg2[%c0_1, %c0_2] : memref<12x32xbf16, #tpu.memory_space<vmem>>, vector<12x32xbf16>
    %cst = arith.constant dense<0.000000e+00> : vector<128x32xf32>
    %2 = tpu.matmul %0, %1, %cst {dimension_numbers = #tpu.dot_dimension_numbers<[1], [0], [0], [1], [0, 0, 1, 1], [], []>} : vector<128x12xbf16>, vector<12x32xbf16>, vector<128x32xf32> -> vector<128x32xf32>
    %cst_3 = arith.constant 5.000000e-01 : f32
    %3 = vector.broadcast %cst_3 : f32 to vector<128x32xf32>
    %4 = arith.mulf %3, %2 : vector<128x32xf32>
    %cst_4 = arith.constant 4.471500e-02 : f32
    %5 = vector.broadcast %cst_4 : f32 to vector<128x32xf32>
    %6 = arith.mulf %5, %2 : vector<128x32xf32>
    %7 = arith.mulf %6, %2 : vector<128x32xf32>
    %8 = arith.mulf %7, %2 : vector<128x32xf32>
    %9 = arith.addf %2, %8 : vector<128x32xf32>
    %cst_5 = arith.constant 0.797884583 : f32
    %10 = vector.broadcast %cst_5 : f32 to vector<128x32xf32>
    %11 = arith.mulf %10, %9 : vector<128x32xf32>
    %12 = math.tanh %11 : vector<128x32xf32>
    %cst_6 = arith.constant 1.000000e+00 : f32
    %13 = vector.broadcast %cst_6 : f32 to vector<128x32xf32>
    %14 = arith.addf %13, %12 : vector<128x32xf32>
    %15 = arith.mulf %4, %14 : vector<128x32xf32>
    %16 = arith.truncf %15 : vector<128x32xf32> to vector<128x32xbf16>
    %c0_7 = arith.constant 0 : index
    %c0_8 = arith.constant 0 : index
    %17 = vector.load %arg3[%c0_7, %c0_8] : memref<32x64xbf16, #tpu.memory_space<vmem>>, vector<32x64xbf16>
    %cst_9 = arith.constant dense<0.000000e+00> : vector<128x64xf32>
    %18 = tpu.matmul %16, %17, %cst_9 {dimension_numbers = #tpu.dot_dimension_numbers<[1], [0], [0], [1], [0, 0, 1, 1], [], []>} : vector<128x32xbf16>, vector<32x64xbf16>, vector<128x64xf32> -> vector<128x64xf32>
    %c0_10 = arith.constant 0 : index
    %c0_11 = arith.constant 0 : index
    %19 = vector.load %arg4[%c0_10, %c0_11] : memref<128x64xf32, #tpu.memory_space<vmem>>, vector<128x64xf32>
    %20 = arith.addf %18, %19 : vector<128x64xf32>
    %cst_12 = arith.constant 5.000000e-01 : f32
    %21 = vector.broadcast %cst_12 : f32 to vector<128x64xf32>
    %22 = arith.mulf %21, %20 : vector<128x64xf32>
    %cst_13 = arith.constant 4.471500e-02 : f32
    %23 = vector.broadcast %cst_13 : f32 to vector<128x64xf32>
    %24 = arith.mulf %23, %20 : vector<128x64xf32>
    %25 = arith.mulf %24, %20 : vector<128x64xf32>
    %26 = arith.mulf %25, %20 : vector<128x64xf32>
    %27 = arith.addf %20, %26 : vector<128x64xf32>
    %cst_14 = arith.constant 0.797884583 : f32
    %28 = vector.broadcast %cst_14 : f32 to vector<128x64xf32>
    %29 = arith.mulf %28, %27 : vector<128x64xf32>
    %30 = math.tanh %29 : vector<128x64xf32>
    %cst_15 = arith.constant 1.000000e+00 : f32
    %31 = vector.broadcast %cst_15 : f32 to vector<128x64xf32>
    %32 = arith.addf %31, %30 : vector<128x64xf32>
    %33 = arith.mulf %22, %32 : vector<128x64xf32>
    %34 = arith.truncf %33 : vector<128x64xf32> to vector<128x64xbf16>
    %c0_16 = arith.constant 0 : index
    %c0_17 = arith.constant 0 : index
    %35 = vector.load %arg5[%c0_16, %c0_17] : memref<64x16xbf16, #tpu.memory_space<vmem>>, vector<64x16xbf16>
    %cst_18 = arith.constant dense<0.000000e+00> : vector<128x16xf32>
    %36 = tpu.matmul %34, %35, %cst_18 {dimension_numbers = #tpu.dot_dimension_numbers<[1], [0], [0], [1], [0, 0, 1, 1], [], []>} : vector<128x64xbf16>, vector<64x16xbf16>, vector<128x16xf32> -> vector<128x16xf32>
    %c0_19 = arith.constant 0 : index
    %c0_20 = arith.constant 0 : index
    %37 = vector.load %arg6[%c0_19, %c0_20] : memref<1x16xf32, #tpu.memory_space<vmem>>, vector<1x16xf32>
    %38 = vector.broadcast %37 : vector<1x16xf32> to vector<128x16xf32>
    %39 = arith.addf %36, %38 : vector<128x16xf32>
    %cst_21 = arith.constant 5.000000e-01 : f32
    %40 = vector.broadcast %cst_21 : f32 to vector<128x16xf32>
    %41 = arith.mulf %40, %39 : vector<128x16xf32>
    %cst_22 = arith.constant 4.471500e-02 : f32
    %42 = vector.broadcast %cst_22 : f32 to vector<128x16xf32>
    %43 = arith.mulf %42, %39 : vector<128x16xf32>
    %44 = arith.mulf %43, %39 : vector<128x16xf32>
    %45 = arith.mulf %44, %39 : vector<128x16xf32>
    %46 = arith.addf %39, %45 : vector<128x16xf32>
    %cst_23 = arith.constant 0.797884583 : f32
    %47 = vector.broadcast %cst_23 : f32 to vector<128x16xf32>
    %48 = arith.mulf %47, %46 : vector<128x16xf32>
    %49 = math.tanh %48 : vector<128x16xf32>
    %cst_24 = arith.constant 1.000000e+00 : f32
    %50 = vector.broadcast %cst_24 : f32 to vector<128x16xf32>
    %51 = arith.addf %50, %49 : vector<128x16xf32>
    %52 = arith.mulf %41, %51 : vector<128x16xf32>
    %53 = arith.truncf %52 : vector<128x16xf32> to vector<128x16xbf16>
    %c0_25 = arith.constant 0 : index
    %c0_26 = arith.constant 0 : index
    %54 = vector.load %arg22[%c0_25, %c0_26] : memref<128x16xbf16, #tpu.memory_space<vmem>>, vector<128x16xbf16>
    tpu.vector_store %arg22[%c0_25, %c0_26], %53 {strides = array<i32>} : memref<128x16xbf16, #tpu.memory_space<vmem>>, vector<128x16xbf16>,
    %55 = vector.extract_strided_slice %16 {offsets = [0, 0], sizes = [32, 32], strides = [1, 1]} : vector<128x32xbf16> to vector<32x32xbf16>
    %c0_27 = arith.constant 0 : index
    %c0_28 = arith.constant 0 : index
    %c0_29 = arith.constant 0 : index
    %56 = vector.load %arg7[%c0_27, %c0_28, %c0_29] : memref<4x32x32xbf16, #tpu.memory_space<vmem>>, vector<1x32x32xbf16>
    %57 = vector.shape_cast %56 : vector<1x32x32xbf16> to vector<32x32xbf16>
    %cst_30 = arith.constant dense<0.000000e+00> : vector<32x32xf32>
    %58 = tpu.matmul %55, %57, %cst_30 {dimension_numbers = #tpu.dot_dimension_numbers<[1], [0], [0], [1], [0, 0, 1, 1], [], []>} : vector<32x32xbf16>, vector<32x32xbf16>, vector<32x32xf32> -> vector<32x32xf32>
    %59 = vector.extract_strided_slice %16 {offsets = [32, 0], sizes = [32, 32], strides = [1, 1]} : vector<128x32xbf16> to vector<32x32xbf16>
    %c1 = arith.constant 1 : index
    %c0_31 = arith.constant 0 : index
    %c0_32 = arith.constant 0 : index
    %60 = vector.load %arg7[%c1, %c0_31, %c0_32] : memref<4x32x32xbf16, #tpu.memory_space<vmem>>, vector<1x32x32xbf16>
    %61 = vector.shape_cast %60 : vector<1x32x32xbf16> to vector<32x32xbf16>
    %cst_33 = arith.constant dense<0.000000e+00> : vector<32x32xf32>
    %62 = tpu.matmul %59, %61, %cst_33 {dimension_numbers = #tpu.dot_dimension_numbers<[1], [0], [0], [1], [0, 0, 1, 1], [], []>} : vector<32x32xbf16>, vector<32x32xbf16>, vector<32x32xf32> -> vector<32x32xf32>
    %63 = arith.addf %58, %62 : vector<32x32xf32>
    %64 = vector.extract_strided_slice %16 {offsets = [64, 0], sizes = [32, 32], strides = [1, 1]} : vector<128x32xbf16> to vector<32x32xbf16>
    %c2 = arith.constant 2 : index
    %c0_34 = arith.constant 0 : index
    %c0_35 = arith.constant 0 : index
    %65 = vector.load %arg7[%c2, %c0_34, %c0_35] : memref<4x32x32xbf16, #tpu.memory_space<vmem>>, vector<1x32x32xbf16>
    %66 = vector.shape_cast %65 : vector<1x32x32xbf16> to vector<32x32xbf16>
    %cst_36 = arith.constant dense<0.000000e+00> : vector<32x32xf32>
    %67 = tpu.matmul %64, %66, %cst_36 {dimension_numbers = #tpu.dot_dimension_numbers<[1], [0], [0], [1], [0, 0, 1, 1], [], []>} : vector<32x32xbf16>, vector<32x32xbf16>, vector<32x32xf32> -> vector<32x32xf32>
    %68 = arith.addf %63, %67 : vector<32x32xf32>
    %69 = vector.extract_strided_slice %16 {offsets = [96, 0], sizes = [32, 32], strides = [1, 1]} : vector<128x32xbf16> to vector<32x32xbf16>
    %c3 = arith.constant 3 : index
    %c0_37 = arith.constant 0 : index
    %c0_38 = arith.constant 0 : index
    %70 = vector.load %arg7[%c3, %c0_37, %c0_38] : memref<4x32x32xbf16, #tpu.memory_space<vmem>>, vector<1x32x32xbf16>
    %71 = vector.shape_cast %70 : vector<1x32x32xbf16> to vector<32x32xbf16>
    %cst_39 = arith.constant dense<0.000000e+00> : vector<32x32xf32>
    %72 = tpu.matmul %69, %71, %cst_39 {dimension_numbers = #tpu.dot_dimension_numbers<[1], [0], [0], [1], [0, 0, 1, 1], [], []>} : vector<32x32xbf16>, vector<32x32xbf16>, vector<32x32xf32> -> vector<32x32xf32>
    %73 = arith.addf %68, %72 : vector<32x32xf32>
    %cst_40 = arith.constant 5.000000e-01 : f32
    %74 = vector.broadcast %cst_40 : f32 to vector<32x32xf32>
    %75 = arith.mulf %74, %73 : vector<32x32xf32>
    %cst_41 = arith.constant 4.471500e-02 : f32
    %76 = vector.broadcast %cst_41 : f32 to vector<32x32xf32>
    %77 = arith.mulf %76, %73 : vector<32x32xf32>
    %78 = arith.mulf %77, %73 : vector<32x32xf32>
    %79 = arith.mulf %78, %73 : vector<32x32xf32>
    %80 = arith.addf %73, %79 : vector<32x32xf32>
    %cst_42 = arith.constant 0.797884583 : f32
    %81 = vector.broadcast %cst_42 : f32 to vector<32x32xf32>
    %82 = arith.mulf %81, %80 : vector<32x32xf32>
    %83 = math.tanh %82 : vector<32x32xf32>
    %cst_43 = arith.constant 1.000000e+00 : f32
    %84 = vector.broadcast %cst_43 : f32 to vector<32x32xf32>
    %85 = arith.addf %84, %83 : vector<32x32xf32>
    %86 = arith.mulf %75, %85 : vector<32x32xf32>
    %87 = arith.truncf %86 : vector<32x32xf32> to vector<32x32xbf16>
    %c0_44 = arith.constant 0 : index
    %c0_45 = arith.constant 0 : index
    %88 = vector.load %arg8[%c0_44, %c0_45] : memref<32x64xbf16, #tpu.memory_space<vmem>>, vector<32x64xbf16>
    %cst_46 = arith.constant dense<0.000000e+00> : vector<32x64xf32>
    %89 = tpu.matmul %87, %88, %cst_46 {dimension_numbers = #tpu.dot_dimension_numbers<[1], [0], [0], [1], [0, 0, 1, 1], [], []>} : vector<32x32xbf16>, vector<32x64xbf16>, vector<32x64xf32> -> vector<32x64xf32>
    %c0_47 = arith.constant 0 : index
    %c0_48 = arith.constant 0 : index
    %90 = vector.load %arg9[%c0_47, %c0_48] : memref<32x64xf32, #tpu.memory_space<vmem>>, vector<32x64xf32>
    %91 = arith.addf %89, %90 : vector<32x64xf32>
    %cst_49 = arith.constant 5.000000e-01 : f32
    %92 = vector.broadcast %cst_49 : f32 to vector<32x64xf32>
    %93 = arith.mulf %92, %91 : vector<32x64xf32>
    %cst_50 = arith.constant 4.471500e-02 : f32
    %94 = vector.broadcast %cst_50 : f32 to vector<32x64xf32>
    %95 = arith.mulf %94, %91 : vector<32x64xf32>
    %96 = arith.mulf %95, %91 : vector<32x64xf32>
    %97 = arith.mulf %96, %91 : vector<32x64xf32>
    %98 = arith.addf %91, %97 : vector<32x64xf32>
    %cst_51 = arith.constant 0.797884583 : f32
    %99 = vector.broadcast %cst_51 : f32 to vector<32x64xf32>
    %100 = arith.mulf %99, %98 : vector<32x64xf32>
    %101 = math.tanh %100 : vector<32x64xf32>
    %cst_52 = arith.constant 1.000000e+00 : f32
    %102 = vector.broadcast %cst_52 : f32 to vector<32x64xf32>
    %103 = arith.addf %102, %101 : vector<32x64xf32>
    %104 = arith.mulf %93, %103 : vector<32x64xf32>
    %105 = arith.truncf %104 : vector<32x64xf32> to vector<32x64xbf16>
    %c0_53 = arith.constant 0 : index
    %c0_54 = arith.constant 0 : index
    %106 = vector.load %arg10[%c0_53, %c0_54] : memref<64x16xbf16, #tpu.memory_space<vmem>>, vector<64x16xbf16>
    %cst_55 = arith.constant dense<0.000000e+00> : vector<32x16xf32>
    %107 = tpu.matmul %105, %106, %cst_55 {dimension_numbers = #tpu.dot_dimension_numbers<[1], [0], [0], [1], [0, 0, 1, 1], [], []>} : vector<32x64xbf16>, vector<64x16xbf16>, vector<32x16xf32> -> vector<32x16xf32>
    %c0_56 = arith.constant 0 : index
    %c0_57 = arith.constant 0 : index
    %108 = vector.load %arg11[%c0_56, %c0_57] : memref<1x16xf32, #tpu.memory_space<vmem>>, vector<1x16xf32>
    %109 = vector.broadcast %108 : vector<1x16xf32> to vector<32x16xf32>
    %110 = arith.addf %107, %109 : vector<32x16xf32>
    %cst_58 = arith.constant 5.000000e-01 : f32
    %111 = vector.broadcast %cst_58 : f32 to vector<32x16xf32>
    %112 = arith.mulf %111, %110 : vector<32x16xf32>
    %cst_59 = arith.constant 4.471500e-02 : f32
    %113 = vector.broadcast %cst_59 : f32 to vector<32x16xf32>
    %114 = arith.mulf %113, %110 : vector<32x16xf32>
    %115 = arith.mulf %114, %110 : vector<32x16xf32>
    %116 = arith.mulf %115, %110 : vector<32x16xf32>
    %117 = arith.addf %110, %116 : vector<32x16xf32>
    %cst_60 = arith.constant 0.797884583 : f32
    %118 = vector.broadcast %cst_60 : f32 to vector<32x16xf32>
    %119 = arith.mulf %118, %117 : vector<32x16xf32>
    %120 = math.tanh %119 : vector<32x16xf32>
    %cst_61 = arith.constant 1.000000e+00 : f32
    %121 = vector.broadcast %cst_61 : f32 to vector<32x16xf32>
    %122 = arith.addf %121, %120 : vector<32x16xf32>
    %123 = arith.mulf %112, %122 : vector<32x16xf32>
    %124 = arith.truncf %123 : vector<32x16xf32> to vector<32x16xbf16>
    %c0_62 = arith.constant 0 : index
    %c0_63 = arith.constant 0 : index
    %125 = vector.load %arg23[%c0_62, %c0_63] : memref<32x16xbf16, #tpu.memory_space<vmem>>, vector<32x16xbf16>
    tpu.vector_store %arg23[%c0_62, %c0_63], %124 {strides = array<i32>} : memref<32x16xbf16, #tpu.memory_space<vmem>>, vector<32x16xbf16>,
    %126 = vector.extract_strided_slice %87 {offsets = [0, 0], sizes = [8, 32], strides = [1, 1]} : vector<32x32xbf16> to vector<8x32xbf16>
    %c0_64 = arith.constant 0 : index
    %c0_65 = arith.constant 0 : index
    %c0_66 = arith.constant 0 : index
    %127 = vector.load %arg12[%c0_64, %c0_65, %c0_66] : memref<4x32x64xbf16, #tpu.memory_space<vmem>>, vector<1x32x64xbf16>
    %128 = vector.shape_cast %127 : vector<1x32x64xbf16> to vector<32x64xbf16>
    %cst_67 = arith.constant dense<0.000000e+00> : vector<8x64xf32>
    %129 = tpu.matmul %126, %128, %cst_67 {dimension_numbers = #tpu.dot_dimension_numbers<[1], [0], [0], [1], [0, 0, 1, 1], [], []>} : vector<8x32xbf16>, vector<32x64xbf16>, vector<8x64xf32> -> vector<8x64xf32>
    %130 = vector.extract_strided_slice %87 {offsets = [8, 0], sizes = [8, 32], strides = [1, 1]} : vector<32x32xbf16> to vector<8x32xbf16>
    %c1_68 = arith.constant 1 : index
    %c0_69 = arith.constant 0 : index
    %c0_70 = arith.constant 0 : index
    %131 = vector.load %arg12[%c1_68, %c0_69, %c0_70] : memref<4x32x64xbf16, #tpu.memory_space<vmem>>, vector<1x32x64xbf16>
    %132 = vector.shape_cast %131 : vector<1x32x64xbf16> to vector<32x64xbf16>
    %cst_71 = arith.constant dense<0.000000e+00> : vector<8x64xf32>
    %133 = tpu.matmul %130, %132, %cst_71 {dimension_numbers = #tpu.dot_dimension_numbers<[1], [0], [0], [1], [0, 0, 1, 1], [], []>} : vector<8x32xbf16>, vector<32x64xbf16>, vector<8x64xf32> -> vector<8x64xf32>
    %134 = arith.addf %129, %133 : vector<8x64xf32>
    %135 = vector.extract_strided_slice %87 {offsets = [16, 0], sizes = [8, 32], strides = [1, 1]} : vector<32x32xbf16> to vector<8x32xbf16>
    %c2_72 = arith.constant 2 : index
    %c0_73 = arith.constant 0 : index
    %c0_74 = arith.constant 0 : index
    %136 = vector.load %arg12[%c2_72, %c0_73, %c0_74] : memref<4x32x64xbf16, #tpu.memory_space<vmem>>, vector<1x32x64xbf16>
    %137 = vector.shape_cast %136 : vector<1x32x64xbf16> to vector<32x64xbf16>
    %cst_75 = arith.constant dense<0.000000e+00> : vector<8x64xf32>
    %138 = tpu.matmul %135, %137, %cst_75 {dimension_numbers = #tpu.dot_dimension_numbers<[1], [0], [0], [1], [0, 0, 1, 1], [], []>} : vector<8x32xbf16>, vector<32x64xbf16>, vector<8x64xf32> -> vector<8x64xf32>
    %139 = arith.addf %134, %138 : vector<8x64xf32>
    %140 = vector.extract_strided_slice %87 {offsets = [24, 0], sizes = [8, 32], strides = [1, 1]} : vector<32x32xbf16> to vector<8x32xbf16>
    %c3_76 = arith.constant 3 : index
    %c0_77 = arith.constant 0 : index
    %c0_78 = arith.constant 0 : index
    %141 = vector.load %arg12[%c3_76, %c0_77, %c0_78] : memref<4x32x64xbf16, #tpu.memory_space<vmem>>, vector<1x32x64xbf16>
    %142 = vector.shape_cast %141 : vector<1x32x64xbf16> to vector<32x64xbf16>
    %cst_79 = arith.constant dense<0.000000e+00> : vector<8x64xf32>
    %143 = tpu.matmul %140, %142, %cst_79 {dimension_numbers = #tpu.dot_dimension_numbers<[1], [0], [0], [1], [0, 0, 1, 1], [], []>} : vector<8x32xbf16>, vector<32x64xbf16>, vector<8x64xf32> -> vector<8x64xf32>
    %144 = arith.addf %139, %143 : vector<8x64xf32>
    %cst_80 = arith.constant 5.000000e-01 : f32
    %145 = vector.broadcast %cst_80 : f32 to vector<8x64xf32>
    %146 = arith.mulf %145, %144 : vector<8x64xf32>
    %cst_81 = arith.constant 4.471500e-02 : f32
    %147 = vector.broadcast %cst_81 : f32 to vector<8x64xf32>
    %148 = arith.mulf %147, %144 : vector<8x64xf32>
    %149 = arith.mulf %148, %144 : vector<8x64xf32>
    %150 = arith.mulf %149, %144 : vector<8x64xf32>
    %151 = arith.addf %144, %150 : vector<8x64xf32>
    %cst_82 = arith.constant 0.797884583 : f32
    %152 = vector.broadcast %cst_82 : f32 to vector<8x64xf32>
    %153 = arith.mulf %152, %151 : vector<8x64xf32>
    %154 = math.tanh %153 : vector<8x64xf32>
    %cst_83 = arith.constant 1.000000e+00 : f32
    %155 = vector.broadcast %cst_83 : f32 to vector<8x64xf32>
    %156 = arith.addf %155, %154 : vector<8x64xf32>
    %157 = arith.mulf %146, %156 : vector<8x64xf32>
    %158 = arith.truncf %157 : vector<8x64xf32> to vector<8x64xbf16>
    %c0_84 = arith.constant 0 : index
    %c0_85 = arith.constant 0 : index
    %159 = vector.load %arg13[%c0_84, %c0_85] : memref<64x64xbf16, #tpu.memory_space<vmem>>, vector<64x64xbf16>
    %cst_86 = arith.constant dense<0.000000e+00> : vector<8x64xf32>
    %160 = tpu.matmul %158, %159, %cst_86 {dimension_numbers = #tpu.dot_dimension_numbers<[1], [0], [0], [1], [0, 0, 1, 1], [], []>} : vector<8x64xbf16>, vector<64x64xbf16>, vector<8x64xf32> -> vector<8x64xf32>
    %c0_87 = arith.constant 0 : index
    %c0_88 = arith.constant 0 : index
    %161 = vector.load %arg14[%c0_87, %c0_88] : memref<8x64xf32, #tpu.memory_space<vmem>>, vector<8x64xf32>
    %162 = arith.addf %160, %161 : vector<8x64xf32>
    %cst_89 = arith.constant 5.000000e-01 : f32
    %163 = vector.broadcast %cst_89 : f32 to vector<8x64xf32>
    %164 = arith.mulf %163, %162 : vector<8x64xf32>
    %cst_90 = arith.constant 4.471500e-02 : f32
    %165 = vector.broadcast %cst_90 : f32 to vector<8x64xf32>
    %166 = arith.mulf %165, %162 : vector<8x64xf32>
    %167 = arith.mulf %166, %162 : vector<8x64xf32>
    %168 = arith.mulf %167, %162 : vector<8x64xf32>
    %169 = arith.addf %162, %168 : vector<8x64xf32>
    %cst_91 = arith.constant 0.797884583 : f32
    %170 = vector.broadcast %cst_91 : f32 to vector<8x64xf32>
    %171 = arith.mulf %170, %169 : vector<8x64xf32>
    %172 = math.tanh %171 : vector<8x64xf32>
    %cst_92 = arith.constant 1.000000e+00 : f32
    %173 = vector.broadcast %cst_92 : f32 to vector<8x64xf32>
    %174 = arith.addf %173, %172 : vector<8x64xf32>
    %175 = arith.mulf %164, %174 : vector<8x64xf32>
    %176 = arith.truncf %175 : vector<8x64xf32> to vector<8x64xbf16>
    %c0_93 = arith.constant 0 : index
    %c0_94 = arith.constant 0 : index
    %177 = vector.load %arg15[%c0_93, %c0_94] : memref<64x16xbf16, #tpu.memory_space<vmem>>, vector<64x16xbf16>
    %cst_95 = arith.constant dense<0.000000e+00> : vector<8x16xf32>
    %178 = tpu.matmul %176, %177, %cst_95 {dimension_numbers = #tpu.dot_dimension_numbers<[1], [0], [0], [1], [0, 0, 1, 1], [], []>} : vector<8x64xbf16>, vector<64x16xbf16>, vector<8x16xf32> -> vector<8x16xf32>
    %c0_96 = arith.constant 0 : index
    %c0_97 = arith.constant 0 : index
    %179 = vector.load %arg16[%c0_96, %c0_97] : memref<1x16xf32, #tpu.memory_space<vmem>>, vector<1x16xf32>
    %180 = vector.broadcast %179 : vector<1x16xf32> to vector<8x16xf32>
    %181 = arith.addf %178, %180 : vector<8x16xf32>
    %cst_98 = arith.constant 5.000000e-01 : f32
    %182 = vector.broadcast %cst_98 : f32 to vector<8x16xf32>
    %183 = arith.mulf %182, %181 : vector<8x16xf32>
    %cst_99 = arith.constant 4.471500e-02 : f32
    %184 = vector.broadcast %cst_99 : f32 to vector<8x16xf32>
    %185 = arith.mulf %184, %181 : vector<8x16xf32>
    %186 = arith.mulf %185, %181 : vector<8x16xf32>
    %187 = arith.mulf %186, %181 : vector<8x16xf32>
    %188 = arith.addf %181, %187 : vector<8x16xf32>
    %cst_100 = arith.constant 0.797884583 : f32
    %189 = vector.broadcast %cst_100 : f32 to vector<8x16xf32>
    %190 = arith.mulf %189, %188 : vector<8x16xf32>
    %191 = math.tanh %190 : vector<8x16xf32>
    %cst_101 = arith.constant 1.000000e+00 : f32
    %192 = vector.broadcast %cst_101 : f32 to vector<8x16xf32>
    %193 = arith.addf %192, %191 : vector<8x16xf32>
    %194 = arith.mulf %183, %193 : vector<8x16xf32>
    %195 = arith.truncf %194 : vector<8x16xf32> to vector<8x16xbf16>
    %c0_102 = arith.constant 0 : index
    %c0_103 = arith.constant 0 : index
    %196 = vector.load %arg24[%c0_102, %c0_103] : memref<8x16xbf16, #tpu.memory_space<vmem>>, vector<8x16xbf16>
    tpu.vector_store %arg24[%c0_102, %c0_103], %195 {strides = array<i32>} : memref<8x16xbf16, #tpu.memory_space<vmem>>, vector<8x16xbf16>,
    %197 = vector.extract_strided_slice %158 {offsets = [0, 0], sizes = [2, 64], strides = [1, 1]} : vector<8x64xbf16> to vector<2x64xbf16>
    %c0_104 = arith.constant 0 : index
    %c0_105 = arith.constant 0 : index
    %c0_106 = arith.constant 0 : index
    %198 = vector.load %arg17[%c0_104, %c0_105, %c0_106] : memref<4x64x96xbf16, #tpu.memory_space<vmem>>, vector<1x64x96xbf16>
    %199 = vector.shape_cast %198 : vector<1x64x96xbf16> to vector<64x96xbf16>
    %cst_107 = arith.constant dense<0.000000e+00> : vector<2x96xf32>
    %200 = tpu.matmul %197, %199, %cst_107 {dimension_numbers = #tpu.dot_dimension_numbers<[1], [0], [0], [1], [0, 0, 1, 1], [], []>} : vector<2x64xbf16>, vector<64x96xbf16>, vector<2x96xf32> -> vector<2x96xf32>
    %201 = vector.extract_strided_slice %158 {offsets = [2, 0], sizes = [2, 64], strides = [1, 1]} : vector<8x64xbf16> to vector<2x64xbf16>
    %c1_108 = arith.constant 1 : index
    %c0_109 = arith.constant 0 : index
    %c0_110 = arith.constant 0 : index
    %202 = vector.load %arg17[%c1_108, %c0_109, %c0_110] : memref<4x64x96xbf16, #tpu.memory_space<vmem>>, vector<1x64x96xbf16>
    %203 = vector.shape_cast %202 : vector<1x64x96xbf16> to vector<64x96xbf16>
    %cst_111 = arith.constant dense<0.000000e+00> : vector<2x96xf32>
    %204 = tpu.matmul %201, %203, %cst_111 {dimension_numbers = #tpu.dot_dimension_numbers<[1], [0], [0], [1], [0, 0, 1, 1], [], []>} : vector<2x64xbf16>, vector<64x96xbf16>, vector<2x96xf32> -> vector<2x96xf32>
    %205 = arith.addf %200, %204 : vector<2x96xf32>
    %206 = vector.extract_strided_slice %158 {offsets = [4, 0], sizes = [2, 64], strides = [1, 1]} : vector<8x64xbf16> to vector<2x64xbf16>
    %c2_112 = arith.constant 2 : index
    %c0_113 = arith.constant 0 : index
    %c0_114 = arith.constant 0 : index
    %207 = vector.load %arg17[%c2_112, %c0_113, %c0_114] : memref<4x64x96xbf16, #tpu.memory_space<vmem>>, vector<1x64x96xbf16>
    %208 = vector.shape_cast %207 : vector<1x64x96xbf16> to vector<64x96xbf16>
    %cst_115 = arith.constant dense<0.000000e+00> : vector<2x96xf32>
    %209 = tpu.matmul %206, %208, %cst_115 {dimension_numbers = #tpu.dot_dimension_numbers<[1], [0], [0], [1], [0, 0, 1, 1], [], []>} : vector<2x64xbf16>, vector<64x96xbf16>, vector<2x96xf32> -> vector<2x96xf32>
    %210 = arith.addf %205, %209 : vector<2x96xf32>
    %211 = vector.extract_strided_slice %158 {offsets = [6, 0], sizes = [2, 64], strides = [1, 1]} : vector<8x64xbf16> to vector<2x64xbf16>
    %c3_116 = arith.constant 3 : index
    %c0_117 = arith.constant 0 : index
    %c0_118 = arith.constant 0 : index
    %212 = vector.load %arg17[%c3_116, %c0_117, %c0_118] : memref<4x64x96xbf16, #tpu.memory_space<vmem>>, vector<1x64x96xbf16>
    %213 = vector.shape_cast %212 : vector<1x64x96xbf16> to vector<64x96xbf16>
    %cst_119 = arith.constant dense<0.000000e+00> : vector<2x96xf32>
    %214 = tpu.matmul %211, %213, %cst_119 {dimension_numbers = #tpu.dot_dimension_numbers<[1], [0], [0], [1], [0, 0, 1, 1], [], []>} : vector<2x64xbf16>, vector<64x96xbf16>, vector<2x96xf32> -> vector<2x96xf32>
    %215 = arith.addf %210, %214 : vector<2x96xf32>
    %cst_120 = arith.constant 5.000000e-01 : f32
    %216 = vector.broadcast %cst_120 : f32 to vector<2x96xf32>
    %217 = arith.mulf %216, %215 : vector<2x96xf32>
    %cst_121 = arith.constant 4.471500e-02 : f32
    %218 = vector.broadcast %cst_121 : f32 to vector<2x96xf32>
    %219 = arith.mulf %218, %215 : vector<2x96xf32>
    %220 = arith.mulf %219, %215 : vector<2x96xf32>
    %221 = arith.mulf %220, %215 : vector<2x96xf32>
    %222 = arith.addf %215, %221 : vector<2x96xf32>
    %cst_122 = arith.constant 0.797884583 : f32
    %223 = vector.broadcast %cst_122 : f32 to vector<2x96xf32>
    %224 = arith.mulf %223, %222 : vector<2x96xf32>
    %225 = math.tanh %224 : vector<2x96xf32>
    %cst_123 = arith.constant 1.000000e+00 : f32
    %226 = vector.broadcast %cst_123 : f32 to vector<2x96xf32>
    %227 = arith.addf %226, %225 : vector<2x96xf32>
    %228 = arith.mulf %217, %227 : vector<2x96xf32>
    %229 = arith.truncf %228 : vector<2x96xf32> to vector<2x96xbf16>
    %c0_124 = arith.constant 0 : index
    %c0_125 = arith.constant 0 : index
    %230 = vector.load %arg18[%c0_124, %c0_125] : memref<96x64xbf16, #tpu.memory_space<vmem>>, vector<96x64xbf16>
    %cst_126 = arith.constant dense<0.000000e+00> : vector<2x64xf32>
    %231 = tpu.matmul %229, %230, %cst_126 {dimension_numbers = #tpu.dot_dimension_numbers<[1], [0], [0], [1], [0, 0, 1, 1], [], []>} : vector<2x96xbf16>, vector<96x64xbf16>, vector<2x64xf32> -> vector<2x64xf32>
    %c0_127 = arith.constant 0 : index
    %c0_128 = arith.constant 0 : index
    %232 = vector.load %arg19[%c0_127, %c0_128] : memref<2x64xf32, #tpu.memory_space<vmem>>, vector<2x64xf32>
    %233 = arith.addf %231, %232 : vector<2x64xf32>
    %cst_129 = arith.constant 5.000000e-01 : f32
    %234 = vector.broadcast %cst_129 : f32 to vector<2x64xf32>
    %235 = arith.mulf %234, %233 : vector<2x64xf32>
    %cst_130 = arith.constant 4.471500e-02 : f32
    %236 = vector.broadcast %cst_130 : f32 to vector<2x64xf32>
    %237 = arith.mulf %236, %233 : vector<2x64xf32>
    %238 = arith.mulf %237, %233 : vector<2x64xf32>
    %239 = arith.mulf %238, %233 : vector<2x64xf32>
    %240 = arith.addf %233, %239 : vector<2x64xf32>
    %cst_131 = arith.constant 0.797884583 : f32
    %241 = vector.broadcast %cst_131 : f32 to vector<2x64xf32>
    %242 = arith.mulf %241, %240 : vector<2x64xf32>
    %243 = math.tanh %242 : vector<2x64xf32>
    %cst_132 = arith.constant 1.000000e+00 : f32
    %244 = vector.broadcast %cst_132 : f32 to vector<2x64xf32>
    %245 = arith.addf %244, %243 : vector<2x64xf32>
    %246 = arith.mulf %235, %245 : vector<2x64xf32>
    %247 = arith.truncf %246 : vector<2x64xf32> to vector<2x64xbf16>
    %c0_133 = arith.constant 0 : index
    %c0_134 = arith.constant 0 : index
    %248 = vector.load %arg20[%c0_133, %c0_134] : memref<64x16xbf16, #tpu.memory_space<vmem>>, vector<64x16xbf16>
    %cst_135 = arith.constant dense<0.000000e+00> : vector<2x16xf32>
    %249 = tpu.matmul %247, %248, %cst_135 {dimension_numbers = #tpu.dot_dimension_numbers<[1], [0], [0], [1], [0, 0, 1, 1], [], []>} : vector<2x64xbf16>, vector<64x16xbf16>, vector<2x16xf32> -> vector<2x16xf32>
    %c0_136 = arith.constant 0 : index
    %c0_137 = arith.constant 0 : index
    %250 = vector.load %arg21[%c0_136, %c0_137] : memref<1x16xf32, #tpu.memory_space<vmem>>, vector<1x16xf32>
    %251 = vector.broadcast %250 : vector<1x16xf32> to vector<2x16xf32>
    %252 = arith.addf %249, %251 : vector<2x16xf32>
    %cst_138 = arith.constant 5.000000e-01 : f32
    %253 = vector.broadcast %cst_138 : f32 to vector<2x16xf32>
    %254 = arith.mulf %253, %252 : vector<2x16xf32>
    %cst_139 = arith.constant 4.471500e-02 : f32
    %255 = vector.broadcast %cst_139 : f32 to vector<2x16xf32>
    %256 = arith.mulf %255, %252 : vector<2x16xf32>
    %257 = arith.mulf %256, %252 : vector<2x16xf32>
    %258 = arith.mulf %257, %252 : vector<2x16xf32>
    %259 = arith.addf %252, %258 : vector<2x16xf32>
    %cst_140 = arith.constant 0.797884583 : f32
    %260 = vector.broadcast %cst_140 : f32 to vector<2x16xf32>
    %261 = arith.mulf %260, %259 : vector<2x16xf32>
    %262 = math.tanh %261 : vector<2x16xf32>
    %cst_141 = arith.constant 1.000000e+00 : f32
    %263 = vector.broadcast %cst_141 : f32 to vector<2x16xf32>
    %264 = arith.addf %263, %262 : vector<2x16xf32>
    %265 = arith.mulf %254, %264 : vector<2x16xf32>
    %266 = arith.truncf %265 : vector<2x16xf32> to vector<2x16xbf16>
    %c0_142 = arith.constant 0 : index
    %c0_143 = arith.constant 0 : index
    %267 = vector.load %arg25[%c0_142, %c0_143] : memref<2x16xbf16, #tpu.memory_space<vmem>>, vector<2x16xbf16>
    tpu.vector_store %arg25[%c0_142, %c0_143], %266 {strides = array<i32>} : memref<2x16xbf16, #tpu.memory_space<vmem>>, vector<2x16xbf16>,
    return
  }
  func.func @transform_0(%arg0: i32) -> (i32, i32) {
    %c0_i32 = arith.constant 0 : i32
    %c0_i32_0 = arith.constant 0 : i32
    return %arg0, %c0_i32 : i32, i32
  }
  func.func @transform_1(%arg0: i32) -> (i32, i32) {
    %c0_i32 = arith.constant 0 : i32
    %c0_i32_0 = arith.constant 0 : i32
    %c0_i32_1 = arith.constant 0 : i32
    return %c0_i32, %c0_i32_0 : i32, i32
  }
  func.func @transform_2(%arg0: i32) -> (i32, i32) {
    %c0_i32 = arith.constant 0 : i32
    %c0_i32_0 = arith.constant 0 : i32
    %c0_i32_1 = arith.constant 0 : i32
    return %c0_i32, %c0_i32_0 : i32, i32
  }
  func.func @transform_3(%arg0: i32) -> (i32, i32) {
    %c0_i32 = arith.constant 0 : i32
    %c0_i32_0 = arith.constant 0 : i32
    %c0_i32_1 = arith.constant 0 : i32
    return %c0_i32, %c0_i32_0 : i32, i32
  }
  func.func @transform_4(%arg0: i32) -> (i32, i32) {
    %c0_i32 = arith.constant 0 : i32
    %c0_i32_0 = arith.constant 0 : i32
    %c0_i32_1 = arith.constant 0 : i32
    return %c0_i32, %c0_i32_0 : i32, i32
  }
  func.func @transform_5(%arg0: i32) -> (i32, i32) {
    %c0_i32 = arith.constant 0 : i32
    %c0_i32_0 = arith.constant 0 : i32
    %c0_i32_1 = arith.constant 0 : i32
    return %c0_i32, %c0_i32_0 : i32, i32
  }
  func.func @transform_6(%arg0: i32) -> (i32, i32, i32) {
    %c0_i32 = arith.constant 0 : i32
    %c0_i32_0 = arith.constant 0 : i32
    %c0_i32_1 = arith.constant 0 : i32
    %c0_i32_2 = arith.constant 0 : i32
    return %c0_i32, %c0_i32_0, %c0_i32_1 : i32, i32, i32
  }
  func.func @transform_7(%arg0: i32) -> (i32, i32) {
    %c0_i32 = arith.constant 0 : i32
    %c0_i32_0 = arith.constant 0 : i32
    %c0_i32_1 = arith.constant 0 : i32
    return %c0_i32, %c0_i32_0 : i32, i32
  }
  func.func @transform_8(%arg0: i32) -> (i32, i32) {
    %c0_i32 = arith.constant 0 : i32
    %c0_i32_0 = arith.constant 0 : i32
    %c0_i32_1 = arith.constant 0 : i32
    return %c0_i32, %c0_i32_0 : i32, i32
  }
  func.func @transform_9(%arg0: i32) -> (i32, i32) {
    %c0_i32 = arith.constant 0 : i32
    %c0_i32_0 = arith.constant 0 : i32
    %c0_i32_1 = arith.constant 0 : i32
    return %c0_i32, %c0_i32_0 : i32, i32
  }
  func.func @transform_10(%arg0: i32) -> (i32, i32) {
    %c0_i32 = arith.constant 0 : i32
    %c0_i32_0 = arith.constant 0 : i32
    %c0_i32_1 = arith.constant 0 : i32
    return %c0_i32, %c0_i32_0 : i32, i32
  }
  func.func @transform_11(%arg0: i32) -> (i32, i32, i32) {
    %c0_i32 = arith.constant 0 : i32
    %c0_i32_0 = arith.constant 0 : i32
    %c0_i32_1 = arith.constant 0 : i32
    %c0_i32_2 = arith.constant 0 : i32
    return %c0_i32, %c0_i32_0, %c0_i32_1 : i32, i32, i32
  }
  func.func @transform_12(%arg0: i32) -> (i32, i32) {
    %c0_i32 = arith.constant 0 : i32
    %c0_i32_0 = arith.constant 0 : i32
    %c0_i32_1 = arith.constant 0 : i32
    return %c0_i32, %c0_i32_0 : i32, i32
  }
  func.func @transform_13(%arg0: i32) -> (i32, i32) {
    %c0_i32 = arith.constant 0 : i32
    %c0_i32_0 = arith.constant 0 : i32
    %c0_i32_1 = arith.constant 0 : i32
    return %c0_i32, %c0_i32_0 : i32, i32
  }
  func.func @transform_14(%arg0: i32) -> (i32, i32) {
    %c0_i32 = arith.constant 0 : i32
    %c0_i32_0 = arith.constant 0 : i32
    %c0_i32_1 = arith.constant 0 : i32
    return %c0_i32, %c0_i32_0 : i32, i32
  }
  func.func @transform_15(%arg0: i32) -> (i32, i32) {
    %c0_i32 = arith.constant 0 : i32
    %c0_i32_0 = arith.constant 0 : i32
    %c0_i32_1 = arith.constant 0 : i32
    return %c0_i32, %c0_i32_0 : i32, i32
  }
  func.func @transform_16(%arg0: i32) -> (i32, i32, i32) {
    %c0_i32 = arith.constant 0 : i32
    %c0_i32_0 = arith.constant 0 : i32
    %c0_i32_1 = arith.constant 0 : i32
    %c0_i32_2 = arith.constant 0 : i32
    return %c0_i32, %c0_i32_0, %c0_i32_1 : i32, i32, i32
  }
  func.func @transform_17(%arg0: i32) -> (i32, i32) {
    %c0_i32 = arith.constant 0 : i32
    %c0_i32_0 = arith.constant 0 : i32
    %c0_i32_1 = arith.constant 0 : i32
    return %c0_i32, %c0_i32_0 : i32, i32
  }
  func.func @transform_18(%arg0: i32) -> (i32, i32) {
    %c0_i32 = arith.constant 0 : i32
    %c0_i32_0 = arith.constant 0 : i32
    %c0_i32_1 = arith.constant 0 : i32
    return %c0_i32, %c0_i32_0 : i32, i32
  }
  func.func @transform_19(%arg0: i32) -> (i32, i32) {
    %c0_i32 = arith.constant 0 : i32
    %c0_i32_0 = arith.constant 0 : i32
    %c0_i32_1 = arith.constant 0 : i32
    return %c0_i32, %c0_i32_0 : i32, i32
  }
  func.func @transform_20(%arg0: i32) -> (i32, i32) {
    %c0_i32 = arith.constant 0 : i32
    %c0_i32_0 = arith.constant 0 : i32
    %c0_i32_1 = arith.constant 0 : i32
    return %c0_i32, %c0_i32_0 : i32, i32
  }
  func.func @transform_21(%arg0: i32) -> (i32, i32) {
    %c0_i32 = arith.constant 0 : i32
    %c0_i32_0 = arith.constant 0 : i32
    return %arg0, %c0_i32 : i32, i32
  }
  func.func @transform_22(%arg0: i32) -> (i32, i32) {
    %c0_i32 = arith.constant 0 : i32
    %c0_i32_0 = arith.constant 0 : i32
    return %arg0, %c0_i32 : i32, i32
  }
  func.func @transform_23(%arg0: i32) -> (i32, i32) {
    %c0_i32 = arith.constant 0 : i32
    %c0_i32_0 = arith.constant 0 : i32
    return %arg0, %c0_i32 : i32, i32
  }
  func.func @transform_24(%arg0: i32) -> (i32, i32) {
    %c0_i32 = arith.constant 0 : i32
    %c0_i32_0 = arith.constant 0 : i32
    return %arg0, %c0_i32 : i32, i32
  }
}

</mosaic_0001>

<llo_original>
// kernel: forward.3
$region0: #{forward.3}
  #allocation0 [shape = 'u32[]', space=smem, size = 0x4, offset = 0x4, fixed_abs, tag = 'smem constant byte address 0x4 - core index']
  #allocation1 [shape = 'u32[144,128]{1,0:T(1,128)}', space=vmem, size = 0x12000, scoped, tag = 'internal scratch']
  %s0 = inlined_call_operand.vmem [shape: bf16[2,1360], index: 0, kind: input, shape index: {}]
  %s1 = inlined_call_operand.vmem [shape: bf16[1360,256], index: 1, kind: input, shape index: {}]
  %s2 = inlined_call_operand.vmem [shape: f32[1,256], index: 2, kind: input, shape index: {}]
  %s3 = inlined_call_operand.vmem [shape: bf16[256,256], index: 3, kind: input, shape index: {}]
  %s4 = inlined_call_operand.vmem [shape: f32[1,256], index: 4, kind: input, shape index: {}]
  %s5 = inlined_call_operand.hbm [shape: f32[2,256], index: 5, kind: output, shape index: {}]
  %s6 = sld [smem:[#allocation0]]
  $region30: #{forward.3} parent=0
    _
  %s8 = ssub.s32 1, %s6
  %s9 = scalar_select 0, %s8, %s6
  $region1: #{forward.3} parent=0
    #allocation2 [shape = 'u8[2048]{0}', space=vmem, size = 0x800, scoped, tag = 'output window, operand 0, single buffered']
    #allocation3 [shape = 's32[1]{0}', space=sflag, size = 0x4, scoped, tag = 'scoped memory for forward.3']
    %10 = vsyncpa [#allocation3], 0
    // Predicated region
    $region2: #{forward.3} parent=1 // pred_check
      _
    $region3: #{forward.3} parent=1 // pred_check_branch
      %12 = sbr.rel (0) target = $region5
    $region4: #{forward.3} parent=1 // pred_region
      _
    $region5: #{forward.3} parent=1 // pred_fallthru
      _
    // Predicated region
    $region6: #{forward.3} parent=1 // pred_check
      _
    $region7: #{forward.3} parent=1 // pred_check_branch
      %14 = sbr.rel (0) target = $region9
    $region8: #{forward.3} parent=1 // pred_region
      _
    $region9: #{forward.3} parent=1 // pred_fallthru
      _
    // Predicated region
    $region10: #{forward.3} parent=1 // pred_check
      _
    $region11: #{forward.3} parent=1 // pred_check_branch
      %16 = sbr.rel (0) target = $region13
    $region12: #{forward.3} parent=1 // pred_region
      _
    $region13: #{forward.3} parent=1 // pred_fallthru
      _
    // Predicated region
    $region14: #{forward.3} parent=1 // pred_check
      _
    $region15: #{forward.3} parent=1 // pred_check_branch
      %18 = sbr.rel (0) target = $region17
    $region16: #{forward.3} parent=1 // pred_region
      _
    $region17: #{forward.3} parent=1 // pred_fallthru
      _
    // Predicated region
    $region18: #{forward.3} parent=1 // pred_check
      _
    $region19: #{forward.3} parent=1 // pred_check_branch
      %20 = sbr.rel (0) target = $region21
    $region20: #{forward.3} parent=1 // pred_region
      _
    $region21: #{forward.3} parent=1 // pred_fallthru
      _
    %v22 = vld [vmem:[%s0] sm:$0xff]
    %v23 = vld [vmem:[%s0 + $0x8] sm:$0x7]
    %v24 = vld [vmem:[%s1] sm:$0xff]
    %v25 = vld [vmem:[%s1 + $0x8] sm:$0xff]
    %v26 = vld [vmem:[%s1 + $0x10] sm:$0xff]
    %v27 = vld [vmem:[%s1 + $0x18] sm:$0xff]
    %v28 = vld [vmem:[%s1 + $0x20] sm:$0xff]
    %v29 = vld [vmem:[%s1 + $0x28] sm:$0xff]
    %v30 = vld [vmem:[%s1 + $0x30] sm:$0xff]
    %v31 = vld [vmem:[%s1 + $0x38] sm:$0xff]
    %v32 = vld [vmem:[%s1 + $0x40] sm:$0xff]
    %v33 = vld [vmem:[%s1 + $0x48] sm:$0xff]
    %v34 = vld [vmem:[%s1 + $0x50] sm:$0xff]
    %v35 = vld [vmem:[%s1 + $0x58] sm:$0xff]
    %v36 = vld [vmem:[%s1 + $0x60] sm:$0xff]
    %v37 = vld [vmem:[%s1 + $0x68] sm:$0xff]
    %v38 = vld [vmem:[%s1 + $0x70] sm:$0xff]
    %v39 = vld [vmem:[%s1 + $0x78] sm:$0xff]
    %v40 = vld [vmem:[%s1 + $0x80] sm:$0xff]
    %v41 = vld [vmem:[%s1 + $0x88] sm:$0xff]
    %v42 = vld [vmem:[%s1 + $0x90] sm:$0xff]
    %v43 = vld [vmem:[%s1 + $0x98] sm:$0xff]
    %v44 = vld [vmem:[%s1 + $0xa0] sm:$0xff]
    %v45 = vld [vmem:[%s1 + $0xa8] sm:$0xff]
    %v46 = vld [vmem:[%s1 + $0xb0] sm:$0xff]
    %v47 = vld [vmem:[%s1 + $0xb8] sm:$0xff]
    %v48 = vld [vmem:[%s1 + $0xc0] sm:$0xff]
    %v49 = vld [vmem:[%s1 + $0xc8] sm:$0xff]
    %v50 = vld [vmem:[%s1 + $0xd0] sm:$0xff]
    %v51 = vld [vmem:[%s1 + $0xd8] sm:$0xff]
    %v52 = vld [vmem:[%s1 + $0xe0] sm:$0xff]
    %v53 = vld [vmem:[%s1 + $0xe8] sm:$0xff]
    %v54 = vld [vmem:[%s1 + $0xf0] sm:$0xff]
    %v55 = vld [vmem:[%s1 + $0xf8] sm:$0xff]
    %v56 = vld [vmem:[%s1 + $0x100] sm:$0xff]
    %v57 = vld [vmem:[%s1 + $0x108] sm:$0xff]
    %v58 = vld [vmem:[%s1 + $0x110] sm:$0xff]
    %v59 = vld [vmem:[%s1 + $0x118] sm:$0xff]
    %v60 = vld [vmem:[%s1 + $0x120] sm:$0xff]
    %v61 = vld [vmem:[%s1 + $0x128] sm:$0xff]
    %v62 = vld [vmem:[%s1 + $0x130] sm:$0xff]
    %v63 = vld [vmem:[%s1 + $0x138] sm:$0xff]
    %v64 = vld [vmem:[%s1 + $0x140] sm:$0xff]
    %v65 = vld [vmem:[%s1 + $0x148] sm:$0xff]
    %v66 = vld [vmem:[%s1 + $0x150] sm:$0xff]
    %v67 = vld [vmem:[%s1 + $0x158] sm:$0xff]
    %v68 = vld [vmem:[%s1 + $0x160] sm:$0xff]
    %v69 = vld [vmem:[%s1 + $0x168] sm:$0xff]
    %v70 = vld [vmem:[%s1 + $0x170] sm:$0xff]
    %v71 = vld [vmem:[%s1 + $0x178] sm:$0xff]
    %v72 = vld [vmem:[%s1 + $0x180] sm:$0xff]
    %v73 = vld [vmem:[%s1 + $0x188] sm:$0xff]
    %v74 = vld [vmem:[%s1 + $0x190] sm:$0xff]
    %v75 = vld [vmem:[%s1 + $0x198] sm:$0xff]
    %v76 = vld [vmem:[%s1 + $0x1a0] sm:$0xff]
    %v77 = vld [vmem:[%s1 + $0x1a8] sm:$0xff]
    %v78 = vld [vmem:[%s1 + $0x1b0] sm:$0xff]
    %v79 = vld [vmem:[%s1 + $0x1b8] sm:$0xff]
    %v80 = vld [vmem:[%s1 + $0x1c0] sm:$0xff]
    %v81 = vld [vmem:[%s1 + $0x1c8] sm:$0xff]
    %v82 = vld [vmem:[%s1 + $0x1d0] sm:$0xff]
    %v83 = vld [vmem:[%s1 + $0x1d8] sm:$0xff]
    %v84 = vld [vmem:[%s1 + $0x1e0] sm:$0xff]
    %v85 = vld [vmem:[%s1 + $0x1e8] sm:$0xff]
    %v86 = vld [vmem:[%s1 + $0x1f0] sm:$0xff]
    %v87 = vld [vmem:[%s1 + $0x1f8] sm:$0xff]
    %v88 = vld [vmem:[%s1 + $0x200] sm:$0xff]
    %v89 = vld [vmem:[%s1 + $0x208] sm:$0xff]
    %v90 = vld [vmem:[%s1 + $0x210] sm:$0xff]
    %v91 = vld [vmem:[%s1 + $0x218] sm:$0xff]
    %v92 = vld [vmem:[%s1 + $0x220] sm:$0xff]
    %v93 = vld [vmem:[%s1 + $0x228] sm:$0xff]
    %v94 = vld [vmem:[%s1 + $0x230] sm:$0xff]
    %v95 = vld [vmem:[%s1 + $0x238] sm:$0xff]
    %v96 = vld [vmem:[%s1 + $0x240] sm:$0xff]
    %v97 = vld [vmem:[%s1 + $0x248] sm:$0xff]
    %v98 = vld [vmem:[%s1 + $0x250] sm:$0xff]
    %v99 = vld [vmem:[%s1 + $0x258] sm:$0xff]
    %v100 = vld [vmem:[%s1 + $0x260] sm:$0xff]
    %v101 = vld [vmem:[%s1 + $0x268] sm:$0xff]
    %v102 = vld [vmem:[%s1 + $0x270] sm:$0xff]
    %v103 = vld [vmem:[%s1 + $0x278] sm:$0xff]
    %v104 = vld [vmem:[%s1 + $0x280] sm:$0xff]
    %v105 = vld [vmem:[%s1 + $0x288] sm:$0xff]
    %v106 = vld [vmem:[%s1 + $0x290] sm:$0xff]
    %v107 = vld [vmem:[%s1 + $0x298] sm:$0xff]
    %v108 = vld [vmem:[%s1 + $0x2a0] sm:$0xff]
    %v109 = vld [vmem:[%s1 + $0x2a8] sm:$0xff]
    %v110 = vld [vmem:[%s1 + $0x2b0] sm:$0xff]
    %v111 = vld [vmem:[%s1 + $0x2b8] sm:$0xff]
    %v112 = vld [vmem:[%s1 + $0x2c0] sm:$0xff]
    %v113 = vld [vmem:[%s1 + $0x2c8] sm:$0xff]
    %v114 = vld [vmem:[%s1 + $0x2d0] sm:$0xff]
    %v115 = vld [vmem:[%s1 + $0x2d8] sm:$0xff]
    %v116 = vld [vmem:[%s1 + $0x2e0] sm:$0xff]
    %v117 = vld [vmem:[%s1 + $0x2e8] sm:$0xff]
    %v118 = vld [vmem:[%s1 + $0x2f0] sm:$0xff]
    %v119 = vld [vmem:[%s1 + $0x2f8] sm:$0xff]
    %v120 = vld [vmem:[%s1 + $0x300] sm:$0xff]
    %v121 = vld [vmem:[%s1 + $0x308] sm:$0xff]
    %v122 = vld [vmem:[%s1 + $0x310] sm:$0xff]
    %v123 = vld [vmem:[%s1 + $0x318] sm:$0xff]
    %v124 = vld [vmem:[%s1 + $0x320] sm:$0xff]
    %v125 = vld [vmem:[%s1 + $0x328] sm:$0xff]
    %v126 = vld [vmem:[%s1 + $0x330] sm:$0xff]
    %v127 = vld [vmem:[%s1 + $0x338] sm:$0xff]
    %v128 = vld [vmem:[%s1 + $0x340] sm:$0xff]
    %v129 = vld [vmem:[%s1 + $0x348] sm:$0xff]
    %v130 = vld [vmem:[%s1 + $0x350] sm:$0xff]
    %v131 = vld [vmem:[%s1 + $0x358] sm:$0xff]
    %v132 = vld [vmem:[%s1 + $0x360] sm:$0xff]
    %v133 = vld [vmem:[%s1 + $0x368] sm:$0xff]
    %v134 = vld [vmem:[%s1 + $0x370] sm:$0xff]
    %v135 = vld [vmem:[%s1 + $0x378] sm:$0xff]
    %v136 = vld [vmem:[%s1 + $0x380] sm:$0xff]
    %v137 = vld [vmem:[%s1 + $0x388] sm:$0xff]
    %v138 = vld [vmem:[%s1 + $0x390] sm:$0xff]
    %v139 = vld [vmem:[%s1 + $0x398] sm:$0xff]
    %v140 = vld [vmem:[%s1 + $0x3a0] sm:$0xff]
    %v141 = vld [vmem:[%s1 + $0x3a8] sm:$0xff]
    %v142 = vld [vmem:[%s1 + $0x3b0] sm:$0xff]
    %v143 = vld [vmem:[%s1 + $0x3b8] sm:$0xff]
    %v144 = vld [vmem:[%s1 + $0x3c0] sm:$0xff]
    %v145 = vld [vmem:[%s1 + $0x3c8] sm:$0xff]
    %v146 = vld [vmem:[%s1 + $0x3d0] sm:$0xff]
    %v147 = vld [vmem:[%s1 + $0x3d8] sm:$0xff]
    %v148 = vld [vmem:[%s1 + $0x3e0] sm:$0xff]
    %v149 = vld [vmem:[%s1 + $0x3e8] sm:$0xff]
    %v150 = vld [vmem:[%s1 + $0x3f0] sm:$0xff]
    %v151 = vld [vmem:[%s1 + $0x3f8] sm:$0xff]
    %v152 = vld [vmem:[%s1 + $0x400] sm:$0xff]
    %v153 = vld [vmem:[%s1 + $0x408] sm:$0xff]
    %v154 = vld [vmem:[%s1 + $0x410] sm:$0xff]
    %v155 = vld [vmem:[%s1 + $0x418] sm:$0xff]
    %v156 = vld [vmem:[%s1 + $0x420] sm:$0xff]
    %v157 = vld [vmem:[%s1 + $0x428] sm:$0xff]
    %v158 = vld [vmem:[%s1 + $0x430] sm:$0xff]
    %v159 = vld [vmem:[%s1 + $0x438] sm:$0xff]
    %v160 = vld [vmem:[%s1 + $0x440] sm:$0xff]
    %v161 = vld [vmem:[%s1 + $0x448] sm:$0xff]
    %v162 = vld [vmem:[%s1 + $0x450] sm:$0xff]
    %v163 = vld [vmem:[%s1 + $0x458] sm:$0xff]
    %v164 = vld [vmem:[%s1 + $0x460] sm:$0xff]
    %v165 = vld [vmem:[%s1 + $0x468] sm:$0xff]
    %v166 = vld [vmem:[%s1 + $0x470] sm:$0xff]
    %v167 = vld [vmem:[%s1 + $0x478] sm:$0xff]
    %v168 = vld [vmem:[%s1 + $0x480] sm:$0xff]
    %v169 = vld [vmem:[%s1 + $0x488] sm:$0xff]
    %v170 = vld [vmem:[%s1 + $0x490] sm:$0xff]
    %v171 = vld [vmem:[%s1 + $0x498] sm:$0xff]
    %v172 = vld [vmem:[%s1 + $0x4a0] sm:$0xff]
    %v173 = vld [vmem:[%s1 + $0x4a8] sm:$0xff]
    %v174 = vld [vmem:[%s1 + $0x4b0] sm:$0xff]
    %v175 = vld [vmem:[%s1 + $0x4b8] sm:$0xff]
    %v176 = vld [vmem:[%s1 + $0x4c0] sm:$0xff]
    %v177 = vld [vmem:[%s1 + $0x4c8] sm:$0xff]
    %v178 = vld [vmem:[%s1 + $0x4d0] sm:$0xff]
    %v179 = vld [vmem:[%s1 + $0x4d8] sm:$0xff]
    %v180 = vld [vmem:[%s1 + $0x4e0] sm:$0xff]
    %v181 = vld [vmem:[%s1 + $0x4e8] sm:$0xff]
    %v182 = vld [vmem:[%s1 + $0x4f0] sm:$0xff]
    %v183 = vld [vmem:[%s1 + $0x4f8] sm:$0xff]
    %v184 = vld [vmem:[%s1 + $0x500] sm:$0xff]
    %v185 = vld [vmem:[%s1 + $0x508] sm:$0xff]
    %v186 = vld [vmem:[%s1 + $0x510] sm:$0xff]
    %v187 = vld [vmem:[%s1 + $0x518] sm:$0xff]
    %v188 = vld [vmem:[%s1 + $0x520] sm:$0xff]
    %v189 = vld [vmem:[%s1 + $0x528] sm:$0xff]
    %v190 = vld [vmem:[%s1 + $0x530] sm:$0xff]
    %v191 = vld [vmem:[%s1 + $0x538] sm:$0xff]
    %v192 = vld [vmem:[%s1 + $0x540] sm:$0xff]
    %v193 = vld [vmem:[%s1 + $0x548] sm:$0xff]
    %v194 = vld [vmem:[%s2] sm:$0x3]
    %v196 = vlaneseq
    %v197 = vshrl.u32 %v196, 7
    %v198 = vsub.s32 0, %v197
    %v199 = vrot.slane %v194, %v198
    %v200 = vlaneseq
    %v201 = vshrl.u32 %v200, 7
    %v202 = vsub.s32 1, %v201
    %v203 = vrot.slane %v194, %v202
    %v208 = vcombine.high %v22, %v22
    %v210 = vunpack.c.l.s4 1966171168
    %v211 = vunpack.c.0.s8 %v210
    %v212 = vlaneseq
    %v213 = vshrl.u32 %v212, 7
    %v214 = vsub.s32 %v211, %v213
    %v215 = vrot.slane %v22, %v214
    %v217 = vunpack.c.l.s4 1966171168
    %v218 = vunpack.c.0.s8 %v217
    %v219 = vlaneseq
    %v220 = vshrl.u32 %v219, 7
    %v221 = vsub.s32 %v218, %v220
    %v222 = vrot.slane %v208, %v221
    %v223 = vcombine.high %v215, %v215
    %v224 = vcombine.high %v222, %v222
    %v226 = vunpack.c.l.s4 1966171168
    %v227 = vunpack.c.0.s8 %v226
    %v228 = vlaneseq
    %v229 = vshrl.u32 %v228, 7
    %v230 = vsub.s32 %v227, %v229
    %v231 = vrot.slane %v215, %v230
    %v233 = vunpack.c.l.s4 1966171168
    %v234 = vunpack.c.0.s8 %v233
    %v235 = vlaneseq
    %v236 = vshrl.u32 %v235, 7
    %v237 = vsub.s32 %v234, %v236
    %v238 = vrot.slane %v222, %v237
    %v240 = vunpack.c.l.s4 1966171168
    %v241 = vunpack.c.0.s8 %v240
    %v242 = vlaneseq
    %v243 = vshrl.u32 %v242, 7
    %v244 = vsub.s32 %v241, %v243
    %v245 = vrot.slane %v223, %v244
    %v247 = vunpack.c.l.s4 1966171168
    %v248 = vunpack.c.0.s8 %v247
    %v249 = vlaneseq
    %v250 = vshrl.u32 %v249, 7
    %v251 = vsub.s32 %v248, %v250
    %v252 = vrot.slane %v224, %v251
    %v253 = vcombine.high %v231, %v231
    %v254 = vcombine.high %v238, %v238
    %v255 = vcombine.high %v245, %v245
    %v256 = vcombine.high %v252, %v252
    %v258 = vunpack.c.l.s4 1966171168
    %v259 = vunpack.c.0.s8 %v258
    %v260 = vlaneseq
    %v261 = vshrl.u32 %v260, 7
    %v262 = vsub.s32 %v259, %v261
    %v263 = vrot.slane %v23, %v262
    %v264 = vcombine.high %v263, %v263
    %v266 = vunpack.c.l.s4 1966171168
    %v267 = vunpack.c.0.s8 %v266
    %v268 = vlaneseq
    %v269 = vshrl.u32 %v268, 7
    %v270 = vsub.s32 %v267, %v269
    %v271 = vrot.slane %v263, %v270
    %v273 = vunpack.c.l.s4 1966171168
    %v274 = vunpack.c.0.s8 %v273
    %v275 = vlaneseq
    %v276 = vshrl.u32 %v275, 7
    %v277 = vsub.s32 %v274, %v276
    %v278 = vrot.slane %v264, %v277
    %v279 = vcombine.high %v271, %v271
    %v460 = vunpack.c.l.b16 %v24
    %v461 = vunpack.c.h.b16 %v24
    %v462 = vunpack.c.l.b16 %v25
    %v463 = vunpack.c.h.b16 %v25
    %v464 = vunpack.c.l.b16 %v26
    %v465 = vunpack.c.h.b16 %v26
    %v466 = vunpack.c.l.b16 %v27
    %v467 = vunpack.c.h.b16 %v27
    %v468 = vunpack.c.l.b16 %v28
    %v469 = vunpack.c.h.b16 %v28
    %v470 = vunpack.c.l.b16 %v29
    %v471 = vunpack.c.h.b16 %v29
    %v472 = vunpack.c.l.b16 %v30
    %v473 = vunpack.c.h.b16 %v30
    %v474 = vunpack.c.l.b16 %v31
    %v475 = vunpack.c.h.b16 %v31
    %v476 = vunpack.c.l.b16 %v32
    %v477 = vunpack.c.h.b16 %v32
    %v478 = vunpack.c.l.b16 %v33
    %v479 = vunpack.c.h.b16 %v33
    %v480 = vunpack.c.l.b16 %v34
    %v481 = vunpack.c.h.b16 %v34
    %v482 = vunpack.c.l.b16 %v35
    %v483 = vunpack.c.h.b16 %v35
    %v484 = vunpack.c.l.b16 %v36
    %v485 = vunpack.c.h.b16 %v36
    %v486 = vunpack.c.l.b16 %v37
    %v487 = vunpack.c.h.b16 %v37
    %v488 = vunpack.c.l.b16 %v38
    %v489 = vunpack.c.h.b16 %v38
    %v490 = vunpack.c.l.b16 %v39
    %v491 = vunpack.c.h.b16 %v39
    %v492 = vunpack.c.l.b16 %v40
    %v493 = vunpack.c.h.b16 %v40
    %v494 = vunpack.c.l.b16 %v41
    %v495 = vunpack.c.h.b16 %v41
    %v496 = vunpack.c.l.b16 %v42
    %v497 = vunpack.c.h.b16 %v42
    %v498 = vunpack.c.l.b16 %v43
    %v499 = vunpack.c.h.b16 %v43
    %v500 = vunpack.c.l.b16 %v44
    %v501 = vunpack.c.h.b16 %v44
    %v502 = vunpack.c.l.b16 %v45
    %v503 = vunpack.c.h.b16 %v45
    %v504 = vunpack.c.l.b16 %v46
    %v505 = vunpack.c.h.b16 %v46
    %v506 = vunpack.c.l.b16 %v47
    %v507 = vunpack.c.h.b16 %v47
    %v508 = vunpack.c.l.b16 %v48
    %v509 = vunpack.c.h.b16 %v48
    %v510 = vunpack.c.l.b16 %v49
    %v511 = vunpack.c.h.b16 %v49
    %v512 = vunpack.c.l.b16 %v50
    %v513 = vunpack.c.h.b16 %v50
    %v514 = vunpack.c.l.b16 %v51
    %v515 = vunpack.c.h.b16 %v51
    %v516 = vunpack.c.l.b16 %v52
    %v517 = vunpack.c.h.b16 %v52
    %v518 = vunpack.c.l.b16 %v53
    %v519 = vunpack.c.h.b16 %v53
    %v520 = vunpack.c.l.b16 %v54
    %v521 = vunpack.c.h.b16 %v54
    %v522 = vunpack.c.l.b16 %v55
    %v523 = vunpack.c.h.b16 %v55
    %v524 = vunpack.c.l.b16 %v56
    %v525 = vunpack.c.h.b16 %v56
    %v526 = vunpack.c.l.b16 %v57
    %v527 = vunpack.c.h.b16 %v57
    %v528 = vunpack.c.l.b16 %v58
    %v529 = vunpack.c.h.b16 %v58
    %v530 = vunpack.c.l.b16 %v59
    %v531 = vunpack.c.h.b16 %v59
    %v532 = vunpack.c.l.b16 %v60
    %v533 = vunpack.c.h.b16 %v60
    %v534 = vunpack.c.l.b16 %v61
    %v535 = vunpack.c.h.b16 %v61
    %v536 = vunpack.c.l.b16 %v62
    %v537 = vunpack.c.h.b16 %v62
    %v538 = vunpack.c.l.b16 %v63
    %v539 = vunpack.c.h.b16 %v63
    %v540 = vunpack.c.l.b16 %v64
    %v541 = vunpack.c.h.b16 %v64
    %v542 = vunpack.c.l.b16 %v65
    %v543 = vunpack.c.h.b16 %v65
    %v544 = vunpack.c.l.b16 %v66
    %v545 = vunpack.c.h.b16 %v66
    %v546 = vunpack.c.l.b16 %v67
    %v547 = vunpack.c.h.b16 %v67
    %v548 = vunpack.c.l.b16 %v68
    %v549 = vunpack.c.h.b16 %v68
    %v550 = vunpack.c.l.b16 %v69
    %v551 = vunpack.c.h.b16 %v69
    %v552 = vunpack.c.l.b16 %v70
    %v553 = vunpack.c.h.b16 %v70
    %v554 = vunpack.c.l.b16 %v71
    %v555 = vunpack.c.h.b16 %v71
    %v556 = vunpack.c.l.b16 %v72
    %v557 = vunpack.c.h.b16 %v72
    %v558 = vunpack.c.l.b16 %v73
    %v559 = vunpack.c.h.b16 %v73
    %v560 = vunpack.c.l.b16 %v74
    %v561 = vunpack.c.h.b16 %v74
    %v562 = vunpack.c.l.b16 %v75
    %v563 = vunpack.c.h.b16 %v75
    %v564 = vunpack.c.l.b16 %v76
    %v565 = vunpack.c.h.b16 %v76
    %v566 = vunpack.c.l.b16 %v77
    %v567 = vunpack.c.h.b16 %v77
    %v568 = vunpack.c.l.b16 %v78
    %v569 = vunpack.c.h.b16 %v78
    %v570 = vunpack.c.l.b16 %v79
    %v571 = vunpack.c.h.b16 %v79
    %v572 = vunpack.c.l.b16 %v80
    %v573 = vunpack.c.h.b16 %v80
    %v574 = vunpack.c.l.b16 %v81
    %v575 = vunpack.c.h.b16 %v81
    %v576 = vunpack.c.l.b16 %v82
    %v577 = vunpack.c.h.b16 %v82
    %v578 = vunpack.c.l.b16 %v83
    %v579 = vunpack.c.h.b16 %v83
    %v580 = vunpack.c.l.b16 %v84
    %v581 = vunpack.c.h.b16 %v84
    %v582 = vunpack.c.l.b16 %v85
    %v583 = vunpack.c.h.b16 %v85
    %v584 = vunpack.c.l.b16 %v86
    %v585 = vunpack.c.h.b16 %v86
    %v586 = vunpack.c.l.b16 %v87
    %v587 = vunpack.c.h.b16 %v87
    %v588 = vunpack.c.l.b16 %v88
    %v589 = vunpack.c.h.b16 %v88
    %v590 = vunpack.c.l.b16 %v89
    %v591 = vunpack.c.h.b16 %v89
    %v592 = vunpack.c.l.b16 %v90
    %v593 = vunpack.c.h.b16 %v90
    %v594 = vunpack.c.l.b16 %v91
    %v595 = vunpack.c.h.b16 %v91
    %v596 = vunpack.c.l.b16 %v92
    %v597 = vunpack.c.h.b16 %v92
    %v598 = vunpack.c.l.b16 %v93
    %v599 = vunpack.c.h.b16 %v93
    %v600 = vunpack.c.l.b16 %v94
    %v601 = vunpack.c.h.b16 %v94
    %v602 = vunpack.c.l.b16 %v95
    %v603 = vunpack.c.h.b16 %v95
    %v604 = vunpack.c.l.b16 %v96
    %v605 = vunpack.c.h.b16 %v96
    %v606 = vunpack.c.l.b16 %v97
    %v607 = vunpack.c.h.b16 %v97
    %v608 = vunpack.c.l.b16 %v98
    %v609 = vunpack.c.h.b16 %v98
    %v610 = vunpack.c.l.b16 %v99
    %v611 = vunpack.c.h.b16 %v99
    %v612 = vunpack.c.l.b16 %v100
    %v613 = vunpack.c.h.b16 %v100
    %v614 = vunpack.c.l.b16 %v101
    %v615 = vunpack.c.h.b16 %v101
    %v616 = vunpack.c.l.b16 %v102
    %v617 = vunpack.c.h.b16 %v102
    %v618 = vunpack.c.l.b16 %v103
    %v619 = vunpack.c.h.b16 %v103
    %v620 = vunpack.c.l.b16 %v104
    %v621 = vunpack.c.h.b16 %v104
    %v622 = vunpack.c.l.b16 %v105
    %v623 = vunpack.c.h.b16 %v105
    %v624 = vunpack.c.l.b16 %v106
    %v625 = vunpack.c.h.b16 %v106
    %v626 = vunpack.c.l.b16 %v107
    %v627 = vunpack.c.h.b16 %v107
    %v628 = vunpack.c.l.b16 %v108
    %v629 = vunpack.c.h.b16 %v108
    %v630 = vunpack.c.l.b16 %v109
    %v631 = vunpack.c.h.b16 %v109
    %v632 = vunpack.c.l.b16 %v110
    %v633 = vunpack.c.h.b16 %v110
    %v634 = vunpack.c.l.b16 %v111
    %v635 = vunpack.c.h.b16 %v111
    %v636 = vunpack.c.l.b16 %v112
    %v637 = vunpack.c.h.b16 %v112
    %v638 = vunpack.c.l.b16 %v113
    %v639 = vunpack.c.h.b16 %v113
    %v640 = vunpack.c.l.b16 %v114
    %v641 = vunpack.c.h.b16 %v114
    %v642 = vunpack.c.l.b16 %v115
    %v643 = vunpack.c.h.b16 %v115
    %v644 = vunpack.c.l.b16 %v116
    %v645 = vunpack.c.h.b16 %v116
    %v646 = vunpack.c.l.b16 %v117
    %v647 = vunpack.c.h.b16 %v117
    %v648 = vunpack.c.l.b16 %v118
    %v649 = vunpack.c.h.b16 %v118
    %v650 = vunpack.c.l.b16 %v119
    %v651 = vunpack.c.h.b16 %v119
    %v652 = vunpack.c.l.b16 %v120
    %v653 = vunpack.c.h.b16 %v120
    %v654 = vunpack.c.l.b16 %v121
    %v655 = vunpack.c.h.b16 %v121
    %v656 = vunpack.c.l.b16 %v122
    %v657 = vunpack.c.h.b16 %v122
    %v658 = vunpack.c.l.b16 %v123
    %v659 = vunpack.c.h.b16 %v123
    %v660 = vunpack.c.l.b16 %v124
    %v661 = vunpack.c.h.b16 %v124
    %v662 = vunpack.c.l.b16 %v125
    %v663 = vunpack.c.h.b16 %v125
    %v664 = vunpack.c.l.b16 %v126
    %v665 = vunpack.c.h.b16 %v126
    %v666 = vunpack.c.l.b16 %v127
    %v667 = vunpack.c.h.b16 %v127
    %v668 = vunpack.c.l.b16 %v128
    %v669 = vunpack.c.h.b16 %v128
    %v670 = vunpack.c.l.b16 %v129
    %v671 = vunpack.c.h.b16 %v129
    %v672 = vunpack.c.l.b16 %v130
    %v673 = vunpack.c.h.b16 %v130
    %v674 = vunpack.c.l.b16 %v131
    %v675 = vunpack.c.h.b16 %v131
    %v676 = vunpack.c.l.b16 %v132
    %v677 = vunpack.c.h.b16 %v132
    %v678 = vunpack.c.l.b16 %v133
    %v679 = vunpack.c.h.b16 %v133
    %v680 = vunpack.c.l.b16 %v134
    %v681 = vunpack.c.h.b16 %v134
    %v682 = vunpack.c.l.b16 %v135
    %v683 = vunpack.c.h.b16 %v135
    %v684 = vunpack.c.l.b16 %v136
    %v685 = vunpack.c.h.b16 %v136
    %v686 = vunpack.c.l.b16 %v137
    %v687 = vunpack.c.h.b16 %v137
    %v688 = vunpack.c.l.b16 %v138
    %v689 = vunpack.c.h.b16 %v138
    %v690 = vunpack.c.l.b16 %v139
    %v691 = vunpack.c.h.b16 %v139
    %v692 = vunpack.c.l.b16 %v140
    %v693 = vunpack.c.h.b16 %v140
    %v694 = vunpack.c.l.b16 %v141
    %v695 = vunpack.c.h.b16 %v141
    %v696 = vunpack.c.l.b16 %v142
    %v697 = vunpack.c.h.b16 %v142
    %v698 = vunpack.c.l.b16 %v143
    %v699 = vunpack.c.h.b16 %v143
    %v700 = vunpack.c.l.b16 %v144
    %v701 = vunpack.c.h.b16 %v144
    %v702 = vunpack.c.l.b16 %v145
    %v703 = vunpack.c.h.b16 %v145
    %v704 = vunpack.c.l.b16 %v146
    %v705 = vunpack.c.h.b16 %v146
    %v706 = vunpack.c.l.b16 %v147
    %v707 = vunpack.c.h.b16 %v147
    %v708 = vunpack.c.l.b16 %v148
    %v709 = vunpack.c.h.b16 %v148
    %v710 = vunpack.c.l.b16 %v149
    %v711 = vunpack.c.h.b16 %v149
    %v712 = vunpack.c.l.b16 %v150
    %v713 = vunpack.c.h.b16 %v150
    %v714 = vunpack.c.l.b16 %v151
    %v715 = vunpack.c.h.b16 %v151
    %v716 = vunpack.c.l.b16 %v152
    %v717 = vunpack.c.h.b16 %v152
    %v718 = vunpack.c.l.b16 %v153
    %v719 = vunpack.c.h.b16 %v153
    %v720 = vunpack.c.l.b16 %v154
    %v721 = vunpack.c.h.b16 %v154
    %v722 = vunpack.c.l.b16 %v155
    %v723 = vunpack.c.h.b16 %v155
    %v724 = vunpack.c.l.b16 %v156
    %v725 = vunpack.c.h.b16 %v156
    %v726 = vunpack.c.l.b16 %v157
    %v727 = vunpack.c.h.b16 %v157
    %v728 = vunpack.c.l.b16 %v158
    %v729 = vunpack.c.h.b16 %v158
    %v730 = vunpack.c.l.b16 %v159
    %v731 = vunpack.c.h.b16 %v159
    %v732 = vunpack.c.l.b16 %v160
    %v733 = vunpack.c.h.b16 %v160
    %v734 = vunpack.c.l.b16 %v161
    %v735 = vunpack.c.h.b16 %v161
    %v736 = vunpack.c.l.b16 %v162
    %v737 = vunpack.c.h.b16 %v162
    %v738 = vunpack.c.l.b16 %v163
    %v739 = vunpack.c.h.b16 %v163
    %v740 = vunpack.c.l.b16 %v164
    %v741 = vunpack.c.h.b16 %v164
    %v742 = vunpack.c.l.b16 %v165
    %v743 = vunpack.c.h.b16 %v165
    %v744 = vunpack.c.l.b16 %v166
    %v745 = vunpack.c.h.b16 %v166
    %v746 = vunpack.c.l.b16 %v167
    %v747 = vunpack.c.h.b16 %v167
    %v748 = vunpack.c.l.b16 %v168
    %v749 = vunpack.c.h.b16 %v168
    %v750 = vunpack.c.l.b16 %v169
    %v751 = vunpack.c.h.b16 %v169
    %v752 = vunpack.c.l.b16 %v170
    %v753 = vunpack.c.h.b16 %v170
    %v754 = vunpack.c.l.b16 %v171
    %v755 = vunpack.c.h.b16 %v171
    %v756 = vunpack.c.l.b16 %v172
    %v757 = vunpack.c.h.b16 %v172
    %v758 = vunpack.c.l.b16 %v173
    %v759 = vunpack.c.h.b16 %v173
    %v760 = vunpack.c.l.b16 %v174
    %v761 = vunpack.c.h.b16 %v174
    %v762 = vunpack.c.l.b16 %v175
    %v763 = vunpack.c.h.b16 %v175
    %v764 = vunpack.c.l.b16 %v176
    %v765 = vunpack.c.h.b16 %v176
    %v766 = vunpack.c.l.b16 %v177
    %v767 = vunpack.c.h.b16 %v177
    %v768 = vunpack.c.l.b16 %v178
    %v769 = vunpack.c.h.b16 %v178
    %v770 = vunpack.c.l.b16 %v179
    %v771 = vunpack.c.h.b16 %v179
    %v772 = vunpack.c.l.b16 %v180
    %v773 = vunpack.c.h.b16 %v180
    %v774 = vunpack.c.l.b16 %v181
    %v775 = vunpack.c.h.b16 %v181
    %v776 = vunpack.c.l.b16 %v182
    %v777 = vunpack.c.h.b16 %v182
    %v778 = vunpack.c.l.b16 %v183
    %v779 = vunpack.c.h.b16 %v183
    %v780 = vunpack.c.l.b16 %v184
    %v781 = vunpack.c.h.b16 %v184
    %v782 = vunpack.c.l.b16 %v185
    %v783 = vunpack.c.h.b16 %v185
    %v784 = vunpack.c.l.b16 %v186
    %v785 = vunpack.c.h.b16 %v186
    %v786 = vunpack.c.l.b16 %v187
    %v787 = vunpack.c.h.b16 %v187
    %v788 = vunpack.c.l.b16 %v188
    %v789 = vunpack.c.h.b16 %v188
    %v790 = vunpack.c.l.b16 %v189
    %v791 = vunpack.c.h.b16 %v189
    %v792 = vunpack.c.l.b16 %v190
    %v793 = vunpack.c.h.b16 %v190
    %v794 = vunpack.c.l.b16 %v191
    %v795 = vunpack.c.h.b16 %v191
    %v796 = vunpack.c.l.b16 %v192
    %v797 = vunpack.c.h.b16 %v192
    %v798 = vunpack.c.l.b16 %v193
    %v799 = vunpack.c.h.b16 %v193
    %v800 = vpack.c.b16 %v462, %v460
    %v801 = vpack.c.b16 %v463, %v461
    %v802 = vpack.c.b16 %v466, %v464
    %v803 = vpack.c.b16 %v467, %v465
    %v804 = vpack.c.b16 %v470, %v468
    %v805 = vpack.c.b16 %v471, %v469
    %v806 = vpack.c.b16 %v474, %v472
    %v807 = vpack.c.b16 %v475, %v473
    %v808 = vpack.c.b16 %v478, %v476
    %v809 = vpack.c.b16 %v479, %v477
    %v810 = vpack.c.b16 %v482, %v480
    %v811 = vpack.c.b16 %v483, %v481
    %v812 = vpack.c.b16 %v486, %v484
    %v813 = vpack.c.b16 %v487, %v485
    %v814 = vpack.c.b16 %v490, %v488
    %v815 = vpack.c.b16 %v491, %v489
    %v816 = vpack.c.b16 %v494, %v492
    %v817 = vpack.c.b16 %v495, %v493
    %v818 = vpack.c.b16 %v498, %v496
    %v819 = vpack.c.b16 %v499, %v497
    %v820 = vpack.c.b16 %v502, %v500
    %v821 = vpack.c.b16 %v503, %v501
    %v822 = vpack.c.b16 %v506, %v504
    %v823 = vpack.c.b16 %v507, %v505
    %v824 = vpack.c.b16 %v510, %v508
    %v825 = vpack.c.b16 %v511, %v509
    %v826 = vpack.c.b16 %v514, %v512
    %v827 = vpack.c.b16 %v515, %v513
    %v828 = vpack.c.b16 %v518, %v516
    %v829 = vpack.c.b16 %v519, %v517
    %v830 = vpack.c.b16 %v522, %v520
    %v831 = vpack.c.b16 %v523, %v521
    %v832 = vpack.c.b16 %v526, %v524
    %v833 = vpack.c.b16 %v527, %v525
    %v834 = vpack.c.b16 %v530, %v528
    %v835 = vpack.c.b16 %v531, %v529
    %v836 = vpack.c.b16 %v534, %v532
    %v837 = vpack.c.b16 %v535, %v533
    %v838 = vpack.c.b16 %v538, %v536
    %v839 = vpack.c.b16 %v539, %v537
    %v840 = vpack.c.b16 %v542, %v540
    %v841 = vpack.c.b16 %v543, %v541
    %v842 = vpack.c.b16 %v546, %v544
    %v843 = vpack.c.b16 %v547, %v545
    %v844 = vpack.c.b16 %v550, %v548
    %v845 = vpack.c.b16 %v551, %v549
    %v846 = vpack.c.b16 %v554, %v552
    %v847 = vpack.c.b16 %v555, %v553
    %v848 = vpack.c.b16 %v558, %v556
    %v849 = vpack.c.b16 %v559, %v557
    %v850 = vpack.c.b16 %v562, %v560
    %v851 = vpack.c.b16 %v563, %v561
    %v852 = vpack.c.b16 %v566, %v564
    %v853 = vpack.c.b16 %v567, %v565
    %v854 = vpack.c.b16 %v570, %v568
    %v855 = vpack.c.b16 %v571, %v569
    %v856 = vpack.c.b16 %v574, %v572
    %v857 = vpack.c.b16 %v575, %v573
    %v858 = vpack.c.b16 %v578, %v576
    %v859 = vpack.c.b16 %v579, %v577
    %v860 = vpack.c.b16 %v582, %v580
    %v861 = vpack.c.b16 %v583, %v581
    %v862 = vpack.c.b16 %v586, %v584
    %v863 = vpack.c.b16 %v587, %v585
    %v864 = vpack.c.b16 %v590, %v588
    %v865 = vpack.c.b16 %v591, %v589
    %v866 = vpack.c.b16 %v594, %v592
    %v867 = vpack.c.b16 %v595, %v593
    %v868 = vpack.c.b16 %v598, %v596
    %v869 = vpack.c.b16 %v599, %v597
    %v870 = vpack.c.b16 %v602, %v600
    %v871 = vpack.c.b16 %v603, %v601
    %v872 = vpack.c.b16 %v606, %v604
    %v873 = vpack.c.b16 %v607, %v605
    %v874 = vpack.c.b16 %v610, %v608
    %v875 = vpack.c.b16 %v611, %v609
    %v876 = vpack.c.b16 %v614, %v612
    %v877 = vpack.c.b16 %v615, %v613
    %v878 = vpack.c.b16 %v618, %v616
    %v879 = vpack.c.b16 %v619, %v617
    %v880 = vpack.c.b16 %v622, %v620
    %v881 = vpack.c.b16 %v623, %v621
    %v882 = vpack.c.b16 %v626, %v624
    %v883 = vpack.c.b16 %v627, %v625
    %v884 = vpack.c.b16 %v630, %v628
    %v885 = vpack.c.b16 %v631, %v629
    %v886 = vpack.c.b16 %v634, %v632
    %v887 = vpack.c.b16 %v635, %v633
    %v888 = vpack.c.b16 %v638, %v636
    %v889 = vpack.c.b16 %v639, %v637
    %v890 = vpack.c.b16 %v642, %v640
    %v891 = vpack.c.b16 %v643, %v641
    %v892 = vpack.c.b16 %v646, %v644
    %v893 = vpack.c.b16 %v647, %v645
    %v894 = vpack.c.b16 %v650, %v648
    %v895 = vpack.c.b16 %v651, %v649
    %v896 = vpack.c.b16 %v654, %v652
    %v897 = vpack.c.b16 %v655, %v653
    %v898 = vpack.c.b16 %v658, %v656
    %v899 = vpack.c.b16 %v659, %v657
    %v900 = vpack.c.b16 %v662, %v660
    %v901 = vpack.c.b16 %v663, %v661
    %v902 = vpack.c.b16 %v666, %v664
    %v903 = vpack.c.b16 %v667, %v665
    %v904 = vpack.c.b16 %v670, %v668
    %v905 = vpack.c.b16 %v671, %v669
    %v906 = vpack.c.b16 %v674, %v672
    %v907 = vpack.c.b16 %v675, %v673
    %v908 = vpack.c.b16 %v678, %v676
    %v909 = vpack.c.b16 %v679, %v677
    %v910 = vpack.c.b16 %v682, %v680
    %v911 = vpack.c.b16 %v683, %v681
    %v912 = vpack.c.b16 %v686, %v684
    %v913 = vpack.c.b16 %v687, %v685
    %v914 = vpack.c.b16 %v690, %v688
    %v915 = vpack.c.b16 %v691, %v689
    %v916 = vpack.c.b16 %v694, %v692
    %v917 = vpack.c.b16 %v695, %v693
    %v918 = vpack.c.b16 %v698, %v696
    %v919 = vpack.c.b16 %v699, %v697
    %v920 = vpack.c.b16 %v702, %v700
    %v921 = vpack.c.b16 %v703, %v701
    %v922 = vpack.c.b16 %v706, %v704
    %v923 = vpack.c.b16 %v707, %v705
    %v924 = vpack.c.b16 %v710, %v708
    %v925 = vpack.c.b16 %v711, %v709
    %v926 = vpack.c.b16 %v714, %v712
    %v927 = vpack.c.b16 %v715, %v713
    %v928 = vpack.c.b16 %v718, %v716
    %v929 = vpack.c.b16 %v719, %v717
    %v930 = vpack.c.b16 %v722, %v720
    %v931 = vpack.c.b16 %v723, %v721
    %v932 = vpack.c.b16 %v726, %v724
    %v933 = vpack.c.b16 %v727, %v725
    %v934 = vpack.c.b16 %v730, %v728
    %v935 = vpack.c.b16 %v731, %v729
    %v936 = vpack.c.b16 %v734, %v732
    %v937 = vpack.c.b16 %v735, %v733
    %v938 = vpack.c.b16 %v738, %v736
    %v939 = vpack.c.b16 %v739, %v737
    %v940 = vpack.c.b16 %v742, %v740
    %v941 = vpack.c.b16 %v743, %v741
    %v942 = vpack.c.b16 %v746, %v744
    %v943 = vpack.c.b16 %v747, %v745
    %v944 = vpack.c.b16 %v750, %v748
    %v945 = vpack.c.b16 %v751, %v749
    %v946 = vpack.c.b16 %v754, %v752
    %v947 = vpack.c.b16 %v755, %v753
    %v948 = vpack.c.b16 %v758, %v756
    %v949 = vpack.c.b16 %v759, %v757
    %v950 = vpack.c.b16 %v762, %v760
    %v951 = vpack.c.b16 %v763, %v761
    %v952 = vpack.c.b16 %v766, %v764
    %v953 = vpack.c.b16 %v767, %v765
    %v954 = vpack.c.b16 %v770, %v768
    %v955 = vpack.c.b16 %v771, %v769
    %v956 = vpack.c.b16 %v774, %v772
    %v957 = vpack.c.b16 %v775, %v773
    %v958 = vpack.c.b16 %v778, %v776
    %v959 = vpack.c.b16 %v779, %v777
    %v960 = vpack.c.b16 %v782, %v780
    %v961 = vpack.c.b16 %v783, %v781
    %v962 = vpack.c.b16 %v786, %v784
    %v963 = vpack.c.b16 %v787, %v785
    %v964 = vpack.c.b16 %v790, %v788
    %v965 = vpack.c.b16 %v791, %v789
    %v966 = vpack.c.b16 %v794, %v792
    %v967 = vpack.c.b16 %v795, %v793
    %v968 = vpack.c.b16 %v798, %v796
    %v969 = vpack.c.b16 %v799, %v797
    %vm1140 = vcmask 654336
    %v1142 = vsel %vm1140, %v279, 0
    %1144 = vmatprep.subr.bf16.mxu0 %v801
    %1145 = vmatpush1.bf16.msra.mxu0 %v800
    %1146 = vmatprep.subr.bf16.mxu0 %v803
    %1147 = vmatpush1.bf16.msra.mxu0 %v802
    %1148 = vmatprep.subr.bf16.mxu0 %v805
    %1149 = vmatpush1.bf16.msra.mxu0 %v804
    %1150 = vmatprep.subr.bf16.mxu0 %v807
    %1151 = vmatpush1.bf16.msra.mxu0 %v806
    %1152 = vmatprep.subr.bf16.mxu0 %v809
    %1153 = vmatpush1.bf16.msra.mxu0 %v808
    %1154 = vmatprep.subr.bf16.mxu0 %v811
    %1155 = vmatpush1.bf16.msra.mxu0 %v810
    %1156 = vmatprep.subr.bf16.mxu0 %v813
    %1157 = vmatpush1.bf16.msra.mxu0 %v812
    %1158 = vmatprep.subr.bf16.mxu0 %v815
    %1159 = vmatpush1.bf16.msra.mxu0 %v814
    %1160 = vmatprep.subr.bf16.mxu0 %v817
    %1161 = vmatpush1.bf16.msra.mxu0 %v816
    %1162 = vmatprep.subr.bf16.mxu0 %v819
    %1163 = vmatpush1.bf16.msra.mxu0 %v818
    %1164 = vmatprep.subr.bf16.mxu0 %v821
    %1165 = vmatpush1.bf16.msra.mxu0 %v820
    %1166 = vmatprep.subr.bf16.mxu0 %v823
    %1167 = vmatpush1.bf16.msra.mxu0 %v822
    %1168 = vmatprep.subr.bf16.mxu0 %v825
    %1169 = vmatpush1.bf16.msra.mxu0 %v824
    %1170 = vmatprep.subr.bf16.mxu0 %v827
    %1171 = vmatpush1.bf16.msra.mxu0 %v826
    %1172 = vmatprep.subr.bf16.mxu0 %v829
    %1173 = vmatpush1.bf16.msra.mxu0 %v828
    %1174 = vmatprep.subr.bf16.mxu0 %v831
    %1175 = vmatpush1.bf16.msra.mxu0 %v830
    %1176 = vmatprep.mubr.bf16.mxu0 %v245
    %1177 = vmatmul.mubr.bf16.gmra.mrb[0].mxu0 %v231
    %v1178 = vpop.f32.mrb[0].mxu0
    %v1179 = vadd.f32 %v199, %v1178
    %v1180 = vpop.f32.mrb[0].mxu0
    %v1181 = vadd.f32 %v203, %v1180
    %v1182 = vpop.f32.mrb[0].mxu0
    %v1183 = vpop.f32.mrb[0].mxu0
    %1184 = vdwg.mxu0
    %1185 = vmatprep.subr.bf16.mxu0 %v833
    %1186 = vmatpush1.bf16.msra.mxu0 %v832
    %1187 = vmatprep.subr.bf16.mxu0 %v835
    %1188 = vmatpush1.bf16.msra.mxu0 %v834
    %1189 = vmatprep.subr.bf16.mxu0 %v837
    %1190 = vmatpush1.bf16.msra.mxu0 %v836
    %1191 = vmatprep.subr.bf16.mxu0 %v839
    %1192 = vmatpush1.bf16.msra.mxu0 %v838
    %1193 = vmatprep.subr.bf16.mxu0 %v841
    %1194 = vmatpush1.bf16.msra.mxu0 %v840
    %1195 = vmatprep.subr.bf16.mxu0 %v843
    %1196 = vmatpush1.bf16.msra.mxu0 %v842
    %1197 = vmatprep.subr.bf16.mxu0 %v845
    %1198 = vmatpush1.bf16.msra.mxu0 %v844
    %1199 = vmatprep.subr.bf16.mxu0 %v847
    %1200 = vmatpush1.bf16.msra.mxu0 %v846
    %1201 = vmatprep.subr.bf16.mxu0 %v849
    %1202 = vmatpush1.bf16.msra.mxu0 %v848
    %1203 = vmatprep.subr.bf16.mxu0 %v851
    %1204 = vmatpush1.bf16.msra.mxu0 %v850
    %1205 = vmatprep.subr.bf16.mxu0 %v853
    %1206 = vmatpush1.bf16.msra.mxu0 %v852
    %1207 = vmatprep.subr.bf16.mxu0 %v855
    %1208 = vmatpush1.bf16.msra.mxu0 %v854
    %1209 = vmatprep.subr.bf16.mxu0 %v857
    %1210 = vmatpush1.bf16.msra.mxu0 %v856
    %1211 = vmatprep.subr.bf16.mxu0 %v859
    %1212 = vmatpush1.bf16.msra.mxu0 %v858
    %1213 = vmatprep.subr.bf16.mxu0 %v861
    %1214 = vmatpush1.bf16.msra.mxu0 %v860
    %1215 = vmatprep.subr.bf16.mxu0 %v863
    %1216 = vmatpush1.bf16.msra.mxu0 %v862
    %1217 = vmatprep.mubr.bf16.mxu0 %v255
    %1218 = vmatmul.mubr.bf16.gmra.mrb[0].mxu0 %v253
    %v1219 = vpop.f32.mrb[0].mxu0
    %v1220 = vadd.f32 %v1179, %v1219
    %v1221 = vpop.f32.mrb[0].mxu0
    %v1222 = vadd.f32 %v1181, %v1221
    %v1223 = vpop.f32.mrb[0].mxu0
    %v1224 = vpop.f32.mrb[0].mxu0
    %1225 = vdwg.mxu0
    %1226 = vmatprep.subr.bf16.mxu0 %v865
    %1227 = vmatpush1.bf16.msra.mxu0 %v864
    %1228 = vmatprep.subr.bf16.mxu0 %v867
    %1229 = vmatpush1.bf16.msra.mxu0 %v866
    %1230 = vmatprep.subr.bf16.mxu0 %v869
    %1231 = vmatpush1.bf16.msra.mxu0 %v868
    %1232 = vmatprep.subr.bf16.mxu0 %v871
    %1233 = vmatpush1.bf16.msra.mxu0 %v870
    %1234 = vmatprep.subr.bf16.mxu0 %v873
    %1235 = vmatpush1.bf16.msra.mxu0 %v872
    %1236 = vmatprep.subr.bf16.mxu0 %v875
    %1237 = vmatpush1.bf16.msra.mxu0 %v874
    %1238 = vmatprep.subr.bf16.mxu0 %v877
    %1239 = vmatpush1.bf16.msra.mxu0 %v876
    %1240 = vmatprep.subr.bf16.mxu0 %v879
    %1241 = vmatpush1.bf16.msra.mxu0 %v878
    %1242 = vmatprep.subr.bf16.mxu0 %v881
    %1243 = vmatpush1.bf16.msra.mxu0 %v880
    %1244 = vmatprep.subr.bf16.mxu0 %v883
    %1245 = vmatpush1.bf16.msra.mxu0 %v882
    %1246 = vmatprep.subr.bf16.mxu0 %v885
    %1247 = vmatpush1.bf16.msra.mxu0 %v884
    %1248 = vmatprep.subr.bf16.mxu0 %v887
    %1249 = vmatpush1.bf16.msra.mxu0 %v886
    %1250 = vmatprep.subr.bf16.mxu0 %v889
    %1251 = vmatpush1.bf16.msra.mxu0 %v888
    %1252 = vmatprep.subr.bf16.mxu0 %v891
    %1253 = vmatpush1.bf16.msra.mxu0 %v890
    %1254 = vmatprep.subr.bf16.mxu0 %v893
    %1255 = vmatpush1.bf16.msra.mxu0 %v892
    %1256 = vmatprep.subr.bf16.mxu0 %v895
    %1257 = vmatpush1.bf16.msra.mxu0 %v894
    %1258 = vmatprep.mubr.bf16.mxu0 %v252
    %1259 = vmatmul.mubr.bf16.gmra.mrb[0].mxu0 %v238
    %v1260 = vpop.f32.mrb[0].mxu0
    %v1261 = vadd.f32 %v1220, %v1260
    %v1262 = vpop.f32.mrb[0].mxu0
    %v1263 = vadd.f32 %v1222, %v1262
    %v1264 = vpop.f32.mrb[0].mxu0
    %v1265 = vpop.f32.mrb[0].mxu0
    %1266 = vdwg.mxu0
    %1267 = vmatprep.subr.bf16.mxu0 %v897
    %1268 = vmatpush1.bf16.msra.mxu0 %v896
    %1269 = vmatprep.subr.bf16.mxu0 %v899
    %1270 = vmatpush1.bf16.msra.mxu0 %v898
    %1271 = vmatprep.subr.bf16.mxu0 %v901
    %1272 = vmatpush1.bf16.msra.mxu0 %v900
    %1273 = vmatprep.subr.bf16.mxu0 %v903
    %1274 = vmatpush1.bf16.msra.mxu0 %v902
    %1275 = vmatprep.subr.bf16.mxu0 %v905
    %1276 = vmatpush1.bf16.msra.mxu0 %v904
    %1277 = vmatprep.subr.bf16.mxu0 %v907
    %1278 = vmatpush1.bf16.msra.mxu0 %v906
    %1279 = vmatprep.subr.bf16.mxu0 %v909
    %1280 = vmatpush1.bf16.msra.mxu0 %v908
    %1281 = vmatprep.subr.bf16.mxu0 %v911
    %1282 = vmatpush1.bf16.msra.mxu0 %v910
    %1283 = vmatprep.subr.bf16.mxu0 %v913
    %1284 = vmatpush1.bf16.msra.mxu0 %v912
    %1285 = vmatprep.subr.bf16.mxu0 %v915
    %1286 = vmatpush1.bf16.msra.mxu0 %v914
    %1287 = vmatprep.subr.bf16.mxu0 %v917
    %1288 = vmatpush1.bf16.msra.mxu0 %v916
    %1289 = vmatprep.subr.bf16.mxu0 %v919
    %1290 = vmatpush1.bf16.msra.mxu0 %v918
    %1291 = vmatprep.subr.bf16.mxu0 %v921
    %1292 = vmatpush1.bf16.msra.mxu0 %v920
    %1293 = vmatprep.subr.bf16.mxu0 %v923
    %1294 = vmatpush1.bf16.msra.mxu0 %v922
    %1295 = vmatprep.subr.bf16.mxu0 %v925
    %1296 = vmatpush1.bf16.msra.mxu0 %v924
    %1297 = vmatprep.subr.bf16.mxu0 %v927
    %1298 = vmatpush1.bf16.msra.mxu0 %v926
    %1299 = vmatprep.mubr.bf16.mxu0 %v256
    %1300 = vmatmul.mubr.bf16.gmra.mrb[0].mxu0 %v254
    %v1301 = vpop.f32.mrb[0].mxu0
    %v1302 = vadd.f32 %v1261, %v1301
    %v1303 = vpop.f32.mrb[0].mxu0
    %v1304 = vadd.f32 %v1263, %v1303
    %v1305 = vpop.f32.mrb[0].mxu0
    %v1306 = vpop.f32.mrb[0].mxu0
    %1307 = vdwg.mxu0
    %1308 = vmatprep.subr.bf16.mxu0 %v929
    %1309 = vmatpush1.bf16.msra.mxu0 %v928
    %1310 = vmatprep.subr.bf16.mxu0 %v931
    %1311 = vmatpush1.bf16.msra.mxu0 %v930
    %1312 = vmatprep.subr.bf16.mxu0 %v933
    %1313 = vmatpush1.bf16.msra.mxu0 %v932
    %1314 = vmatprep.subr.bf16.mxu0 %v935
    %1315 = vmatpush1.bf16.msra.mxu0 %v934
    %1316 = vmatprep.subr.bf16.mxu0 %v937
    %1317 = vmatpush1.bf16.msra.mxu0 %v936
    %1318 = vmatprep.subr.bf16.mxu0 %v939
    %1319 = vmatpush1.bf16.msra.mxu0 %v938
    %1320 = vmatprep.subr.bf16.mxu0 %v941
    %1321 = vmatpush1.bf16.msra.mxu0 %v940
    %1322 = vmatprep.subr.bf16.mxu0 %v943
    %1323 = vmatpush1.bf16.msra.mxu0 %v942
    %1324 = vmatprep.subr.bf16.mxu0 %v945
    %1325 = vmatpush1.bf16.msra.mxu0 %v944
    %1326 = vmatprep.subr.bf16.mxu0 %v947
    %1327 = vmatpush1.bf16.msra.mxu0 %v946
    %1328 = vmatprep.subr.bf16.mxu0 %v949
    %1329 = vmatpush1.bf16.msra.mxu0 %v948
    %1330 = vmatprep.subr.bf16.mxu0 %v951
    %1331 = vmatpush1.bf16.msra.mxu0 %v950
    %1332 = vmatprep.subr.bf16.mxu0 %v953
    %1333 = vmatpush1.bf16.msra.mxu0 %v952
    %1334 = vmatprep.subr.bf16.mxu0 %v955
    %1335 = vmatpush1.bf16.msra.mxu0 %v954
    %1336 = vmatprep.subr.bf16.mxu0 %v957
    %1337 = vmatpush1.bf16.msra.mxu0 %v956
    %1338 = vmatprep.subr.bf16.mxu0 %v959
    %1339 = vmatpush1.bf16.msra.mxu0 %v958
    %1340 = vmatprep.mubr.bf16.mxu0 %v278
    %1341 = vmatmul.mubr.bf16.gmra.mrb[0].mxu0 %v271
    %v1342 = vpop.f32.mrb[0].mxu0
    %v1343 = vadd.f32 %v1302, %v1342
    %v1344 = vpop.f32.mrb[0].mxu0
    %v1345 = vadd.f32 %v1304, %v1344
    %v1346 = vpop.f32.mrb[0].mxu0
    %v1347 = vpop.f32.mrb[0].mxu0
    %1348 = vdwg.mxu0
    %1349 = vmatprep.subr.bf16.mxu0 %v961
    %1350 = vmatpush1.bf16.msra.mxu0 %v960
    %1351 = vmatprep.subr.bf16.mxu0 %v963
    %1352 = vmatpush1.bf16.msra.mxu0 %v962
    %1353 = vmatprep.subr.bf16.mxu0 %v965
    %1354 = vmatpush1.bf16.msra.mxu0 %v964
    %1355 = vmatprep.subr.bf16.mxu0 %v967
    %1356 = vmatpush1.bf16.msra.mxu0 %v966
    %1357 = vmatprep.subr.bf16.mxu0 %v969
    %1358 = vmatpush1.bf16.msra.mxu0 %v968
    %1359 = vmatprep.subr.bf16.mxu0 0
    %1360 = vmatpush1.bf16.msra.mxu0 0
    %1361 = vmatprep.subr.bf16.mxu0 0
    %1362 = vmatpush1.bf16.msra.mxu0 0
    %1363 = vmatprep.subr.bf16.mxu0 0
    %1364 = vmatpush1.bf16.msra.mxu0 0
    %1365 = vmatprep.subr.bf16.mxu0 0
    %1366 = vmatpush1.bf16.msra.mxu0 0
    %1367 = vmatprep.subr.bf16.mxu0 0
    %1368 = vmatpush1.bf16.msra.mxu0 0
    %1369 = vmatprep.subr.bf16.mxu0 0
    %1370 = vmatpush1.bf16.msra.mxu0 0
    %1371 = vmatprep.subr.bf16.mxu0 0
    %1372 = vmatpush1.bf16.msra.mxu0 0
    %1373 = vmatprep.subr.bf16.mxu0 0
    %1374 = vmatpush1.bf16.msra.mxu0 0
    %1375 = vmatprep.subr.bf16.mxu0 0
    %1376 = vmatpush1.bf16.msra.mxu0 0
    %1377 = vmatprep.subr.bf16.mxu0 0
    %1378 = vmatpush1.bf16.msra.mxu0 0
    %1379 = vmatprep.subr.bf16.mxu0 0
    %1380 = vmatpush1.bf16.msra.mxu0 0
    %1381 = vmatprep.mubr.bf16.mxu0 0
    %1382 = vmatmul.mubr.bf16.gmra.mrb[0].mxu0 %v1142
    %v1383 = vpop.f32.mrb[0].mxu0
    %v1384 = vadd.f32 %v1343, %v1383
    %v1385 = vpop.f32.mrb[0].mxu0
    %v1386 = vadd.f32 %v1345, %v1385
    %v1387 = vpop.f32.mrb[0].mxu0
    %v1388 = vpop.f32.mrb[0].mxu0
    %1389 = vdwg.mxu0
    %v1390 = vmul.f32 %v1384, 0.5
    %v1391 = vmul.f32 %v1386, 0.5
    %v1392 = vmul.f32 %v1384, 0.044715
    %v1393 = vmul.f32 %v1386, 0.044715
    %v1394 = vmul.f32 %v1392, %v1384
    %v1395 = vmul.f32 %v1393, %v1386
    %v1396 = vmul.f32 %v1394, %v1384
    %v1397 = vmul.f32 %v1395, %v1386
    %v1398 = vadd.f32 %v1384, %v1396
    %v1399 = vadd.f32 %v1386, %v1397
    %v1400 = vmul.f32 %v1398, 0.7978846
    %v1401 = vmul.f32 %v1399, 0.7978846
    %v1402 = vtanh.pop %v1400
    %v1403 = vtanh.pop %v1401
    %v1404 = vadd.f32 %v1402, 1.0
    %v1405 = vadd.f32 %v1403, 1.0
    %v1406 = vmul.f32 %v1390, %v1404
    %v1407 = vmul.f32 %v1391, %v1405
    %v1408 = vpack.c.bf16 %v1406, %v1406
    %v1409 = vpack.c.bf16 %v1407, %v1407
    %v1410 = vld [vmem:[%s3] sm:$0xff]
    %v1411 = vld [vmem:[%s3 + $0x8] sm:$0xff]
    %v1412 = vld [vmem:[%s3 + $0x10] sm:$0xff]
    %v1413 = vld [vmem:[%s3 + $0x18] sm:$0xff]
    %v1414 = vld [vmem:[%s3 + $0x20] sm:$0xff]
    %v1415 = vld [vmem:[%s3 + $0x28] sm:$0xff]
    %v1416 = vld [vmem:[%s3 + $0x30] sm:$0xff]
    %v1417 = vld [vmem:[%s3 + $0x38] sm:$0xff]
    %v1418 = vld [vmem:[%s3 + $0x40] sm:$0xff]
    %v1419 = vld [vmem:[%s3 + $0x48] sm:$0xff]
    %v1420 = vld [vmem:[%s3 + $0x50] sm:$0xff]
    %v1421 = vld [vmem:[%s3 + $0x58] sm:$0xff]
    %v1422 = vld [vmem:[%s3 + $0x60] sm:$0xff]
    %v1423 = vld [vmem:[%s3 + $0x68] sm:$0xff]
    %v1424 = vld [vmem:[%s3 + $0x70] sm:$0xff]
    %v1425 = vld [vmem:[%s3 + $0x78] sm:$0xff]
    %v1426 = vld [vmem:[%s3 + $0x80] sm:$0xff]
    %v1427 = vld [vmem:[%s3 + $0x88] sm:$0xff]
    %v1428 = vld [vmem:[%s3 + $0x90] sm:$0xff]
    %v1429 = vld [vmem:[%s3 + $0x98] sm:$0xff]
    %v1430 = vld [vmem:[%s3 + $0xa0] sm:$0xff]
    %v1431 = vld [vmem:[%s3 + $0xa8] sm:$0xff]
    %v1432 = vld [vmem:[%s3 + $0xb0] sm:$0xff]
    %v1433 = vld [vmem:[%s3 + $0xb8] sm:$0xff]
    %v1434 = vld [vmem:[%s3 + $0xc0] sm:$0xff]
    %v1435 = vld [vmem:[%s3 + $0xc8] sm:$0xff]
    %v1436 = vld [vmem:[%s3 + $0xd0] sm:$0xff]
    %v1437 = vld [vmem:[%s3 + $0xd8] sm:$0xff]
    %v1438 = vld [vmem:[%s3 + $0xe0] sm:$0xff]
    %v1439 = vld [vmem:[%s3 + $0xe8] sm:$0xff]
    %v1440 = vld [vmem:[%s3 + $0xf0] sm:$0xff]
    %v1441 = vld [vmem:[%s3 + $0xf8] sm:$0xff]
    %v1442 = vld [vmem:[%s4] sm:$0x3]
    %v1444 = vlaneseq
    %v1445 = vshrl.u32 %v1444, 7
    %v1446 = vsub.s32 0, %v1445
    %v1447 = vrot.slane %v1442, %v1446
    %v1448 = vlaneseq
    %v1449 = vshrl.u32 %v1448, 7
    %v1450 = vsub.s32 1, %v1449
    %v1451 = vrot.slane %v1442, %v1450
    %v1486 = vunpack.c.l.b16 %v1410
    %v1487 = vunpack.c.h.b16 %v1410
    %v1488 = vunpack.c.l.b16 %v1411
    %v1489 = vunpack.c.h.b16 %v1411
    %v1490 = vunpack.c.l.b16 %v1412
    %v1491 = vunpack.c.h.b16 %v1412
    %v1492 = vunpack.c.l.b16 %v1413
    %v1493 = vunpack.c.h.b16 %v1413
    %v1494 = vunpack.c.l.b16 %v1414
    %v1495 = vunpack.c.h.b16 %v1414
    %v1496 = vunpack.c.l.b16 %v1415
    %v1497 = vunpack.c.h.b16 %v1415
    %v1498 = vunpack.c.l.b16 %v1416
    %v1499 = vunpack.c.h.b16 %v1416
    %v1500 = vunpack.c.l.b16 %v1417
    %v1501 = vunpack.c.h.b16 %v1417
    %v1502 = vunpack.c.l.b16 %v1418
    %v1503 = vunpack.c.h.b16 %v1418
    %v1504 = vunpack.c.l.b16 %v1419
    %v1505 = vunpack.c.h.b16 %v1419
    %v1506 = vunpack.c.l.b16 %v1420
    %v1507 = vunpack.c.h.b16 %v1420
    %v1508 = vunpack.c.l.b16 %v1421
    %v1509 = vunpack.c.h.b16 %v1421
    %v1510 = vunpack.c.l.b16 %v1422
    %v1511 = vunpack.c.h.b16 %v1422
    %v1512 = vunpack.c.l.b16 %v1423
    %v1513 = vunpack.c.h.b16 %v1423
    %v1514 = vunpack.c.l.b16 %v1424
    %v1515 = vunpack.c.h.b16 %v1424
    %v1516 = vunpack.c.l.b16 %v1425
    %v1517 = vunpack.c.h.b16 %v1425
    %v1518 = vunpack.c.l.b16 %v1426
    %v1519 = vunpack.c.h.b16 %v1426
    %v1520 = vunpack.c.l.b16 %v1427
    %v1521 = vunpack.c.h.b16 %v1427
    %v1522 = vunpack.c.l.b16 %v1428
    %v1523 = vunpack.c.h.b16 %v1428
    %v1524 = vunpack.c.l.b16 %v1429
    %v1525 = vunpack.c.h.b16 %v1429
    %v1526 = vunpack.c.l.b16 %v1430
    %v1527 = vunpack.c.h.b16 %v1430
    %v1528 = vunpack.c.l.b16 %v1431
    %v1529 = vunpack.c.h.b16 %v1431
    %v1530 = vunpack.c.l.b16 %v1432
    %v1531 = vunpack.c.h.b16 %v1432
    %v1532 = vunpack.c.l.b16 %v1433
    %v1533 = vunpack.c.h.b16 %v1433
    %v1534 = vunpack.c.l.b16 %v1434
    %v1535 = vunpack.c.h.b16 %v1434
    %v1536 = vunpack.c.l.b16 %v1435
    %v1537 = vunpack.c.h.b16 %v1435
    %v1538 = vunpack.c.l.b16 %v1436
    %v1539 = vunpack.c.h.b16 %v1436
    %v1540 = vunpack.c.l.b16 %v1437
    %v1541 = vunpack.c.h.b16 %v1437
    %v1542 = vunpack.c.l.b16 %v1438
    %v1543 = vunpack.c.h.b16 %v1438
    %v1544 = vunpack.c.l.b16 %v1439
    %v1545 = vunpack.c.h.b16 %v1439
    %v1546 = vunpack.c.l.b16 %v1440
    %v1547 = vunpack.c.h.b16 %v1440
    %v1548 = vunpack.c.l.b16 %v1441
    %v1549 = vunpack.c.h.b16 %v1441
    %v1550 = vpack.c.b16 %v1488, %v1486
    %v1551 = vpack.c.b16 %v1489, %v1487
    %v1552 = vpack.c.b16 %v1492, %v1490
    %v1553 = vpack.c.b16 %v1493, %v1491
    %v1554 = vpack.c.b16 %v1496, %v1494
    %v1555 = vpack.c.b16 %v1497, %v1495
    %v1556 = vpack.c.b16 %v1500, %v1498
    %v1557 = vpack.c.b16 %v1501, %v1499
    %v1558 = vpack.c.b16 %v1504, %v1502
    %v1559 = vpack.c.b16 %v1505, %v1503
    %v1560 = vpack.c.b16 %v1508, %v1506
    %v1561 = vpack.c.b16 %v1509, %v1507
    %v1562 = vpack.c.b16 %v1512, %v1510
    %v1563 = vpack.c.b16 %v1513, %v1511
    %v1564 = vpack.c.b16 %v1516, %v1514
    %v1565 = vpack.c.b16 %v1517, %v1515
    %v1566 = vpack.c.b16 %v1520, %v1518
    %v1567 = vpack.c.b16 %v1521, %v1519
    %v1568 = vpack.c.b16 %v1524, %v1522
    %v1569 = vpack.c.b16 %v1525, %v1523
    %v1570 = vpack.c.b16 %v1528, %v1526
    %v1571 = vpack.c.b16 %v1529, %v1527
    %v1572 = vpack.c.b16 %v1532, %v1530
    %v1573 = vpack.c.b16 %v1533, %v1531
    %v1574 = vpack.c.b16 %v1536, %v1534
    %v1575 = vpack.c.b16 %v1537, %v1535
    %v1576 = vpack.c.b16 %v1540, %v1538
    %v1577 = vpack.c.b16 %v1541, %v1539
    %v1578 = vpack.c.b16 %v1544, %v1542
    %v1579 = vpack.c.b16 %v1545, %v1543
    %v1580 = vpack.c.b16 %v1548, %v1546
    %v1581 = vpack.c.b16 %v1549, %v1547
    %1614 = vmatprep.subr.bf16.mxu0 %v1551
    %1615 = vmatpush1.bf16.msra.mxu0 %v1550
    %1616 = vmatprep.subr.bf16.mxu0 %v1553
    %1617 = vmatpush1.bf16.msra.mxu0 %v1552
    %1618 = vmatprep.subr.bf16.mxu0 %v1555
    %1619 = vmatpush1.bf16.msra.mxu0 %v1554
    %1620 = vmatprep.subr.bf16.mxu0 %v1557
    %1621 = vmatpush1.bf16.msra.mxu0 %v1556
    %1622 = vmatprep.subr.bf16.mxu0 %v1559
    %1623 = vmatpush1.bf16.msra.mxu0 %v1558
    %1624 = vmatprep.subr.bf16.mxu0 %v1561
    %1625 = vmatpush1.bf16.msra.mxu0 %v1560
    %1626 = vmatprep.subr.bf16.mxu0 %v1563
    %1627 = vmatpush1.bf16.msra.mxu0 %v1562
    %1628 = vmatprep.subr.bf16.mxu0 %v1565
    %1629 = vmatpush1.bf16.msra.mxu0 %v1564
    %1630 = vmatprep.subr.bf16.mxu0 %v1567
    %1631 = vmatpush1.bf16.msra.mxu0 %v1566
    %1632 = vmatprep.subr.bf16.mxu0 %v1569
    %1633 = vmatpush1.bf16.msra.mxu0 %v1568
    %1634 = vmatprep.subr.bf16.mxu0 %v1571
    %1635 = vmatpush1.bf16.msra.mxu0 %v1570
    %1636 = vmatprep.subr.bf16.mxu0 %v1573
    %1637 = vmatpush1.bf16.msra.mxu0 %v1572
    %1638 = vmatprep.subr.bf16.mxu0 %v1575
    %1639 = vmatpush1.bf16.msra.mxu0 %v1574
    %1640 = vmatprep.subr.bf16.mxu0 %v1577
    %1641 = vmatpush1.bf16.msra.mxu0 %v1576
    %1642 = vmatprep.subr.bf16.mxu0 %v1579
    %1643 = vmatpush1.bf16.msra.mxu0 %v1578
    %1644 = vmatprep.subr.bf16.mxu0 %v1581
    %1645 = vmatpush1.bf16.msra.mxu0 %v1580
    %1646 = vmatprep.mubr.bf16.mxu0 %v1409
    %1647 = vmatmul.mubr.bf16.gmra.mrb[0].mxu0 %v1408
    %v1648 = vpop.f32.mrb[0].mxu0
    %v1649 = vadd.f32 %v1447, %v1648
    %v1650 = vpop.f32.mrb[0].mxu0
    %v1651 = vadd.f32 %v1451, %v1650
    %v1652 = vpop.f32.mrb[0].mxu0
    %v1653 = vpop.f32.mrb[0].mxu0
    %1654 = vdwg.mxu0
    %v1657 = vcombine.low %v1649, %v1651
    %v1659 = vunpack.c.l.s4 1983009808
    %v1660 = vunpack.c.0.s8 %v1659
    %v1661 = vlaneseq
    %v1662 = vshrl.u32 %v1661, 7
    %v1663 = vsub.s32 %v1660, %v1662
    %v1664 = vrot.slane %v1657, %v1663
    %1666 = vst [vmem:[#allocation2] sm:$0xf] %v1664
    // Predicated region
    $region22: #{forward.3} parent=1 // pred_check
      _
    $region23: #{forward.3} parent=1 // pred_check_branch
      %1668 = sbr.rel (0) target = $region25
    $region24: #{forward.3} parent=1 // pred_region
      %s1670 = ssub.s32 64, 64
      %1671 = vsyncadd [#allocation3], %s1670
      %s1673 = sshll.u32 [#allocation2], 4
      %s1674 = int_to_ptr.vmem [resolvable:$true] %s1673
      %1676 = dma.vmem_to_hbm [thread:$0]  %s1674, 64, %s5, [#allocation3]
    $region25: #{forward.3} parent=1 // pred_fallthru
      _
    // Predicated region
    $region26: #{forward.3} parent=1 // pred_check
      _
    $region27: #{forward.3} parent=1 // pred_check_branch
      %1678 = sbr.rel (0) target = $region29
    $region28: #{forward.3} parent=1 // pred_region
      %1679 = dma.done [#allocation3], 64
    $region29: #{forward.3} parent=1 // pred_fallthru
      _
    %1680 = vsyncpa [#allocation3], 1

// kernel: forward.2
$region0: #{forward.2}
  #allocation0 [shape = 'u32[]', space=smem, size = 0x4, offset = 0x4, fixed_abs, tag = 'smem constant byte address 0x4 - core index']
  #allocation1 [shape = 'u32[144,128]{1,0:T(1,128)}', space=vmem, size = 0x12000, scoped, tag = 'internal scratch']
  %s0 = inlined_call_operand.vmem [shape: bf16[128,12], index: 0, kind: input, shape index: {}]
  %s1 = inlined_call_operand.vmem [shape: bf16[12,32], index: 1, kind: input, shape index: {}]
  %s2 = inlined_call_operand.vmem [shape: bf16[32,64], index: 2, kind: input, shape index: {}]
  %s3 = inlined_call_operand.vmem [shape: f32[128,64], index: 3, kind: input, shape index: {}]
  %s4 = inlined_call_operand.vmem [shape: bf16[64,16], index: 4, kind: input, shape index: {}]
  %s5 = inlined_call_operand.vmem [shape: f32[1,16], index: 5, kind: input, shape index: {}]
  %s6 = inlined_call_operand.vmem [shape: bf16[4,32,32], index: 6, kind: input, shape index: {}]
  %s7 = inlined_call_operand.vmem [shape: bf16[32,64], index: 7, kind: input, shape index: {}]
  %s8 = inlined_call_operand.vmem [shape: f32[32,64], index: 8, kind: input, shape index: {}]
  %s9 = inlined_call_operand.vmem [shape: bf16[64,16], index: 9, kind: input, shape index: {}]
  %s10 = inlined_call_operand.vmem [shape: f32[1,16], index: 10, kind: input, shape index: {}]
  %s11 = inlined_call_operand.vmem [shape: bf16[4,32,64], index: 11, kind: input, shape index: {}]
  %s12 = inlined_call_operand.vmem [shape: bf16[64,64], index: 12, kind: input, shape index: {}]
  %s13 = inlined_call_operand.vmem [shape: f32[8,64], index: 13, kind: input, shape index: {}]
  %s14 = inlined_call_operand.vmem [shape: bf16[64,16], index: 14, kind: input, shape index: {}]
  %s15 = inlined_call_operand.vmem [shape: f32[1,16], index: 15, kind: input, shape index: {}]
  %s16 = inlined_call_operand.vmem [shape: bf16[4,64,96], index: 16, kind: input, shape index: {}]
  %s17 = inlined_call_operand.vmem [shape: bf16[96,64], index: 17, kind: input, shape index: {}]
  %s18 = inlined_call_operand.vmem [shape: f32[2,64], index: 18, kind: input, shape index: {}]
  %s19 = inlined_call_operand.vmem [shape: bf16[64,16], index: 19, kind: input, shape index: {}]
  %s20 = inlined_call_operand.vmem [shape: f32[1,16], index: 20, kind: input, shape index: {}]
  %s21 = inlined_call_operand.vmem [shape: bf16[128,16], index: 21, kind: output, shape index: {0}]
  %s22 = inlined_call_operand.vmem [shape: bf16[32,16], index: 22, kind: output, shape index: {1}]
  %s23 = inlined_call_operand.vmem [shape: bf16[8,16], index: 23, kind: output, shape index: {2}]
  %s24 = inlined_call_operand.vmem [shape: bf16[2,16], index: 24, kind: output, shape index: {3}]
  %25 = xla_tuple %s21, %s22, %s23, %s24
  %s26 = sld [smem:[#allocation0]]
  $region118: #{forward.2} parent=0
    _
  %s28 = ssub.s32 1, %s26
  %s29 = scalar_select 0, %s28, %s26
  // Predicated region
  $region2: #{forward.2} parent=0 // pred_check
    _
  $region3: #{forward.2} parent=0 // pred_check_branch
    %31 = sbr.rel (0) target = $region5
  $region4: #{forward.2} parent=0 // pred_region
    _
  $region5: #{forward.2} parent=0 // pred_fallthru
    _
  // Predicated region
  $region6: #{forward.2} parent=0 // pred_check
    _
  $region7: #{forward.2} parent=0 // pred_check_branch
    %33 = sbr.rel (0) target = $region9
  $region8: #{forward.2} parent=0 // pred_region
    _
  $region9: #{forward.2} parent=0 // pred_fallthru
    _
  // Predicated region
  $region10: #{forward.2} parent=0 // pred_check
    _
  $region11: #{forward.2} parent=0 // pred_check_branch
    %35 = sbr.rel (0) target = $region13
  $region12: #{forward.2} parent=0 // pred_region
    _
  $region13: #{forward.2} parent=0 // pred_fallthru
    _
  // Predicated region
  $region14: #{forward.2} parent=0 // pred_check
    _
  $region15: #{forward.2} parent=0 // pred_check_branch
    %37 = sbr.rel (0) target = $region17
  $region16: #{forward.2} parent=0 // pred_region
    _
  $region17: #{forward.2} parent=0 // pred_fallthru
    _
  // Predicated region
  $region18: #{forward.2} parent=0 // pred_check
    _
  $region19: #{forward.2} parent=0 // pred_check_branch
    %39 = sbr.rel (0) target = $region21
  $region20: #{forward.2} parent=0 // pred_region
    _
  $region21: #{forward.2} parent=0 // pred_fallthru
    _
  // Predicated region
  $region22: #{forward.2} parent=0 // pred_check
    _
  $region23: #{forward.2} parent=0 // pred_check_branch
    %41 = sbr.rel (0) target = $region25
  $region24: #{forward.2} parent=0 // pred_region
    _
  $region25: #{forward.2} parent=0 // pred_fallthru
    _
  // Predicated region
  $region26: #{forward.2} parent=0 // pred_check
    _
  $region27: #{forward.2} parent=0 // pred_check_branch
    %43 = sbr.rel (0) target = $region29
  $region28: #{forward.2} parent=0 // pred_region
    _
  $region29: #{forward.2} parent=0 // pred_fallthru
    _
  // Predicated region
  $region30: #{forward.2} parent=0 // pred_check
    _
  $region31: #{forward.2} parent=0 // pred_check_branch
    %45 = sbr.rel (0) target = $region33
  $region32: #{forward.2} parent=0 // pred_region
    _
  $region33: #{forward.2} parent=0 // pred_fallthru
    _
  // Predicated region
  $region34: #{forward.2} parent=0 // pred_check
    _
  $region35: #{forward.2} parent=0 // pred_check_branch
    %47 = sbr.rel (0) target = $region37
  $region36: #{forward.2} parent=0 // pred_region
    _
  $region37: #{forward.2} parent=0 // pred_fallthru
    _
  // Predicated region
  $region38: #{forward.2} parent=0 // pred_check
    _
  $region39: #{forward.2} parent=0 // pred_check_branch
    %49 = sbr.rel (0) target = $region41
  $region40: #{forward.2} parent=0 // pred_region
    _
  $region41: #{forward.2} parent=0 // pred_fallthru
    _
  // Predicated region
  $region42: #{forward.2} parent=0 // pred_check
    _
  $region43: #{forward.2} parent=0 // pred_check_branch
    %51 = sbr.rel (0) target = $region45
  $region44: #{forward.2} parent=0 // pred_region
    _
  $region45: #{forward.2} parent=0 // pred_fallthru
    _
  // Predicated region
  $region46: #{forward.2} parent=0 // pred_check
    _
  $region47: #{forward.2} parent=0 // pred_check_branch
    %53 = sbr.rel (0) target = $region49
  $region48: #{forward.2} parent=0 // pred_region
    _
  $region49: #{forward.2} parent=0 // pred_fallthru
    _
  // Predicated region
  $region50: #{forward.2} parent=0 // pred_check
    _
  $region51: #{forward.2} parent=0 // pred_check_branch
    %55 = sbr.rel (0) target = $region53
  $region52: #{forward.2} parent=0 // pred_region
    _
  $region53: #{forward.2} parent=0 // pred_fallthru
    _
  // Predicated region
  $region54: #{forward.2} parent=0 // pred_check
    _
  $region55: #{forward.2} parent=0 // pred_check_branch
    %57 = sbr.rel (0) target = $region57
  $region56: #{forward.2} parent=0 // pred_region
    _
  $region57: #{forward.2} parent=0 // pred_fallthru
    _
  // Predicated region
  $region58: #{forward.2} parent=0 // pred_check
    _
  $region59: #{forward.2} parent=0 // pred_check_branch
    %59 = sbr.rel (0) target = $region61
  $region60: #{forward.2} parent=0 // pred_region
    _
  $region61: #{forward.2} parent=0 // pred_fallthru
    _
  // Predicated region
  $region62: #{forward.2} parent=0 // pred_check
    _
  $region63: #{forward.2} parent=0 // pred_check_branch
    %61 = sbr.rel (0) target = $region65
  $region64: #{forward.2} parent=0 // pred_region
    _
  $region65: #{forward.2} parent=0 // pred_fallthru
    _
  // Predicated region
  $region66: #{forward.2} parent=0 // pred_check
    _
  $region67: #{forward.2} parent=0 // pred_check_branch
    %63 = sbr.rel (0) target = $region69
  $region68: #{forward.2} parent=0 // pred_region
    _
  $region69: #{forward.2} parent=0 // pred_fallthru
    _
  // Predicated region
  $region70: #{forward.2} parent=0 // pred_check
    _
  $region71: #{forward.2} parent=0 // pred_check_branch
    %65 = sbr.rel (0) target = $region73
  $region72: #{forward.2} parent=0 // pred_region
    _
  $region73: #{forward.2} parent=0 // pred_fallthru
    _
  // Predicated region
  $region74: #{forward.2} parent=0 // pred_check
    _
  $region75: #{forward.2} parent=0 // pred_check_branch
    %67 = sbr.rel (0) target = $region77
  $region76: #{forward.2} parent=0 // pred_region
    _
  $region77: #{forward.2} parent=0 // pred_fallthru
    _
  // Predicated region
  $region78: #{forward.2} parent=0 // pred_check
    _
  $region79: #{forward.2} parent=0 // pred_check_branch
    %69 = sbr.rel (0) target = $region81
  $region80: #{forward.2} parent=0 // pred_region
    _
  $region81: #{forward.2} parent=0 // pred_fallthru
    _
  // Predicated region
  $region82: #{forward.2} parent=0 // pred_check
    _
  $region83: #{forward.2} parent=0 // pred_check_branch
    %71 = sbr.rel (0) target = $region85
  $region84: #{forward.2} parent=0 // pred_region
    _
  $region85: #{forward.2} parent=0 // pred_fallthru
    _
  %v73 = vld [vmem:[%s0] sm:$0xf]
  %v74 = vld [vmem:[%s0 + $0x4] sm:$0xf]
  %v75 = vld [vmem:[%s0 + $0x8] sm:$0xf]
  %v76 = vld [vmem:[%s0 + $0xc] sm:$0xf]
  %v77 = vld [vmem:[%s0 + $0x10] sm:$0xf]
  %v78 = vld [vmem:[%s0 + $0x14] sm:$0xf]
  %v79 = vld [vmem:[%s0 + $0x18] sm:$0xf]
  %v80 = vld [vmem:[%s0 + $0x1c] sm:$0xf]
  %v81 = vld [vmem:[%s0 + $0x20] sm:$0xf]
  %v82 = vld [vmem:[%s0 + $0x24] sm:$0xf]
  %v83 = vld [vmem:[%s0 + $0x28] sm:$0xf]
  %v84 = vld [vmem:[%s0 + $0x2c] sm:$0xf]
  %v85 = vld [vmem:[%s0 + $0x30] sm:$0xf]
  %v86 = vld [vmem:[%s0 + $0x34] sm:$0xf]
  %v87 = vld [vmem:[%s0 + $0x38] sm:$0xf]
  %v88 = vld [vmem:[%s0 + $0x3c] sm:$0xf]
  %v89 = vld [vmem:[%s1] sm:$0xf]
  %v90 = vld [vmem:[%s1 + $0x4] sm:$0x3]
  %v107 = vunpack.c.l.b16 %v73
  %v108 = vunpack.c.l.b16 %v74
  %v109 = vunpack.c.l.b16 %v75
  %v110 = vunpack.c.l.b16 %v76
  %v111 = vunpack.c.l.b16 %v77
  %v112 = vunpack.c.l.b16 %v78
  %v113 = vunpack.c.l.b16 %v79
  %v114 = vunpack.c.l.b16 %v80
  %v115 = vunpack.c.l.b16 %v81
  %v116 = vunpack.c.l.b16 %v82
  %v117 = vunpack.c.l.b16 %v83
  %v118 = vunpack.c.l.b16 %v84
  %v119 = vunpack.c.l.b16 %v85
  %v120 = vunpack.c.l.b16 %v86
  %v121 = vunpack.c.l.b16 %v87
  %v122 = vunpack.c.l.b16 %v88
  %v123 = vpack.c.b16 %v108, %v107
  %v124 = vpack.c.b16 %v110, %v109
  %v125 = vpack.c.b16 %v112, %v111
  %v126 = vpack.c.b16 %v114, %v113
  %v127 = vpack.c.b16 %v116, %v115
  %v128 = vpack.c.b16 %v118, %v117
  %v129 = vpack.c.b16 %v120, %v119
  %v130 = vpack.c.b16 %v122, %v121
  %v133 = vunpack.c.l.b16 %v89
  %v134 = vunpack.c.l.b16 %v90
  %v135 = vpack.c.b16 %v134, %v133
  %vm136 = vcmask 97280
  %v138 = vsel %vm136, %v123, 0
  %v141 = vsel %vm136, %v124, 0
  %v144 = vsel %vm136, %v125, 0
  %v147 = vsel %vm136, %v126, 0
  %v150 = vsel %vm136, %v127, 0
  %v153 = vsel %vm136, %v128, 0
  %v156 = vsel %vm136, %v129, 0
  %v159 = vsel %vm136, %v130, 0
  %vm161 = vcmask 1045504
  %v163 = vsel %vm161, %v135, 0
  %165 = vmatprep.subr.bf16.mxu0 0
  %166 = vmatpush1.bf16.msra.mxu0 %v163
  %167 = vmatprep.subr.bf16.mxu0 0
  %168 = vmatpush1.bf16.msra.mxu0 0
  %169 = vmatprep.subr.bf16.mxu0 0
  %170 = vmatpush1.bf16.msra.mxu0 0
  %171 = vmatprep.subr.bf16.mxu0 0
  %172 = vmatpush1.bf16.msra.mxu0 0
  %173 = vmatprep.subr.bf16.mxu0 0
  %174 = vmatpush1.bf16.msra.mxu0 0
  %175 = vmatprep.subr.bf16.mxu0 0
  %176 = vmatpush1.bf16.msra.mxu0 0
  %177 = vmatprep.subr.bf16.mxu0 0
  %178 = vmatpush1.bf16.msra.mxu0 0
  %179 = vmatprep.subr.bf16.mxu0 0
  %180 = vmatpush1.bf16.msra.mxu0 0
  %181 = vmatprep.subr.bf16.mxu0 0
  %182 = vmatpush1.bf16.msra.mxu0 0
  %183 = vmatprep.subr.bf16.mxu0 0
  %184 = vmatpush1.bf16.msra.mxu0 0
  %185 = vmatprep.subr.bf16.mxu0 0
  %186 = vmatpush1.bf16.msra.mxu0 0
  %187 = vmatprep.subr.bf16.mxu0 0
  %188 = vmatpush1.bf16.msra.mxu0 0
  %189 = vmatprep.subr.bf16.mxu0 0
  %190 = vmatpush1.bf16.msra.mxu0 0
  %191 = vmatprep.subr.bf16.mxu0 0
  %192 = vmatpush1.bf16.msra.mxu0 0
  %193 = vmatprep.subr.bf16.mxu0 0
  %194 = vmatpush1.bf16.msra.mxu0 0
  %195 = vmatprep.subr.bf16.mxu0 0
  %196 = vmatpush1.bf16.msra.mxu0 0
  %197 = vmatprep.mubr.bf16.mxu0 0
  %198 = vmatmul.mubr.bf16.gmra.mrb[0].mxu0 %v138
  %v199 = vpop.f32.mrb[0].mxu0
  %v200 = vadd.f32 0.0, %v199
  %v201 = vpop.f32.mrb[0].mxu0
  %v202 = vpop.f32.mrb[0].mxu0
  %v203 = vadd.f32 0.0, %v202
  %v204 = vpop.f32.mrb[0].mxu0
  %205 = vmatprep.mubr.bf16.mxu0 0
  %206 = vmatmul.mubr.bf16.gmra.mrb[0].mxu0 %v141
  %v207 = vpop.f32.mrb[0].mxu0
  %v208 = vadd.f32 0.0, %v207
  %v209 = vpop.f32.mrb[0].mxu0
  %v210 = vpop.f32.mrb[0].mxu0
  %v211 = vadd.f32 0.0, %v210
  %v212 = vpop.f32.mrb[0].mxu0
  %213 = vmatprep.mubr.bf16.mxu0 0
  %214 = vmatmul.mubr.bf16.gmra.mrb[0].mxu0 %v144
  %v215 = vpop.f32.mrb[0].mxu0
  %v216 = vadd.f32 0.0, %v215
  %v217 = vpop.f32.mrb[0].mxu0
  %v218 = vpop.f32.mrb[0].mxu0
  %v219 = vadd.f32 0.0, %v218
  %v220 = vpop.f32.mrb[0].mxu0
  %221 = vmatprep.mubr.bf16.mxu0 0
  %222 = vmatmul.mubr.bf16.gmra.mrb[0].mxu0 %v147
  %v223 = vpop.f32.mrb[0].mxu0
  %v224 = vadd.f32 0.0, %v223
  %v225 = vpop.f32.mrb[0].mxu0
  %v226 = vpop.f32.mrb[0].mxu0
  %v227 = vadd.f32 0.0, %v226
  %v228 = vpop.f32.mrb[0].mxu0
  %229 = vmatprep.mubr.bf16.mxu0 0
  %230 = vmatmul.mubr.bf16.gmra.mrb[0].mxu0 %v150
  %v231 = vpop.f32.mrb[0].mxu0
  %v232 = vadd.f32 0.0, %v231
  %v233 = vpop.f32.mrb[0].mxu0
  %v234 = vpop.f32.mrb[0].mxu0
  %v235 = vadd.f32 0.0, %v234
  %v236 = vpop.f32.mrb[0].mxu0
  %237 = vmatprep.mubr.bf16.mxu0 0
  %238 = vmatmul.mubr.bf16.gmra.mrb[0].mxu0 %v153
  %v239 = vpop.f32.mrb[0].mxu0
  %v240 = vadd.f32 0.0, %v239
  %v241 = vpop.f32.mrb[0].mxu0
  %v242 = vpop.f32.mrb[0].mxu0
  %v243 = vadd.f32 0.0, %v242
  %v244 = vpop.f32.mrb[0].mxu0
  %245 = vmatprep.mubr.bf16.mxu0 0
  %246 = vmatmul.mubr.bf16.gmra.mrb[0].mxu0 %v156
  %v247 = vpop.f32.mrb[0].mxu0
  %v248 = vadd.f32 0.0, %v247
  %v249 = vpop.f32.mrb[0].mxu0
  %v250 = vpop.f32.mrb[0].mxu0
  %v251 = vadd.f32 0.0, %v250
  %v252 = vpop.f32.mrb[0].mxu0
  %253 = vmatprep.mubr.bf16.mxu0 0
  %254 = vmatmul.mubr.bf16.gmra.mrb[0].mxu0 %v159
  %v255 = vpop.f32.mrb[0].mxu0
  %v256 = vadd.f32 0.0, %v255
  %v257 = vpop.f32.mrb[0].mxu0
  %v258 = vpop.f32.mrb[0].mxu0
  %v259 = vadd.f32 0.0, %v258
  %v260 = vpop.f32.mrb[0].mxu0
  %261 = vdwg.mxu0
  %v262 = vmul.f32 %v200, 0.5
  %v263 = vmul.f32 %v203, 0.5
  %v264 = vmul.f32 %v208, 0.5
  %v265 = vmul.f32 %v211, 0.5
  %v266 = vmul.f32 %v216, 0.5
  %v267 = vmul.f32 %v219, 0.5
  %v268 = vmul.f32 %v224, 0.5
  %v269 = vmul.f32 %v227, 0.5
  %v270 = vmul.f32 %v232, 0.5
  %v271 = vmul.f32 %v235, 0.5
  %v272 = vmul.f32 %v240, 0.5
  %v273 = vmul.f32 %v243, 0.5
  %v274 = vmul.f32 %v248, 0.5
  %v275 = vmul.f32 %v251, 0.5
  %v276 = vmul.f32 %v256, 0.5
  %v277 = vmul.f32 %v259, 0.5
  %v278 = vmul.f32 %v200, 0.044715
  %v279 = vmul.f32 %v203, 0.044715
  %v280 = vmul.f32 %v208, 0.044715
  %v281 = vmul.f32 %v211, 0.044715
  %v282 = vmul.f32 %v216, 0.044715
  %v283 = vmul.f32 %v219, 0.044715
  %v284 = vmul.f32 %v224, 0.044715
  %v285 = vmul.f32 %v227, 0.044715
  %v286 = vmul.f32 %v232, 0.044715
  %v287 = vmul.f32 %v235, 0.044715
  %v288 = vmul.f32 %v240, 0.044715
  %v289 = vmul.f32 %v243, 0.044715
  %v290 = vmul.f32 %v248, 0.044715
  %v291 = vmul.f32 %v251, 0.044715
  %v292 = vmul.f32 %v256, 0.044715
  %v293 = vmul.f32 %v259, 0.044715
  %v294 = vmul.f32 %v278, %v200
  %v295 = vmul.f32 %v279, %v203
  %v296 = vmul.f32 %v280, %v208
  %v297 = vmul.f32 %v281, %v211
  %v298 = vmul.f32 %v282, %v216
  %v299 = vmul.f32 %v283, %v219
  %v300 = vmul.f32 %v284, %v224
  %v301 = vmul.f32 %v285, %v227
  %v302 = vmul.f32 %v286, %v232
  %v303 = vmul.f32 %v287, %v235
  %v304 = vmul.f32 %v288, %v240
  %v305 = vmul.f32 %v289, %v243
  %v306 = vmul.f32 %v290, %v248
  %v307 = vmul.f32 %v291, %v251
  %v308 = vmul.f32 %v292, %v256
  %v309 = vmul.f32 %v293, %v259
  %v310 = vmul.f32 %v294, %v200
  %v311 = vmul.f32 %v295, %v203
  %v312 = vmul.f32 %v296, %v208
  %v313 = vmul.f32 %v297, %v211
  %v314 = vmul.f32 %v298, %v216
  %v315 = vmul.f32 %v299, %v219
  %v316 = vmul.f32 %v300, %v224
  %v317 = vmul.f32 %v301, %v227
  %v318 = vmul.f32 %v302, %v232
  %v319 = vmul.f32 %v303, %v235
  %v320 = vmul.f32 %v304, %v240
  %v321 = vmul.f32 %v305, %v243
  %v322 = vmul.f32 %v306, %v248
  %v323 = vmul.f32 %v307, %v251
  %v324 = vmul.f32 %v308, %v256
  %v325 = vmul.f32 %v309, %v259
  %v326 = vadd.f32 %v200, %v310
  %v327 = vadd.f32 %v203, %v311
  %v328 = vadd.f32 %v208, %v312
  %v329 = vadd.f32 %v211, %v313
  %v330 = vadd.f32 %v216, %v314
  %v331 = vadd.f32 %v219, %v315
  %v332 = vadd.f32 %v224, %v316
  %v333 = vadd.f32 %v227, %v317
  %v334 = vadd.f32 %v232, %v318
  %v335 = vadd.f32 %v235, %v319
  %v336 = vadd.f32 %v240, %v320
  %v337 = vadd.f32 %v243, %v321
  %v338 = vadd.f32 %v248, %v322
  %v339 = vadd.f32 %v251, %v323
  %v340 = vadd.f32 %v256, %v324
  %v341 = vadd.f32 %v259, %v325
  %v342 = vmul.f32 %v326, 0.7978846
  %v343 = vmul.f32 %v327, 0.7978846
  %v344 = vmul.f32 %v328, 0.7978846
  %v345 = vmul.f32 %v329, 0.7978846
  %v346 = vmul.f32 %v330, 0.7978846
  %v347 = vmul.f32 %v331, 0.7978846
  %v348 = vmul.f32 %v332, 0.7978846
  %v349 = vmul.f32 %v333, 0.7978846
  %v350 = vmul.f32 %v334, 0.7978846
  %v351 = vmul.f32 %v335, 0.7978846
  %v352 = vmul.f32 %v336, 0.7978846
  %v353 = vmul.f32 %v337, 0.7978846
  %v354 = vmul.f32 %v338, 0.7978846
  %v355 = vmul.f32 %v339, 0.7978846
  %v356 = vmul.f32 %v340, 0.7978846
  %v357 = vmul.f32 %v341, 0.7978846
  %v358 = vtanh.pop %v342
  %v359 = vtanh.pop %v343
  %v360 = vtanh.pop %v344
  %v361 = vtanh.pop %v345
  %v362 = vtanh.pop %v346
  %v363 = vtanh.pop %v347
  %v364 = vtanh.pop %v348
  %v365 = vtanh.pop %v349
  %v366 = vtanh.pop %v350
  %v367 = vtanh.pop %v351
  %v368 = vtanh.pop %v352
  %v369 = vtanh.pop %v353
  %v370 = vtanh.pop %v354
  %v371 = vtanh.pop %v355
  %v372 = vtanh.pop %v356
  %v373 = vtanh.pop %v357
  %v374 = vadd.f32 %v358, 1.0
  %v375 = vadd.f32 %v359, 1.0
  %v376 = vadd.f32 %v360, 1.0
  %v377 = vadd.f32 %v361, 1.0
  %v378 = vadd.f32 %v362, 1.0
  %v379 = vadd.f32 %v363, 1.0
  %v380 = vadd.f32 %v364, 1.0
  %v381 = vadd.f32 %v365, 1.0
  %v382 = vadd.f32 %v366, 1.0
  %v383 = vadd.f32 %v367, 1.0
  %v384 = vadd.f32 %v368, 1.0
  %v385 = vadd.f32 %v369, 1.0
  %v386 = vadd.f32 %v370, 1.0
  %v387 = vadd.f32 %v371, 1.0
  %v388 = vadd.f32 %v372, 1.0
  %v389 = vadd.f32 %v373, 1.0
  %v390 = vmul.f32 %v262, %v374
  %v391 = vmul.f32 %v263, %v375
  %v392 = vmul.f32 %v264, %v376
  %v393 = vmul.f32 %v265, %v377
  %v394 = vmul.f32 %v266, %v378
  %v395 = vmul.f32 %v267, %v379
  %v396 = vmul.f32 %v268, %v380
  %v397 = vmul.f32 %v269, %v381
  %v398 = vmul.f32 %v270, %v382
  %v399 = vmul.f32 %v271, %v383
  %v400 = vmul.f32 %v272, %v384
  %v401 = vmul.f32 %v273, %v385
  %v402 = vmul.f32 %v274, %v386
  %v403 = vmul.f32 %v275, %v387
  %v404 = vmul.f32 %v276, %v388
  %v405 = vmul.f32 %v277, %v389
  %v406 = vpack.c.bf16 %v391, %v390
  %v407 = vpack.c.bf16 %v393, %v392
  %v408 = vpack.c.bf16 %v395, %v394
  %v409 = vpack.c.bf16 %v397, %v396
  %v410 = vpack.c.bf16 %v399, %v398
  %v411 = vpack.c.bf16 %v401, %v400
  %v412 = vpack.c.bf16 %v403, %v402
  %v413 = vpack.c.bf16 %v405, %v404
  %v414 = vld [vmem:[%s2] sm:$0xf]
  %v415 = vld [vmem:[%s2 + $0x4] sm:$0xf]
  %v416 = vld [vmem:[%s2 + $0x8] sm:$0xf]
  %v417 = vld [vmem:[%s2 + $0xc] sm:$0xf]
  %v418 = vld [vmem:[%s3] sm:$0xff]
  %v419 = vld [vmem:[%s3 + $0x8] sm:$0xff]
  %v420 = vld [vmem:[%s3 + $0x10] sm:$0xff]
  %v421 = vld [vmem:[%s3 + $0x18] sm:$0xff]
  %v422 = vld [vmem:[%s3 + $0x20] sm:$0xff]
  %v423 = vld [vmem:[%s3 + $0x28] sm:$0xff]
  %v424 = vld [vmem:[%s3 + $0x30] sm:$0xff]
  %v425 = vld [vmem:[%s3 + $0x38] sm:$0xff]
  %v426 = vld [vmem:[%s3 + $0x40] sm:$0xff]
  %v427 = vld [vmem:[%s3 + $0x48] sm:$0xff]
  %v428 = vld [vmem:[%s3 + $0x50] sm:$0xff]
  %v429 = vld [vmem:[%s3 + $0x58] sm:$0xff]
  %v430 = vld [vmem:[%s3 + $0x60] sm:$0xff]
  %v431 = vld [vmem:[%s3 + $0x68] sm:$0xff]
  %v432 = vld [vmem:[%s3 + $0x70] sm:$0xff]
  %v433 = vld [vmem:[%s3 + $0x78] sm:$0xff]
  %v438 = vunpack.c.l.b16 %v414
  %v439 = vunpack.c.l.b16 %v415
  %v440 = vunpack.c.l.b16 %v416
  %v441 = vunpack.c.l.b16 %v417
  %v442 = vpack.c.b16 %v439, %v438
  %v443 = vpack.c.b16 %v441, %v440
  %vm446 = vcmask 261120
  %v448 = vsel %vm446, %v406, 0
  %v451 = vsel %vm446, %v407, 0
  %v454 = vsel %vm446, %v408, 0
  %v457 = vsel %vm446, %v409, 0
  %v460 = vsel %vm446, %v410, 0
  %v463 = vsel %vm446, %v411, 0
  %v466 = vsel %vm446, %v412, 0
  %v469 = vsel %vm446, %v413, 0
  %471 = vmatprep.subr.bf16.mxu0 0
  %472 = vmatpush1.bf16.msra.mxu0 %v442
  %473 = vmatprep.subr.bf16.mxu0 0
  %474 = vmatpush1.bf16.msra.mxu0 %v443
  %475 = vmatprep.subr.bf16.mxu0 0
  %476 = vmatpush1.bf16.msra.mxu0 0
  %477 = vmatprep.subr.bf16.mxu0 0
  %478 = vmatpush1.bf16.msra.mxu0 0
  %479 = vmatprep.subr.bf16.mxu0 0
  %480 = vmatpush1.bf16.msra.mxu0 0
  %481 = vmatprep.subr.bf16.mxu0 0
  %482 = vmatpush1.bf16.msra.mxu0 0
  %483 = vmatprep.subr.bf16.mxu0 0
  %484 = vmatpush1.bf16.msra.mxu0 0
  %485 = vmatprep.subr.bf16.mxu0 0
  %486 = vmatpush1.bf16.msra.mxu0 0
  %487 = vmatprep.subr.bf16.mxu0 0
  %488 = vmatpush1.bf16.msra.mxu0 0
  %489 = vmatprep.subr.bf16.mxu0 0
  %490 = vmatpush1.bf16.msra.mxu0 0
  %491 = vmatprep.subr.bf16.mxu0 0
  %492 = vmatpush1.bf16.msra.mxu0 0
  %493 = vmatprep.subr.bf16.mxu0 0
  %494 = vmatpush1.bf16.msra.mxu0 0
  %495 = vmatprep.subr.bf16.mxu0 0
  %496 = vmatpush1.bf16.msra.mxu0 0
  %497 = vmatprep.subr.bf16.mxu0 0
  %498 = vmatpush1.bf16.msra.mxu0 0
  %499 = vmatprep.subr.bf16.mxu0 0
  %500 = vmatpush1.bf16.msra.mxu0 0
  %501 = vmatprep.subr.bf16.mxu0 0
  %502 = vmatpush1.bf16.msra.mxu0 0
  %503 = vmatprep.mubr.bf16.mxu0 0
  %504 = vmatmul.mubr.bf16.gmra.mrb[0].mxu0 %v448
  %v505 = vpop.f32.mrb[0].mxu0
  %v506 = vadd.f32 %v418, %v505
  %v507 = vpop.f32.mrb[0].mxu0
  %v508 = vpop.f32.mrb[0].mxu0
  %v509 = vadd.f32 %v419, %v508
  %v510 = vpop.f32.mrb[0].mxu0
  %511 = vmatprep.mubr.bf16.mxu0 0
  %512 = vmatmul.mubr.bf16.gmra.mrb[0].mxu0 %v451
  %v513 = vpop.f32.mrb[0].mxu0
  %v514 = vadd.f32 %v420, %v513
  %v515 = vpop.f32.mrb[0].mxu0
  %v516 = vpop.f32.mrb[0].mxu0
  %v517 = vadd.f32 %v421, %v516
  %v518 = vpop.f32.mrb[0].mxu0
  %519 = vmatprep.mubr.bf16.mxu0 0
  %520 = vmatmul.mubr.bf16.gmra.mrb[0].mxu0 %v454
  %v521 = vpop.f32.mrb[0].mxu0
  %v522 = vadd.f32 %v422, %v521
  %v523 = vpop.f32.mrb[0].mxu0
  %v524 = vpop.f32.mrb[0].mxu0
  %v525 = vadd.f32 %v423, %v524
  %v526 = vpop.f32.mrb[0].mxu0
  %527 = vmatprep.mubr.bf16.mxu0 0
  %528 = vmatmul.mubr.bf16.gmra.mrb[0].mxu0 %v457
  %v529 = vpop.f32.mrb[0].mxu0
  %v530 = vadd.f32 %v424, %v529
  %v531 = vpop.f32.mrb[0].mxu0
  %v532 = vpop.f32.mrb[0].mxu0
  %v533 = vadd.f32 %v425, %v532
  %v534 = vpop.f32.mrb[0].mxu0
  %535 = vmatprep.mubr.bf16.mxu0 0
  %536 = vmatmul.mubr.bf16.gmra.mrb[0].mxu0 %v460
  %v537 = vpop.f32.mrb[0].mxu0
  %v538 = vadd.f32 %v426, %v537
  %v539 = vpop.f32.mrb[0].mxu0
  %v540 = vpop.f32.mrb[0].mxu0
  %v541 = vadd.f32 %v427, %v540
  %v542 = vpop.f32.mrb[0].mxu0
  %543 = vmatprep.mubr.bf16.mxu0 0
  %544 = vmatmul.mubr.bf16.gmra.mrb[0].mxu0 %v463
  %v545 = vpop.f32.mrb[0].mxu0
  %v546 = vadd.f32 %v428, %v545
  %v547 = vpop.f32.mrb[0].mxu0
  %v548 = vpop.f32.mrb[0].mxu0
  %v549 = vadd.f32 %v429, %v548
  %v550 = vpop.f32.mrb[0].mxu0
  %551 = vmatprep.mubr.bf16.mxu0 0
  %552 = vmatmul.mubr.bf16.gmra.mrb[0].mxu0 %v466
  %v553 = vpop.f32.mrb[0].mxu0
  %v554 = vadd.f32 %v430, %v553
  %v555 = vpop.f32.mrb[0].mxu0
  %v556 = vpop.f32.mrb[0].mxu0
  %v557 = vadd.f32 %v431, %v556
  %v558 = vpop.f32.mrb[0].mxu0
  %559 = vmatprep.mubr.bf16.mxu0 0
  %560 = vmatmul.mubr.bf16.gmra.mrb[0].mxu0 %v469
  %v561 = vpop.f32.mrb[0].mxu0
  %v562 = vadd.f32 %v432, %v561
  %v563 = vpop.f32.mrb[0].mxu0
  %v564 = vpop.f32.mrb[0].mxu0
  %v565 = vadd.f32 %v433, %v564
  %v566 = vpop.f32.mrb[0].mxu0
  %567 = vdwg.mxu0
  %v568 = vmul.f32 %v506, 0.5
  %v569 = vmul.f32 %v509, 0.5
  %v570 = vmul.f32 %v514, 0.5
  %v571 = vmul.f32 %v517, 0.5
  %v572 = vmul.f32 %v522, 0.5
  %v573 = vmul.f32 %v525, 0.5
  %v574 = vmul.f32 %v530, 0.5
  %v575 = vmul.f32 %v533, 0.5
  %v576 = vmul.f32 %v538, 0.5
  %v577 = vmul.f32 %v541, 0.5
  %v578 = vmul.f32 %v546, 0.5
  %v579 = vmul.f32 %v549, 0.5
  %v580 = vmul.f32 %v554, 0.5
  %v581 = vmul.f32 %v557, 0.5
  %v582 = vmul.f32 %v562, 0.5
  %v583 = vmul.f32 %v565, 0.5
  %v584 = vmul.f32 %v506, 0.044715
  %v585 = vmul.f32 %v509, 0.044715
  %v586 = vmul.f32 %v514, 0.044715
  %v587 = vmul.f32 %v517, 0.044715
  %v588 = vmul.f32 %v522, 0.044715
  %v589 = vmul.f32 %v525, 0.044715
  %v590 = vmul.f32 %v530, 0.044715
  %v591 = vmul.f32 %v533, 0.044715
  %v592 = vmul.f32 %v538, 0.044715
  %v593 = vmul.f32 %v541, 0.044715
  %v594 = vmul.f32 %v546, 0.044715
  %v595 = vmul.f32 %v549, 0.044715
  %v596 = vmul.f32 %v554, 0.044715
  %v597 = vmul.f32 %v557, 0.044715
  %v598 = vmul.f32 %v562, 0.044715
  %v599 = vmul.f32 %v565, 0.044715
  %v600 = vmul.f32 %v584, %v506
  %v601 = vmul.f32 %v585, %v509
  %v602 = vmul.f32 %v586, %v514
  %v603 = vmul.f32 %v587, %v517
  %v604 = vmul.f32 %v588, %v522
  %v605 = vmul.f32 %v589, %v525
  %v606 = vmul.f32 %v590, %v530
  %v607 = vmul.f32 %v591, %v533
  %v608 = vmul.f32 %v592, %v538
  %v609 = vmul.f32 %v593, %v541
  %v610 = vmul.f32 %v594, %v546
  %v611 = vmul.f32 %v595, %v549
  %v612 = vmul.f32 %v596, %v554
  %v613 = vmul.f32 %v597, %v557
  %v614 = vmul.f32 %v598, %v562
  %v615 = vmul.f32 %v599, %v565
  %v616 = vmul.f32 %v600, %v506
  %v617 = vmul.f32 %v601, %v509
  %v618 = vmul.f32 %v602, %v514
  %v619 = vmul.f32 %v603, %v517
  %v620 = vmul.f32 %v604, %v522
  %v621 = vmul.f32 %v605, %v525
  %v622 = vmul.f32 %v606, %v530
  %v623 = vmul.f32 %v607, %v533
  %v624 = vmul.f32 %v608, %v538
  %v625 = vmul.f32 %v609, %v541
  %v626 = vmul.f32 %v610, %v546
  %v627 = vmul.f32 %v611, %v549
  %v628 = vmul.f32 %v612, %v554
  %v629 = vmul.f32 %v613, %v557
  %v630 = vmul.f32 %v614, %v562
  %v631 = vmul.f32 %v615, %v565
  %v632 = vadd.f32 %v506, %v616
  %v633 = vadd.f32 %v509, %v617
  %v634 = vadd.f32 %v514, %v618
  %v635 = vadd.f32 %v517, %v619
  %v636 = vadd.f32 %v522, %v620
  %v637 = vadd.f32 %v525, %v621
  %v638 = vadd.f32 %v530, %v622
  %v639 = vadd.f32 %v533, %v623
  %v640 = vadd.f32 %v538, %v624
  %v641 = vadd.f32 %v541, %v625
  %v642 = vadd.f32 %v546, %v626
  %v643 = vadd.f32 %v549, %v627
  %v644 = vadd.f32 %v554, %v628
  %v645 = vadd.f32 %v557, %v629
  %v646 = vadd.f32 %v562, %v630
  %v647 = vadd.f32 %v565, %v631
  %v648 = vmul.f32 %v632, 0.7978846
  %v649 = vmul.f32 %v633, 0.7978846
  %v650 = vmul.f32 %v634, 0.7978846
  %v651 = vmul.f32 %v635, 0.7978846
  %v652 = vmul.f32 %v636, 0.7978846
  %v653 = vmul.f32 %v637, 0.7978846
  %v654 = vmul.f32 %v638, 0.7978846
  %v655 = vmul.f32 %v639, 0.7978846
  %v656 = vmul.f32 %v640, 0.7978846
  %v657 = vmul.f32 %v641, 0.7978846
  %v658 = vmul.f32 %v642, 0.7978846
  %v659 = vmul.f32 %v643, 0.7978846
  %v660 = vmul.f32 %v644, 0.7978846
  %v661 = vmul.f32 %v645, 0.7978846
  %v662 = vmul.f32 %v646, 0.7978846
  %v663 = vmul.f32 %v647, 0.7978846
  %v664 = vtanh.pop %v648
  %v665 = vtanh.pop %v649
  %v666 = vtanh.pop %v650
  %v667 = vtanh.pop %v651
  %v668 = vtanh.pop %v652
  %v669 = vtanh.pop %v653
  %v670 = vtanh.pop %v654
  %v671 = vtanh.pop %v655
  %v672 = vtanh.pop %v656
  %v673 = vtanh.pop %v657
  %v674 = vtanh.pop %v658
  %v675 = vtanh.pop %v659
  %v676 = vtanh.pop %v660
  %v677 = vtanh.pop %v661
  %v678 = vtanh.pop %v662
  %v679 = vtanh.pop %v663
  %v680 = vadd.f32 %v664, 1.0
  %v681 = vadd.f32 %v665, 1.0
  %v682 = vadd.f32 %v666, 1.0
  %v683 = vadd.f32 %v667, 1.0
  %v684 = vadd.f32 %v668, 1.0
  %v685 = vadd.f32 %v669, 1.0
  %v686 = vadd.f32 %v670, 1.0
  %v687 = vadd.f32 %v671, 1.0
  %v688 = vadd.f32 %v672, 1.0
  %v689 = vadd.f32 %v673, 1.0
  %v690 = vadd.f32 %v674, 1.0
  %v691 = vadd.f32 %v675, 1.0
  %v692 = vadd.f32 %v676, 1.0
  %v693 = vadd.f32 %v677, 1.0
  %v694 = vadd.f32 %v678, 1.0
  %v695 = vadd.f32 %v679, 1.0
  %v696 = vmul.f32 %v568, %v680
  %v697 = vmul.f32 %v569, %v681
  %v698 = vmul.f32 %v570, %v682
  %v699 = vmul.f32 %v571, %v683
  %v700 = vmul.f32 %v572, %v684
  %v701 = vmul.f32 %v573, %v685
  %v702 = vmul.f32 %v574, %v686
  %v703 = vmul.f32 %v575, %v687
  %v704 = vmul.f32 %v576, %v688
  %v705 = vmul.f32 %v577, %v689
  %v706 = vmul.f32 %v578, %v690
  %v707 = vmul.f32 %v579, %v691
  %v708 = vmul.f32 %v580, %v692
  %v709 = vmul.f32 %v581, %v693
  %v710 = vmul.f32 %v582, %v694
  %v711 = vmul.f32 %v583, %v695
  %v712 = vpack.c.bf16 %v697, %v696
  %v713 = vpack.c.bf16 %v699, %v698
  %v714 = vpack.c.bf16 %v701, %v700
  %v715 = vpack.c.bf16 %v703, %v702
  %v716 = vpack.c.bf16 %v705, %v704
  %v717 = vpack.c.bf16 %v707, %v706
  %v718 = vpack.c.bf16 %v709, %v708
  %v719 = vpack.c.bf16 %v711, %v710
  %v720 = vld [vmem:[%s4] sm:$0xf]
  %v721 = vld [vmem:[%s4 + $0x4] sm:$0xf]
  %v722 = vld [vmem:[%s4 + $0x8] sm:$0xf]
  %v723 = vld [vmem:[%s4 + $0xc] sm:$0xf]
  %v724 = vld [vmem:[%s4 + $0x10] sm:$0xf]
  %v725 = vld [vmem:[%s4 + $0x14] sm:$0xf]
  %v726 = vld [vmem:[%s4 + $0x18] sm:$0xf]
  %v727 = vld [vmem:[%s4 + $0x1c] sm:$0xf]
  %v728 = vld [vmem:[%s5] sm:$0x1]
  %v730 = vlaneseq
  %v731 = vshrl.u32 %v730, 7
  %v732 = vsub.s32 0, %v731
  %v733 = vrot.slane %v728, %v732
  %v743 = vunpack.c.l.b16 %v720
  %v744 = vunpack.c.l.b16 %v721
  %v745 = vunpack.c.l.b16 %v722
  %v746 = vunpack.c.l.b16 %v723
  %v747 = vunpack.c.l.b16 %v724
  %v748 = vunpack.c.l.b16 %v725
  %v749 = vunpack.c.l.b16 %v726
  %v750 = vunpack.c.l.b16 %v727
  %v751 = vpack.c.b16 %v744, %v743
  %v752 = vpack.c.b16 %v746, %v745
  %v753 = vpack.c.b16 %v748, %v747
  %v754 = vpack.c.b16 %v750, %v749
  %vm759 = vcmask 523264
  %v761 = vsel %vm759, %v712, 0
  %v764 = vsel %vm759, %v713, 0
  %v767 = vsel %vm759, %v714, 0
  %v770 = vsel %vm759, %v715, 0
  %v773 = vsel %vm759, %v716, 0
  %v776 = vsel %vm759, %v717, 0
  %v779 = vsel %vm759, %v718, 0
  %v782 = vsel %vm759, %v719, 0
  %784 = vmatprep.subr.bf16.mxu0 0
  %785 = vmatpush1.bf16.msra.mxu0 %v751
  %786 = vmatprep.subr.bf16.mxu0 0
  %787 = vmatpush1.bf16.msra.mxu0 %v752
  %788 = vmatprep.subr.bf16.mxu0 0
  %789 = vmatpush1.bf16.msra.mxu0 %v753
  %790 = vmatprep.subr.bf16.mxu0 0
  %791 = vmatpush1.bf16.msra.mxu0 %v754
  %792 = vmatprep.subr.bf16.mxu0 0
  %793 = vmatpush1.bf16.msra.mxu0 0
  %794 = vmatprep.subr.bf16.mxu0 0
  %795 = vmatpush1.bf16.msra.mxu0 0
  %796 = vmatprep.subr.bf16.mxu0 0
  %797 = vmatpush1.bf16.msra.mxu0 0
  %798 = vmatprep.subr.bf16.mxu0 0
  %799 = vmatpush1.bf16.msra.mxu0 0
  %800 = vmatprep.subr.bf16.mxu0 0
  %801 = vmatpush1.bf16.msra.mxu0 0
  %802 = vmatprep.subr.bf16.mxu0 0
  %803 = vmatpush1.bf16.msra.mxu0 0
  %804 = vmatprep.subr.bf16.mxu0 0
  %805 = vmatpush1.bf16.msra.mxu0 0
  %806 = vmatprep.subr.bf16.mxu0 0
  %807 = vmatpush1.bf16.msra.mxu0 0
  %808 = vmatprep.subr.bf16.mxu0 0
  %809 = vmatpush1.bf16.msra.mxu0 0
  %810 = vmatprep.subr.bf16.mxu0 0
  %811 = vmatpush1.bf16.msra.mxu0 0
  %812 = vmatprep.subr.bf16.mxu0 0
  %813 = vmatpush1.bf16.msra.mxu0 0
  %814 = vmatprep.subr.bf16.mxu0 0
  %815 = vmatpush1.bf16.msra.mxu0 0
  %816 = vmatprep.mubr.bf16.mxu0 0
  %817 = vmatmul.mubr.bf16.gmra.mrb[0].mxu0 %v761
  %v818 = vpop.f32.mrb[0].mxu0
  %v819 = vadd.f32 %v733, %v818
  %v820 = vpop.f32.mrb[0].mxu0
  %v821 = vpop.f32.mrb[0].mxu0
  %v822 = vadd.f32 %v733, %v821
  %v823 = vpop.f32.mrb[0].mxu0
  %824 = vmatprep.mubr.bf16.mxu0 0
  %825 = vmatmul.mubr.bf16.gmra.mrb[0].mxu0 %v764
  %v826 = vpop.f32.mrb[0].mxu0
  %v827 = vadd.f32 %v733, %v826
  %v828 = vpop.f32.mrb[0].mxu0
  %v829 = vpop.f32.mrb[0].mxu0
  %v830 = vadd.f32 %v733, %v829
  %v831 = vpop.f32.mrb[0].mxu0
  %832 = vmatprep.mubr.bf16.mxu0 0
  %833 = vmatmul.mubr.bf16.gmra.mrb[0].mxu0 %v767
  %v834 = vpop.f32.mrb[0].mxu0
  %v835 = vadd.f32 %v733, %v834
  %v836 = vpop.f32.mrb[0].mxu0
  %v837 = vpop.f32.mrb[0].mxu0
  %v838 = vadd.f32 %v733, %v837
  %v839 = vpop.f32.mrb[0].mxu0
  %840 = vmatprep.mubr.bf16.mxu0 0
  %841 = vmatmul.mubr.bf16.gmra.mrb[0].mxu0 %v770
  %v842 = vpop.f32.mrb[0].mxu0
  %v843 = vadd.f32 %v733, %v842
  %v844 = vpop.f32.mrb[0].mxu0
  %v845 = vpop.f32.mrb[0].mxu0
  %v846 = vadd.f32 %v733, %v845
  %v847 = vpop.f32.mrb[0].mxu0
  %848 = vmatprep.mubr.bf16.mxu0 0
  %849 = vmatmul.mubr.bf16.gmra.mrb[0].mxu0 %v773
  %v850 = vpop.f32.mrb[0].mxu0
  %v851 = vadd.f32 %v733, %v850
  %v852 = vpop.f32.mrb[0].mxu0
  %v853 = vpop.f32.mrb[0].mxu0
  %v854 = vadd.f32 %v733, %v853
  %v855 = vpop.f32.mrb[0].mxu0
  %856 = vmatprep.mubr.bf16.mxu0 0
  %857 = vmatmul.mubr.bf16.gmra.mrb[0].mxu0 %v776
  %v858 = vpop.f32.mrb[0].mxu0
  %v859 = vadd.f32 %v733, %v858
  %v860 = vpop.f32.mrb[0].mxu0
  %v861 = vpop.f32.mrb[0].mxu0
  %v862 = vadd.f32 %v733, %v861
  %v863 = vpop.f32.mrb[0].mxu0
  %864 = vmatprep.mubr.bf16.mxu0 0
  %865 = vmatmul.mubr.bf16.gmra.mrb[0].mxu0 %v779
  %v866 = vpop.f32.mrb[0].mxu0
  %v867 = vadd.f32 %v733, %v866
  %v868 = vpop.f32.mrb[0].mxu0
  %v869 = vpop.f32.mrb[0].mxu0
  %v870 = vadd.f32 %v733, %v869
  %v871 = vpop.f32.mrb[0].mxu0
  %872 = vmatprep.mubr.bf16.mxu0 0
  %873 = vmatmul.mubr.bf16.gmra.mrb[0].mxu0 %v782
  %v874 = vpop.f32.mrb[0].mxu0
  %v875 = vadd.f32 %v733, %v874
  %v876 = vpop.f32.mrb[0].mxu0
  %v877 = vpop.f32.mrb[0].mxu0
  %v878 = vadd.f32 %v733, %v877
  %v879 = vpop.f32.mrb[0].mxu0
  %880 = vdwg.mxu0
  %v881 = vmul.f32 %v819, 0.5
  %v882 = vmul.f32 %v822, 0.5
  %v883 = vmul.f32 %v827, 0.5
  %v884 = vmul.f32 %v830, 0.5
  %v885 = vmul.f32 %v835, 0.5
  %v886 = vmul.f32 %v838, 0.5
  %v887 = vmul.f32 %v843, 0.5
  %v888 = vmul.f32 %v846, 0.5
  %v889 = vmul.f32 %v851, 0.5
  %v890 = vmul.f32 %v854, 0.5
  %v891 = vmul.f32 %v859, 0.5
  %v892 = vmul.f32 %v862, 0.5
  %v893 = vmul.f32 %v867, 0.5
  %v894 = vmul.f32 %v870, 0.5
  %v895 = vmul.f32 %v875, 0.5
  %v896 = vmul.f32 %v878, 0.5
  %v897 = vmul.f32 %v819, 0.044715
  %v898 = vmul.f32 %v822, 0.044715
  %v899 = vmul.f32 %v827, 0.044715
  %v900 = vmul.f32 %v830, 0.044715
  %v901 = vmul.f32 %v835, 0.044715
  %v902 = vmul.f32 %v838, 0.044715
  %v903 = vmul.f32 %v843, 0.044715
  %v904 = vmul.f32 %v846, 0.044715
  %v905 = vmul.f32 %v851, 0.044715
  %v906 = vmul.f32 %v854, 0.044715
  %v907 = vmul.f32 %v859, 0.044715
  %v908 = vmul.f32 %v862, 0.044715
  %v909 = vmul.f32 %v867, 0.044715
  %v910 = vmul.f32 %v870, 0.044715
  %v911 = vmul.f32 %v875, 0.044715
  %v912 = vmul.f32 %v878, 0.044715
  %v913 = vmul.f32 %v897, %v819
  %v914 = vmul.f32 %v898, %v822
  %v915 = vmul.f32 %v899, %v827
  %v916 = vmul.f32 %v900, %v830
  %v917 = vmul.f32 %v901, %v835
  %v918 = vmul.f32 %v902, %v838
  %v919 = vmul.f32 %v903, %v843
  %v920 = vmul.f32 %v904, %v846
  %v921 = vmul.f32 %v905, %v851
  %v922 = vmul.f32 %v906, %v854
  %v923 = vmul.f32 %v907, %v859
  %v924 = vmul.f32 %v908, %v862
  %v925 = vmul.f32 %v909, %v867
  %v926 = vmul.f32 %v910, %v870
  %v927 = vmul.f32 %v911, %v875
  %v928 = vmul.f32 %v912, %v878
  %v929 = vmul.f32 %v913, %v819
  %v930 = vmul.f32 %v914, %v822
  %v931 = vmul.f32 %v915, %v827
  %v932 = vmul.f32 %v916, %v830
  %v933 = vmul.f32 %v917, %v835
  %v934 = vmul.f32 %v918, %v838
  %v935 = vmul.f32 %v919, %v843
  %v936 = vmul.f32 %v920, %v846
  %v937 = vmul.f32 %v921, %v851
  %v938 = vmul.f32 %v922, %v854
  %v939 = vmul.f32 %v923, %v859
  %v940 = vmul.f32 %v924, %v862
  %v941 = vmul.f32 %v925, %v867
  %v942 = vmul.f32 %v926, %v870
  %v943 = vmul.f32 %v927, %v875
  %v944 = vmul.f32 %v928, %v878
  %v945 = vadd.f32 %v819, %v929
  %v946 = vadd.f32 %v822, %v930
  %v947 = vadd.f32 %v827, %v931
  %v948 = vadd.f32 %v830, %v932
  %v949 = vadd.f32 %v835, %v933
  %v950 = vadd.f32 %v838, %v934
  %v951 = vadd.f32 %v843, %v935
  %v952 = vadd.f32 %v846, %v936
  %v953 = vadd.f32 %v851, %v937
  %v954 = vadd.f32 %v854, %v938
  %v955 = vadd.f32 %v859, %v939
  %v956 = vadd.f32 %v862, %v940
  %v957 = vadd.f32 %v867, %v941
  %v958 = vadd.f32 %v870, %v942
  %v959 = vadd.f32 %v875, %v943
  %v960 = vadd.f32 %v878, %v944
  %v961 = vmul.f32 %v945, 0.7978846
  %v962 = vmul.f32 %v946, 0.7978846
  %v963 = vmul.f32 %v947, 0.7978846
  %v964 = vmul.f32 %v948, 0.7978846
  %v965 = vmul.f32 %v949, 0.7978846
  %v966 = vmul.f32 %v950, 0.7978846
  %v967 = vmul.f32 %v951, 0.7978846
  %v968 = vmul.f32 %v952, 0.7978846
  %v969 = vmul.f32 %v953, 0.7978846
  %v970 = vmul.f32 %v954, 0.7978846
  %v971 = vmul.f32 %v955, 0.7978846
  %v972 = vmul.f32 %v956, 0.7978846
  %v973 = vmul.f32 %v957, 0.7978846
  %v974 = vmul.f32 %v958, 0.7978846
  %v975 = vmul.f32 %v959, 0.7978846
  %v976 = vmul.f32 %v960, 0.7978846
  %v977 = vtanh.pop %v961
  %v978 = vtanh.pop %v962
  %v979 = vtanh.pop %v963
  %v980 = vtanh.pop %v964
  %v981 = vtanh.pop %v965
  %v982 = vtanh.pop %v966
  %v983 = vtanh.pop %v967
  %v984 = vtanh.pop %v968
  %v985 = vtanh.pop %v969
  %v986 = vtanh.pop %v970
  %v987 = vtanh.pop %v971
  %v988 = vtanh.pop %v972
  %v989 = vtanh.pop %v973
  %v990 = vtanh.pop %v974
  %v991 = vtanh.pop %v975
  %v992 = vtanh.pop %v976
  %v993 = vadd.f32 %v977, 1.0
  %v994 = vadd.f32 %v978, 1.0
  %v995 = vadd.f32 %v979, 1.0
  %v996 = vadd.f32 %v980, 1.0
  %v997 = vadd.f32 %v981, 1.0
  %v998 = vadd.f32 %v982, 1.0
  %v999 = vadd.f32 %v983, 1.0
  %v1000 = vadd.f32 %v984, 1.0
  %v1001 = vadd.f32 %v985, 1.0
  %v1002 = vadd.f32 %v986, 1.0
  %v1003 = vadd.f32 %v987, 1.0
  %v1004 = vadd.f32 %v988, 1.0
  %v1005 = vadd.f32 %v989, 1.0
  %v1006 = vadd.f32 %v990, 1.0
  %v1007 = vadd.f32 %v991, 1.0
  %v1008 = vadd.f32 %v992, 1.0
  %v1009 = vmul.f32 %v881, %v993
  %v1010 = vmul.f32 %v882, %v994
  %v1011 = vmul.f32 %v883, %v995
  %v1012 = vmul.f32 %v884, %v996
  %v1013 = vmul.f32 %v885, %v997
  %v1014 = vmul.f32 %v886, %v998
  %v1015 = vmul.f32 %v887, %v999
  %v1016 = vmul.f32 %v888, %v1000
  %v1017 = vmul.f32 %v889, %v1001
  %v1018 = vmul.f32 %v890, %v1002
  %v1019 = vmul.f32 %v891, %v1003
  %v1020 = vmul.f32 %v892, %v1004
  %v1021 = vmul.f32 %v893, %v1005
  %v1022 = vmul.f32 %v894, %v1006
  %v1023 = vmul.f32 %v895, %v1007
  %v1024 = vmul.f32 %v896, %v1008
  %v1025 = vpack.c.bf16 %v1010, %v1009
  %v1026 = vpack.c.bf16 %v1012, %v1011
  %v1027 = vpack.c.bf16 %v1014, %v1013
  %v1028 = vpack.c.bf16 %v1016, %v1015
  %v1029 = vpack.c.bf16 %v1018, %v1017
  %v1030 = vpack.c.bf16 %v1020, %v1019
  %v1031 = vpack.c.bf16 %v1022, %v1021
  %v1032 = vpack.c.bf16 %v1024, %v1023
  %v1041 = vunpack.c.l.b16 %v1025
  %v1042 = vunpack.c.h.b16 %v1025
  %v1043 = vunpack.c.l.b16 %v1026
  %v1044 = vunpack.c.h.b16 %v1026
  %v1045 = vunpack.c.l.b16 %v1027
  %v1046 = vunpack.c.h.b16 %v1027
  %v1047 = vunpack.c.l.b16 %v1028
  %v1048 = vunpack.c.h.b16 %v1028
  %v1049 = vunpack.c.l.b16 %v1029
  %v1050 = vunpack.c.h.b16 %v1029
  %v1051 = vunpack.c.l.b16 %v1030
  %v1052 = vunpack.c.h.b16 %v1030
  %v1053 = vunpack.c.l.b16 %v1031
  %v1054 = vunpack.c.h.b16 %v1031
  %v1055 = vunpack.c.l.b16 %v1032
  %v1056 = vunpack.c.h.b16 %v1032
  %v1057 = vpack.c.b16 %v1041, %v1041
  %v1058 = vpack.c.b16 %v1042, %v1042
  %v1059 = vpack.c.b16 %v1043, %v1043
  %v1060 = vpack.c.b16 %v1044, %v1044
  %v1061 = vpack.c.b16 %v1045, %v1045
  %v1062 = vpack.c.b16 %v1046, %v1046
  %v1063 = vpack.c.b16 %v1047, %v1047
  %v1064 = vpack.c.b16 %v1048, %v1048
  %v1065 = vpack.c.b16 %v1049, %v1049
  %v1066 = vpack.c.b16 %v1050, %v1050
  %v1067 = vpack.c.b16 %v1051, %v1051
  %v1068 = vpack.c.b16 %v1052, %v1052
  %v1069 = vpack.c.b16 %v1053, %v1053
  %v1070 = vpack.c.b16 %v1054, %v1054
  %v1071 = vpack.c.b16 %v1055, %v1055
  %v1072 = vpack.c.b16 %v1056, %v1056
  %vm1089 = vcmask 125952
  %1090 = vst.msk [vmem:[%s21] sm:$0xf] %vm1089, %v1057
  %1091 = vst.msk [vmem:[%s21 + $0x4] sm:$0xf] %vm1089, %v1058
  %1092 = vst.msk [vmem:[%s21 + $0x8] sm:$0xf] %vm1089, %v1059
  %1093 = vst.msk [vmem:[%s21 + $0xc] sm:$0xf] %vm1089, %v1060
  %1094 = vst.msk [vmem:[%s21 + $0x10] sm:$0xf] %vm1089, %v1061
  %1095 = vst.msk [vmem:[%s21 + $0x14] sm:$0xf] %vm1089, %v1062
  %1096 = vst.msk [vmem:[%s21 + $0x18] sm:$0xf] %vm1089, %v1063
  %1097 = vst.msk [vmem:[%s21 + $0x1c] sm:$0xf] %vm1089, %v1064
  %1098 = vst.msk [vmem:[%s21 + $0x20] sm:$0xf] %vm1089, %v1065
  %1099 = vst.msk [vmem:[%s21 + $0x24] sm:$0xf] %vm1089, %v1066
  %1100 = vst.msk [vmem:[%s21 + $0x28] sm:$0xf] %vm1089, %v1067
  %1101 = vst.msk [vmem:[%s21 + $0x2c] sm:$0xf] %vm1089, %v1068
  %1102 = vst.msk [vmem:[%s21 + $0x30] sm:$0xf] %vm1089, %v1069
  %1103 = vst.msk [vmem:[%s21 + $0x34] sm:$0xf] %vm1089, %v1070
  %1104 = vst.msk [vmem:[%s21 + $0x38] sm:$0xf] %vm1089, %v1071
  %1105 = vst.msk [vmem:[%s21 + $0x3c] sm:$0xf] %vm1089, %v1072
  %v1106 = vld [vmem:[%s6] sm:$0xf]
  %v1107 = vld [vmem:[%s6 + $0x4] sm:$0xf]
  %v1108 = vld [vmem:[%s6 + $0x8] sm:$0xf]
  %v1109 = vld [vmem:[%s6 + $0xc] sm:$0xf]
  %s1110 = scalar_lea.vmem %s6, 16
  %v1111 = vld [vmem:[%s1110] sm:$0xf]
  %v1112 = vld [vmem:[%s1110 + $0x4] sm:$0xf]
  %v1113 = vld [vmem:[%s1110 + $0x8] sm:$0xf]
  %v1114 = vld [vmem:[%s1110 + $0xc] sm:$0xf]
  %v1119 = vunpack.c.l.b16 %v1111
  %v1120 = vunpack.c.l.b16 %v1112
  %v1121 = vunpack.c.l.b16 %v1113
  %v1122 = vunpack.c.l.b16 %v1114
  %v1123 = vpack.c.b16 %v1120, %v1119
  %v1124 = vpack.c.b16 %v1122, %v1121
  %1127 = vmatprep.subr.bf16.mxu0 0
  %1128 = vmatpush1.bf16.msra.mxu0 %v1123
  %1129 = vmatprep.subr.bf16.mxu0 0
  %1130 = vmatpush1.bf16.msra.mxu0 %v1124
  %1131 = vmatprep.subr.bf16.mxu0 0
  %1132 = vmatpush1.bf16.msra.mxu0 0
  %1133 = vmatprep.subr.bf16.mxu0 0
  %1134 = vmatpush1.bf16.msra.mxu0 0
  %1135 = vmatprep.subr.bf16.mxu0 0
  %1136 = vmatpush1.bf16.msra.mxu0 0
  %1137 = vmatprep.subr.bf16.mxu0 0
  %1138 = vmatpush1.bf16.msra.mxu0 0
  %1139 = vmatprep.subr.bf16.mxu0 0
  %1140 = vmatpush1.bf16.msra.mxu0 0
  %1141 = vmatprep.subr.bf16.mxu0 0
  %1142 = vmatpush1.bf16.msra.mxu0 0
  %1143 = vmatprep.subr.bf16.mxu0 0
  %1144 = vmatpush1.bf16.msra.mxu0 0
  %1145 = vmatprep.subr.bf16.mxu0 0
  %1146 = vmatpush1.bf16.msra.mxu0 0
  %1147 = vmatprep.subr.bf16.mxu0 0
  %1148 = vmatpush1.bf16.msra.mxu0 0
  %1149 = vmatprep.subr.bf16.mxu0 0
  %1150 = vmatpush1.bf16.msra.mxu0 0
  %1151 = vmatprep.subr.bf16.mxu0 0
  %1152 = vmatpush1.bf16.msra.mxu0 0
  %1153 = vmatprep.subr.bf16.mxu0 0
  %1154 = vmatpush1.bf16.msra.mxu0 0
  %1155 = vmatprep.subr.bf16.mxu0 0
  %1156 = vmatpush1.bf16.msra.mxu0 0
  %1157 = vmatprep.subr.bf16.mxu0 0
  %1158 = vmatpush1.bf16.msra.mxu0 0
  %1159 = vmatprep.mubr.bf16.mxu0 0
  %1160 = vmatmul.mubr.bf16.gmra.mrb[0].mxu0 %v454
  %v1161 = vpop.f32.mrb[0].mxu0
  %v1162 = vadd.f32 0.0, %v1161
  %v1163 = vpop.f32.mrb[0].mxu0
  %v1164 = vpop.f32.mrb[0].mxu0
  %v1165 = vadd.f32 0.0, %v1164
  %v1166 = vpop.f32.mrb[0].mxu0
  %1167 = vmatprep.mubr.bf16.mxu0 0
  %1168 = vmatmul.mubr.bf16.gmra.mrb[0].mxu0 %v457
  %v1169 = vpop.f32.mrb[0].mxu0
  %v1170 = vadd.f32 0.0, %v1169
  %v1171 = vpop.f32.mrb[0].mxu0
  %v1172 = vpop.f32.mrb[0].mxu0
  %v1173 = vadd.f32 0.0, %v1172
  %v1174 = vpop.f32.mrb[0].mxu0
  %1175 = vdwg.mxu0
  %v1180 = vunpack.c.l.b16 %v1106
  %v1181 = vunpack.c.l.b16 %v1107
  %v1182 = vunpack.c.l.b16 %v1108
  %v1183 = vunpack.c.l.b16 %v1109
  %v1184 = vpack.c.b16 %v1181, %v1180
  %v1185 = vpack.c.b16 %v1183, %v1182
  %1188 = vmatprep.subr.bf16.mxu0 0
  %1189 = vmatpush1.bf16.msra.mxu0 %v1184
  %1190 = vmatprep.subr.bf16.mxu0 0
  %1191 = vmatpush1.bf16.msra.mxu0 %v1185
  %1192 = vmatprep.subr.bf16.mxu0 0
  %1193 = vmatpush1.bf16.msra.mxu0 0
  %1194 = vmatprep.subr.bf16.mxu0 0
  %1195 = vmatpush1.bf16.msra.mxu0 0
  %1196 = vmatprep.subr.bf16.mxu0 0
  %1197 = vmatpush1.bf16.msra.mxu0 0
  %1198 = vmatprep.subr.bf16.mxu0 0
  %1199 = vmatpush1.bf16.msra.mxu0 0
  %1200 = vmatprep.subr.bf16.mxu0 0
  %1201 = vmatpush1.bf16.msra.mxu0 0
  %1202 = vmatprep.subr.bf16.mxu0 0
  %1203 = vmatpush1.bf16.msra.mxu0 0
  %1204 = vmatprep.subr.bf16.mxu0 0
  %1205 = vmatpush1.bf16.msra.mxu0 0
  %1206 = vmatprep.subr.bf16.mxu0 0
  %1207 = vmatpush1.bf16.msra.mxu0 0
  %1208 = vmatprep.subr.bf16.mxu0 0
  %1209 = vmatpush1.bf16.msra.mxu0 0
  %1210 = vmatprep.subr.bf16.mxu0 0
  %1211 = vmatpush1.bf16.msra.mxu0 0
  %1212 = vmatprep.subr.bf16.mxu0 0
  %1213 = vmatpush1.bf16.msra.mxu0 0
  %1214 = vmatprep.subr.bf16.mxu0 0
  %1215 = vmatpush1.bf16.msra.mxu0 0
  %1216 = vmatprep.subr.bf16.mxu0 0
  %1217 = vmatpush1.bf16.msra.mxu0 0
  %1218 = vmatprep.subr.bf16.mxu0 0
  %1219 = vmatpush1.bf16.msra.mxu0 0
  %1220 = vmatprep.mubr.bf16.mxu0 0
  %1221 = vmatmul.mubr.bf16.gmra.mrb[0].mxu0 %v448
  %v1222 = vpop.f32.mrb[0].mxu0
  %v1223 = vadd.f32 %v1162, %v1222
  %v1224 = vpop.f32.mrb[0].mxu0
  %v1225 = vpop.f32.mrb[0].mxu0
  %v1226 = vadd.f32 %v1165, %v1225
  %v1227 = vpop.f32.mrb[0].mxu0
  %1228 = vmatprep.mubr.bf16.mxu0 0
  %1229 = vmatmul.mubr.bf16.gmra.mrb[0].mxu0 %v451
  %v1230 = vpop.f32.mrb[0].mxu0
  %v1231 = vadd.f32 %v1170, %v1230
  %v1232 = vpop.f32.mrb[0].mxu0
  %v1233 = vpop.f32.mrb[0].mxu0
  %v1234 = vadd.f32 %v1173, %v1233
  %v1235 = vpop.f32.mrb[0].mxu0
  %1236 = vdwg.mxu0
  %s1237 = scalar_lea.vmem %s6, 32
  %v1238 = vld [vmem:[%s1237] sm:$0xf]
  %v1239 = vld [vmem:[%s1237 + $0x4] sm:$0xf]
  %v1240 = vld [vmem:[%s1237 + $0x8] sm:$0xf]
  %v1241 = vld [vmem:[%s1237 + $0xc] sm:$0xf]
  %v1246 = vunpack.c.l.b16 %v1238
  %v1247 = vunpack.c.l.b16 %v1239
  %v1248 = vunpack.c.l.b16 %v1240
  %v1249 = vunpack.c.l.b16 %v1241
  %v1250 = vpack.c.b16 %v1247, %v1246
  %v1251 = vpack.c.b16 %v1249, %v1248
  %1254 = vmatprep.subr.bf16.mxu0 0
  %1255 = vmatpush1.bf16.msra.mxu0 %v1250
  %1256 = vmatprep.subr.bf16.mxu0 0
  %1257 = vmatpush1.bf16.msra.mxu0 %v1251
  %1258 = vmatprep.subr.bf16.mxu0 0
  %1259 = vmatpush1.bf16.msra.mxu0 0
  %1260 = vmatprep.subr.bf16.mxu0 0
  %1261 = vmatpush1.bf16.msra.mxu0 0
  %1262 = vmatprep.subr.bf16.mxu0 0
  %1263 = vmatpush1.bf16.msra.mxu0 0
  %1264 = vmatprep.subr.bf16.mxu0 0
  %1265 = vmatpush1.bf16.msra.mxu0 0
  %1266 = vmatprep.subr.bf16.mxu0 0
  %1267 = vmatpush1.bf16.msra.mxu0 0
  %1268 = vmatprep.subr.bf16.mxu0 0
  %1269 = vmatpush1.bf16.msra.mxu0 0
  %1270 = vmatprep.subr.bf16.mxu0 0
  %1271 = vmatpush1.bf16.msra.mxu0 0
  %1272 = vmatprep.subr.bf16.mxu0 0
  %1273 = vmatpush1.bf16.msra.mxu0 0
  %1274 = vmatprep.subr.bf16.mxu0 0
  %1275 = vmatpush1.bf16.msra.mxu0 0
  %1276 = vmatprep.subr.bf16.mxu0 0
  %1277 = vmatpush1.bf16.msra.mxu0 0
  %1278 = vmatprep.subr.bf16.mxu0 0
  %1279 = vmatpush1.bf16.msra.mxu0 0
  %1280 = vmatprep.subr.bf16.mxu0 0
  %1281 = vmatpush1.bf16.msra.mxu0 0
  %1282 = vmatprep.subr.bf16.mxu0 0
  %1283 = vmatpush1.bf16.msra.mxu0 0
  %1284 = vmatprep.subr.bf16.mxu0 0
  %1285 = vmatpush1.bf16.msra.mxu0 0
  %1286 = vmatprep.mubr.bf16.mxu0 0
  %1287 = vmatmul.mubr.bf16.gmra.mrb[0].mxu0 %v460
  %v1288 = vpop.f32.mrb[0].mxu0
  %v1289 = vadd.f32 0.0, %v1288
  %v1290 = vpop.f32.mrb[0].mxu0
  %v1291 = vpop.f32.mrb[0].mxu0
  %v1292 = vadd.f32 0.0, %v1291
  %v1293 = vpop.f32.mrb[0].mxu0
  %1294 = vmatprep.mubr.bf16.mxu0 0
  %1295 = vmatmul.mubr.bf16.gmra.mrb[0].mxu0 %v463
  %v1296 = vpop.f32.mrb[0].mxu0
  %v1297 = vadd.f32 0.0, %v1296
  %v1298 = vpop.f32.mrb[0].mxu0
  %v1299 = vpop.f32.mrb[0].mxu0
  %v1300 = vadd.f32 0.0, %v1299
  %v1301 = vpop.f32.mrb[0].mxu0
  %1302 = vdwg.mxu0
  %v1303 = vadd.f32 %v1223, %v1289
  %v1304 = vadd.f32 %v1226, %v1292
  %v1305 = vadd.f32 %v1231, %v1297
  %v1306 = vadd.f32 %v1234, %v1300
  %s1307 = scalar_lea.vmem %s6, 48
  %v1308 = vld [vmem:[%s1307] sm:$0xf]
  %v1309 = vld [vmem:[%s1307 + $0x4] sm:$0xf]
  %v1310 = vld [vmem:[%s1307 + $0x8] sm:$0xf]
  %v1311 = vld [vmem:[%s1307 + $0xc] sm:$0xf]
  %v1316 = vunpack.c.l.b16 %v1308
  %v1317 = vunpack.c.l.b16 %v1309
  %v1318 = vunpack.c.l.b16 %v1310
  %v1319 = vunpack.c.l.b16 %v1311
  %v1320 = vpack.c.b16 %v1317, %v1316
  %v1321 = vpack.c.b16 %v1319, %v1318
  %1324 = vmatprep.subr.bf16.mxu0 0
  %1325 = vmatpush1.bf16.msra.mxu0 %v1320
  %1326 = vmatprep.subr.bf16.mxu0 0
  %1327 = vmatpush1.bf16.msra.mxu0 %v1321
  %1328 = vmatprep.subr.bf16.mxu0 0
  %1329 = vmatpush1.bf16.msra.mxu0 0
  %1330 = vmatprep.subr.bf16.mxu0 0
  %1331 = vmatpush1.bf16.msra.mxu0 0
  %1332 = vmatprep.subr.bf16.mxu0 0
  %1333 = vmatpush1.bf16.msra.mxu0 0
  %1334 = vmatprep.subr.bf16.mxu0 0
  %1335 = vmatpush1.bf16.msra.mxu0 0
  %1336 = vmatprep.subr.bf16.mxu0 0
  %1337 = vmatpush1.bf16.msra.mxu0 0
  %1338 = vmatprep.subr.bf16.mxu0 0
  %1339 = vmatpush1.bf16.msra.mxu0 0
  %1340 = vmatprep.subr.bf16.mxu0 0
  %1341 = vmatpush1.bf16.msra.mxu0 0
  %1342 = vmatprep.subr.bf16.mxu0 0
  %1343 = vmatpush1.bf16.msra.mxu0 0
  %1344 = vmatprep.subr.bf16.mxu0 0
  %1345 = vmatpush1.bf16.msra.mxu0 0
  %1346 = vmatprep.subr.bf16.mxu0 0
  %1347 = vmatpush1.bf16.msra.mxu0 0
  %1348 = vmatprep.subr.bf16.mxu0 0
  %1349 = vmatpush1.bf16.msra.mxu0 0
  %1350 = vmatprep.subr.bf16.mxu0 0
  %1351 = vmatpush1.bf16.msra.mxu0 0
  %1352 = vmatprep.subr.bf16.mxu0 0
  %1353 = vmatpush1.bf16.msra.mxu0 0
  %1354 = vmatprep.subr.bf16.mxu0 0
  %1355 = vmatpush1.bf16.msra.mxu0 0
  %1356 = vmatprep.mubr.bf16.mxu0 0
  %1357 = vmatmul.mubr.bf16.gmra.mrb[0].mxu0 %v466
  %v1358 = vpop.f32.mrb[0].mxu0
  %v1359 = vadd.f32 0.0, %v1358
  %v1360 = vpop.f32.mrb[0].mxu0
  %v1361 = vpop.f32.mrb[0].mxu0
  %v1362 = vadd.f32 0.0, %v1361
  %v1363 = vpop.f32.mrb[0].mxu0
  %1364 = vmatprep.mubr.bf16.mxu0 0
  %1365 = vmatmul.mubr.bf16.gmra.mrb[0].mxu0 %v469
  %v1366 = vpop.f32.mrb[0].mxu0
  %v1367 = vadd.f32 0.0, %v1366
  %v1368 = vpop.f32.mrb[0].mxu0
  %v1369 = vpop.f32.mrb[0].mxu0
  %v1370 = vadd.f32 0.0, %v1369
  %v1371 = vpop.f32.mrb[0].mxu0
  %1372 = vdwg.mxu0
  %v1373 = vadd.f32 %v1303, %v1359
  %v1374 = vadd.f32 %v1304, %v1362
  %v1375 = vadd.f32 %v1305, %v1367
  %v1376 = vadd.f32 %v1306, %v1370
  %v1377 = vmul.f32 %v1373, 0.5
  %v1378 = vmul.f32 %v1374, 0.5
  %v1379 = vmul.f32 %v1375, 0.5
  %v1380 = vmul.f32 %v1376, 0.5
  %v1381 = vmul.f32 %v1373, 0.044715
  %v1382 = vmul.f32 %v1374, 0.044715
  %v1383 = vmul.f32 %v1375, 0.044715
  %v1384 = vmul.f32 %v1376, 0.044715
  %v1385 = vmul.f32 %v1381, %v1373
  %v1386 = vmul.f32 %v1382, %v1374
  %v1387 = vmul.f32 %v1383, %v1375
  %v1388 = vmul.f32 %v1384, %v1376
  %v1389 = vmul.f32 %v1385, %v1373
  %v1390 = vmul.f32 %v1386, %v1374
  %v1391 = vmul.f32 %v1387, %v1375
  %v1392 = vmul.f32 %v1388, %v1376
  %v1393 = vadd.f32 %v1373, %v1389
  %v1394 = vadd.f32 %v1374, %v1390
  %v1395 = vadd.f32 %v1375, %v1391
  %v1396 = vadd.f32 %v1376, %v1392
  %v1397 = vmul.f32 %v1393, 0.7978846
  %v1398 = vmul.f32 %v1394, 0.7978846
  %v1399 = vmul.f32 %v1395, 0.7978846
  %v1400 = vmul.f32 %v1396, 0.7978846
  %v1401 = vtanh.pop %v1397
  %v1402 = vtanh.pop %v1398
  %v1403 = vtanh.pop %v1399
  %v1404 = vtanh.pop %v1400
  %v1405 = vadd.f32 %v1401, 1.0
  %v1406 = vadd.f32 %v1402, 1.0
  %v1407 = vadd.f32 %v1403, 1.0
  %v1408 = vadd.f32 %v1404, 1.0
  %v1409 = vmul.f32 %v1377, %v1405
  %v1410 = vmul.f32 %v1378, %v1406
  %v1411 = vmul.f32 %v1379, %v1407
  %v1412 = vmul.f32 %v1380, %v1408
  %v1413 = vpack.c.bf16 %v1410, %v1409
  %v1414 = vpack.c.bf16 %v1412, %v1411
  %v1415 = vld [vmem:[%s7] sm:$0xf]
  %v1416 = vld [vmem:[%s7 + $0x4] sm:$0xf]
  %v1417 = vld [vmem:[%s7 + $0x8] sm:$0xf]
  %v1418 = vld [vmem:[%s7 + $0xc] sm:$0xf]
  %v1419 = vld [vmem:[%s8] sm:$0xff]
  %v1420 = vld [vmem:[%s8 + $0x8] sm:$0xff]
  %v1421 = vld [vmem:[%s8 + $0x10] sm:$0xff]
  %v1422 = vld [vmem:[%s8 + $0x18] sm:$0xff]
  %v1427 = vunpack.c.l.b16 %v1415
  %v1428 = vunpack.c.l.b16 %v1416
  %v1429 = vunpack.c.l.b16 %v1417
  %v1430 = vunpack.c.l.b16 %v1418
  %v1431 = vpack.c.b16 %v1428, %v1427
  %v1432 = vpack.c.b16 %v1430, %v1429
  %v1436 = vsel %vm446, %v1413, 0
  %v1439 = vsel %vm446, %v1414, 0
  %1441 = vmatprep.subr.bf16.mxu0 0
  %1442 = vmatpush1.bf16.msra.mxu0 %v1431
  %1443 = vmatprep.subr.bf16.mxu0 0
  %1444 = vmatpush1.bf16.msra.mxu0 %v1432
  %1445 = vmatprep.subr.bf16.mxu0 0
  %1446 = vmatpush1.bf16.msra.mxu0 0
  %1447 = vmatprep.subr.bf16.mxu0 0
  %1448 = vmatpush1.bf16.msra.mxu0 0
  %1449 = vmatprep.subr.bf16.mxu0 0
  %1450 = vmatpush1.bf16.msra.mxu0 0
  %1451 = vmatprep.subr.bf16.mxu0 0
  %1452 = vmatpush1.bf16.msra.mxu0 0
  %1453 = vmatprep.subr.bf16.mxu0 0
  %1454 = vmatpush1.bf16.msra.mxu0 0
  %1455 = vmatprep.subr.bf16.mxu0 0
  %1456 = vmatpush1.bf16.msra.mxu0 0
  %1457 = vmatprep.subr.bf16.mxu0 0
  %1458 = vmatpush1.bf16.msra.mxu0 0
  %1459 = vmatprep.subr.bf16.mxu0 0
  %1460 = vmatpush1.bf16.msra.mxu0 0
  %1461 = vmatprep.subr.bf16.mxu0 0
  %1462 = vmatpush1.bf16.msra.mxu0 0
  %1463 = vmatprep.subr.bf16.mxu0 0
  %1464 = vmatpush1.bf16.msra.mxu0 0
  %1465 = vmatprep.subr.bf16.mxu0 0
  %1466 = vmatpush1.bf16.msra.mxu0 0
  %1467 = vmatprep.subr.bf16.mxu0 0
  %1468 = vmatpush1.bf16.msra.mxu0 0
  %1469 = vmatprep.subr.bf16.mxu0 0
  %1470 = vmatpush1.bf16.msra.mxu0 0
  %1471 = vmatprep.subr.bf16.mxu0 0
  %1472 = vmatpush1.bf16.msra.mxu0 0
  %1473 = vmatprep.mubr.bf16.mxu0 0
  %1474 = vmatmul.mubr.bf16.gmra.mrb[0].mxu0 %v1436
  %v1475 = vpop.f32.mrb[0].mxu0
  %v1476 = vadd.f32 %v1419, %v1475
  %v1477 = vpop.f32.mrb[0].mxu0
  %v1478 = vpop.f32.mrb[0].mxu0
  %v1479 = vadd.f32 %v1420, %v1478
  %v1480 = vpop.f32.mrb[0].mxu0
  %1481 = vmatprep.mubr.bf16.mxu0 0
  %1482 = vmatmul.mubr.bf16.gmra.mrb[0].mxu0 %v1439
  %v1483 = vpop.f32.mrb[0].mxu0
  %v1484 = vadd.f32 %v1421, %v1483
  %v1485 = vpop.f32.mrb[0].mxu0
  %v1486 = vpop.f32.mrb[0].mxu0
  %v1487 = vadd.f32 %v1422, %v1486
  %v1488 = vpop.f32.mrb[0].mxu0
  %1489 = vdwg.mxu0
  %v1490 = vmul.f32 %v1476, 0.5
  %v1491 = vmul.f32 %v1479, 0.5
  %v1492 = vmul.f32 %v1484, 0.5
  %v1493 = vmul.f32 %v1487, 0.5
  %v1494 = vmul.f32 %v1476, 0.044715
  %v1495 = vmul.f32 %v1479, 0.044715
  %v1496 = vmul.f32 %v1484, 0.044715
  %v1497 = vmul.f32 %v1487, 0.044715
  %v1498 = vmul.f32 %v1494, %v1476
  %v1499 = vmul.f32 %v1495, %v1479
  %v1500 = vmul.f32 %v1496, %v1484
  %v1501 = vmul.f32 %v1497, %v1487
  %v1502 = vmul.f32 %v1498, %v1476
  %v1503 = vmul.f32 %v1499, %v1479
  %v1504 = vmul.f32 %v1500, %v1484
  %v1505 = vmul.f32 %v1501, %v1487
  %v1506 = vadd.f32 %v1476, %v1502
  %v1507 = vadd.f32 %v1479, %v1503
  %v1508 = vadd.f32 %v1484, %v1504
  %v1509 = vadd.f32 %v1487, %v1505
  %v1510 = vmul.f32 %v1506, 0.7978846
  %v1511 = vmul.f32 %v1507, 0.7978846
  %v1512 = vmul.f32 %v1508, 0.7978846
  %v1513 = vmul.f32 %v1509, 0.7978846
  %v1514 = vtanh.pop %v1510
  %v1515 = vtanh.pop %v1511
  %v1516 = vtanh.pop %v1512
  %v1517 = vtanh.pop %v1513
  %v1518 = vadd.f32 %v1514, 1.0
  %v1519 = vadd.f32 %v1515, 1.0
  %v1520 = vadd.f32 %v1516, 1.0
  %v1521 = vadd.f32 %v1517, 1.0
  %v1522 = vmul.f32 %v1490, %v1518
  %v1523 = vmul.f32 %v1491, %v1519
  %v1524 = vmul.f32 %v1492, %v1520
  %v1525 = vmul.f32 %v1493, %v1521
  %v1526 = vpack.c.bf16 %v1523, %v1522
  %v1527 = vpack.c.bf16 %v1525, %v1524
  %v1528 = vld [vmem:[%s9] sm:$0xf]
  %v1529 = vld [vmem:[%s9 + $0x4] sm:$0xf]
  %v1530 = vld [vmem:[%s9 + $0x8] sm:$0xf]
  %v1531 = vld [vmem:[%s9 + $0xc] sm:$0xf]
  %v1532 = vld [vmem:[%s9 + $0x10] sm:$0xf]
  %v1533 = vld [vmem:[%s9 + $0x14] sm:$0xf]
  %v1534 = vld [vmem:[%s9 + $0x18] sm:$0xf]
  %v1535 = vld [vmem:[%s9 + $0x1c] sm:$0xf]
  %v1536 = vld [vmem:[%s10] sm:$0x1]
  %v1538 = vlaneseq
  %v1539 = vshrl.u32 %v1538, 7
  %v1540 = vsub.s32 0, %v1539
  %v1541 = vrot.slane %v1536, %v1540
  %v1551 = vunpack.c.l.b16 %v1528
  %v1552 = vunpack.c.l.b16 %v1529
  %v1553 = vunpack.c.l.b16 %v1530
  %v1554 = vunpack.c.l.b16 %v1531
  %v1555 = vunpack.c.l.b16 %v1532
  %v1556 = vunpack.c.l.b16 %v1533
  %v1557 = vunpack.c.l.b16 %v1534
  %v1558 = vunpack.c.l.b16 %v1535
  %v1559 = vpack.c.b16 %v1552, %v1551
  %v1560 = vpack.c.b16 %v1554, %v1553
  %v1561 = vpack.c.b16 %v1556, %v1555
  %v1562 = vpack.c.b16 %v1558, %v1557
  %v1568 = vsel %vm759, %v1526, 0
  %v1571 = vsel %vm759, %v1527, 0
  %1573 = vmatprep.subr.bf16.mxu0 0
  %1574 = vmatpush1.bf16.msra.mxu0 %v1559
  %1575 = vmatprep.subr.bf16.mxu0 0
  %1576 = vmatpush1.bf16.msra.mxu0 %v1560
  %1577 = vmatprep.subr.bf16.mxu0 0
  %1578 = vmatpush1.bf16.msra.mxu0 %v1561
  %1579 = vmatprep.subr.bf16.mxu0 0
  %1580 = vmatpush1.bf16.msra.mxu0 %v1562
  %1581 = vmatprep.subr.bf16.mxu0 0
  %1582 = vmatpush1.bf16.msra.mxu0 0
  %1583 = vmatprep.subr.bf16.mxu0 0
  %1584 = vmatpush1.bf16.msra.mxu0 0
  %1585 = vmatprep.subr.bf16.mxu0 0
  %1586 = vmatpush1.bf16.msra.mxu0 0
  %1587 = vmatprep.subr.bf16.mxu0 0
  %1588 = vmatpush1.bf16.msra.mxu0 0
  %1589 = vmatprep.subr.bf16.mxu0 0
  %1590 = vmatpush1.bf16.msra.mxu0 0
  %1591 = vmatprep.subr.bf16.mxu0 0
  %1592 = vmatpush1.bf16.msra.mxu0 0
  %1593 = vmatprep.subr.bf16.mxu0 0
  %1594 = vmatpush1.bf16.msra.mxu0 0
  %1595 = vmatprep.subr.bf16.mxu0 0
  %1596 = vmatpush1.bf16.msra.mxu0 0
  %1597 = vmatprep.subr.bf16.mxu0 0
  %1598 = vmatpush1.bf16.msra.mxu0 0
  %1599 = vmatprep.subr.bf16.mxu0 0
  %1600 = vmatpush1.bf16.msra.mxu0 0
  %1601 = vmatprep.subr.bf16.mxu0 0
  %1602 = vmatpush1.bf16.msra.mxu0 0
  %1603 = vmatprep.subr.bf16.mxu0 0
  %1604 = vmatpush1.bf16.msra.mxu0 0
  %1605 = vmatprep.mubr.bf16.mxu0 0
  %1606 = vmatmul.mubr.bf16.gmra.mrb[0].mxu0 %v1568
  %v1607 = vpop.f32.mrb[0].mxu0
  %v1608 = vadd.f32 %v1541, %v1607
  %v1609 = vpop.f32.mrb[0].mxu0
  %v1610 = vpop.f32.mrb[0].mxu0
  %v1611 = vadd.f32 %v1541, %v1610
  %v1612 = vpop.f32.mrb[0].mxu0
  %1613 = vmatprep.mubr.bf16.mxu0 0
  %1614 = vmatmul.mubr.bf16.gmra.mrb[0].mxu0 %v1571
  %v1615 = vpop.f32.mrb[0].mxu0
  %v1616 = vadd.f32 %v1541, %v1615
  %v1617 = vpop.f32.mrb[0].mxu0
  %v1618 = vpop.f32.mrb[0].mxu0
  %v1619 = vadd.f32 %v1541, %v1618
  %v1620 = vpop.f32.mrb[0].mxu0
  %1621 = vdwg.mxu0
  %v1622 = vmul.f32 %v1608, 0.5
  %v1623 = vmul.f32 %v1611, 0.5
  %v1624 = vmul.f32 %v1616, 0.5
  %v1625 = vmul.f32 %v1619, 0.5
  %v1626 = vmul.f32 %v1608, 0.044715
  %v1627 = vmul.f32 %v1611, 0.044715
  %v1628 = vmul.f32 %v1616, 0.044715
  %v1629 = vmul.f32 %v1619, 0.044715
  %v1630 = vmul.f32 %v1626, %v1608
  %v1631 = vmul.f32 %v1627, %v1611
  %v1632 = vmul.f32 %v1628, %v1616
  %v1633 = vmul.f32 %v1629, %v1619
  %v1634 = vmul.f32 %v1630, %v1608
  %v1635 = vmul.f32 %v1631, %v1611
  %v1636 = vmul.f32 %v1632, %v1616
  %v1637 = vmul.f32 %v1633, %v1619
  %v1638 = vadd.f32 %v1608, %v1634
  %v1639 = vadd.f32 %v1611, %v1635
  %v1640 = vadd.f32 %v1616, %v1636
  %v1641 = vadd.f32 %v1619, %v1637
  %v1642 = vmul.f32 %v1638, 0.7978846
  %v1643 = vmul.f32 %v1639, 0.7978846
  %v1644 = vmul.f32 %v1640, 0.7978846
  %v1645 = vmul.f32 %v1641, 0.7978846
  %v1646 = vtanh.pop %v1642
  %v1647 = vtanh.pop %v1643
  %v1648 = vtanh.pop %v1644
  %v1649 = vtanh.pop %v1645
  %v1650 = vadd.f32 %v1646, 1.0
  %v1651 = vadd.f32 %v1647, 1.0
  %v1652 = vadd.f32 %v1648, 1.0
  %v1653 = vadd.f32 %v1649, 1.0
  %v1654 = vmul.f32 %v1622, %v1650
  %v1655 = vmul.f32 %v1623, %v1651
  %v1656 = vmul.f32 %v1624, %v1652
  %v1657 = vmul.f32 %v1625, %v1653
  %v1658 = vpack.c.bf16 %v1655, %v1654
  %v1659 = vpack.c.bf16 %v1657, %v1656
  %v1662 = vunpack.c.l.b16 %v1658
  %v1663 = vunpack.c.h.b16 %v1658
  %v1664 = vunpack.c.l.b16 %v1659
  %v1665 = vunpack.c.h.b16 %v1659
  %v1666 = vpack.c.b16 %v1662, %v1662
  %v1667 = vpack.c.b16 %v1663, %v1663
  %v1668 = vpack.c.b16 %v1664, %v1664
  %v1669 = vpack.c.b16 %v1665, %v1665
  %1674 = vst.msk [vmem:[%s22] sm:$0xf] %vm1089, %v1666
  %1675 = vst.msk [vmem:[%s22 + $0x4] sm:$0xf] %vm1089, %v1667
  %1676 = vst.msk [vmem:[%s22 + $0x8] sm:$0xf] %vm1089, %v1668
  %1677 = vst.msk [vmem:[%s22 + $0xc] sm:$0xf] %vm1089, %v1669
  %v1678 = vld [vmem:[%s11] sm:$0xf]
  %v1679 = vld [vmem:[%s11 + $0x4] sm:$0xf]
  %v1680 = vld [vmem:[%s11 + $0x8] sm:$0xf]
  %v1681 = vld [vmem:[%s11 + $0xc] sm:$0xf]
  %s1682 = scalar_lea.vmem %s11, 16
  %v1683 = vld [vmem:[%s1682] sm:$0xf]
  %v1684 = vld [vmem:[%s1682 + $0x4] sm:$0xf]
  %v1685 = vld [vmem:[%s1682 + $0x8] sm:$0xf]
  %v1686 = vld [vmem:[%s1682 + $0xc] sm:$0xf]
  %v1688 = vrot.slane %v1413, 4
  %v1693 = vunpack.c.l.b16 %v1683
  %v1694 = vunpack.c.l.b16 %v1684
  %v1695 = vunpack.c.l.b16 %v1685
  %v1696 = vunpack.c.l.b16 %v1686
  %v1697 = vpack.c.b16 %v1694, %v1693
  %v1698 = vpack.c.b16 %v1696, %v1695
  %v1702 = vsel %vm446, %v1688, 0
  %1704 = vmatprep.subr.bf16.mxu0 0
  %1705 = vmatpush1.bf16.msra.mxu0 %v1697
  %1706 = vmatprep.subr.bf16.mxu0 0
  %1707 = vmatpush1.bf16.msra.mxu0 %v1698
  %1708 = vmatprep.subr.bf16.mxu0 0
  %1709 = vmatpush1.bf16.msra.mxu0 0
  %1710 = vmatprep.subr.bf16.mxu0 0
  %1711 = vmatpush1.bf16.msra.mxu0 0
  %1712 = vmatprep.subr.bf16.mxu0 0
  %1713 = vmatpush1.bf16.msra.mxu0 0
  %1714 = vmatprep.subr.bf16.mxu0 0
  %1715 = vmatpush1.bf16.msra.mxu0 0
  %1716 = vmatprep.subr.bf16.mxu0 0
  %1717 = vmatpush1.bf16.msra.mxu0 0
  %1718 = vmatprep.subr.bf16.mxu0 0
  %1719 = vmatpush1.bf16.msra.mxu0 0
  %1720 = vmatprep.subr.bf16.mxu0 0
  %1721 = vmatpush1.bf16.msra.mxu0 0
  %1722 = vmatprep.subr.bf16.mxu0 0
  %1723 = vmatpush1.bf16.msra.mxu0 0
  %1724 = vmatprep.subr.bf16.mxu0 0
  %1725 = vmatpush1.bf16.msra.mxu0 0
  %1726 = vmatprep.subr.bf16.mxu0 0
  %1727 = vmatpush1.bf16.msra.mxu0 0
  %1728 = vmatprep.subr.bf16.mxu0 0
  %1729 = vmatpush1.bf16.msra.mxu0 0
  %1730 = vmatprep.subr.bf16.mxu0 0
  %1731 = vmatpush1.bf16.msra.mxu0 0
  %1732 = vmatprep.subr.bf16.mxu0 0
  %1733 = vmatpush1.bf16.msra.mxu0 0
  %1734 = vmatprep.subr.bf16.mxu0 0
  %1735 = vmatpush1.bf16.msra.mxu0 0
  %1736 = vmatprep.mubr.bf16.mxu0 0
  %1737 = vmatmul.mubr.bf16.gmra.mrb[0].mxu0 %v1702
  %v1738 = vpop.f32.mrb[0].mxu0
  %v1739 = vadd.f32 0.0, %v1738
  %v1740 = vpop.f32.mrb[0].mxu0
  %v1741 = vpop.f32.mrb[0].mxu0
  %v1742 = vpop.f32.mrb[0].mxu0
  %1743 = vdwg.mxu0
  %v1748 = vunpack.c.l.b16 %v1678
  %v1749 = vunpack.c.l.b16 %v1679
  %v1750 = vunpack.c.l.b16 %v1680
  %v1751 = vunpack.c.l.b16 %v1681
  %v1752 = vpack.c.b16 %v1749, %v1748
  %v1753 = vpack.c.b16 %v1751, %v1750
  %1756 = vmatprep.subr.bf16.mxu0 0
  %1757 = vmatpush1.bf16.msra.mxu0 %v1752
  %1758 = vmatprep.subr.bf16.mxu0 0
  %1759 = vmatpush1.bf16.msra.mxu0 %v1753
  %1760 = vmatprep.subr.bf16.mxu0 0
  %1761 = vmatpush1.bf16.msra.mxu0 0
  %1762 = vmatprep.subr.bf16.mxu0 0
  %1763 = vmatpush1.bf16.msra.mxu0 0
  %1764 = vmatprep.subr.bf16.mxu0 0
  %1765 = vmatpush1.bf16.msra.mxu0 0
  %1766 = vmatprep.subr.bf16.mxu0 0
  %1767 = vmatpush1.bf16.msra.mxu0 0
  %1768 = vmatprep.subr.bf16.mxu0 0
  %1769 = vmatpush1.bf16.msra.mxu0 0
  %1770 = vmatprep.subr.bf16.mxu0 0
  %1771 = vmatpush1.bf16.msra.mxu0 0
  %1772 = vmatprep.subr.bf16.mxu0 0
  %1773 = vmatpush1.bf16.msra.mxu0 0
  %1774 = vmatprep.subr.bf16.mxu0 0
  %1775 = vmatpush1.bf16.msra.mxu0 0
  %1776 = vmatprep.subr.bf16.mxu0 0
  %1777 = vmatpush1.bf16.msra.mxu0 0
  %1778 = vmatprep.subr.bf16.mxu0 0
  %1779 = vmatpush1.bf16.msra.mxu0 0
  %1780 = vmatprep.subr.bf16.mxu0 0
  %1781 = vmatpush1.bf16.msra.mxu0 0
  %1782 = vmatprep.subr.bf16.mxu0 0
  %1783 = vmatpush1.bf16.msra.mxu0 0
  %1784 = vmatprep.subr.bf16.mxu0 0
  %1785 = vmatpush1.bf16.msra.mxu0 0
  %1786 = vmatprep.subr.bf16.mxu0 0
  %1787 = vmatpush1.bf16.msra.mxu0 0
  %1788 = vmatprep.mubr.bf16.mxu0 0
  %1789 = vmatmul.mubr.bf16.gmra.mrb[0].mxu0 %v1436
  %v1790 = vpop.f32.mrb[0].mxu0
  %v1791 = vadd.f32 %v1739, %v1790
  %v1792 = vpop.f32.mrb[0].mxu0
  %v1793 = vpop.f32.mrb[0].mxu0
  %v1794 = vpop.f32.mrb[0].mxu0
  %1795 = vdwg.mxu0
  %s1796 = scalar_lea.vmem %s11, 32
  %v1797 = vld [vmem:[%s1796] sm:$0xf]
  %v1798 = vld [vmem:[%s1796 + $0x4] sm:$0xf]
  %v1799 = vld [vmem:[%s1796 + $0x8] sm:$0xf]
  %v1800 = vld [vmem:[%s1796 + $0xc] sm:$0xf]
  %v1805 = vunpack.c.l.b16 %v1797
  %v1806 = vunpack.c.l.b16 %v1798
  %v1807 = vunpack.c.l.b16 %v1799
  %v1808 = vunpack.c.l.b16 %v1800
  %v1809 = vpack.c.b16 %v1806, %v1805
  %v1810 = vpack.c.b16 %v1808, %v1807
  %1813 = vmatprep.subr.bf16.mxu0 0
  %1814 = vmatpush1.bf16.msra.mxu0 %v1809
  %1815 = vmatprep.subr.bf16.mxu0 0
  %1816 = vmatpush1.bf16.msra.mxu0 %v1810
  %1817 = vmatprep.subr.bf16.mxu0 0
  %1818 = vmatpush1.bf16.msra.mxu0 0
  %1819 = vmatprep.subr.bf16.mxu0 0
  %1820 = vmatpush1.bf16.msra.mxu0 0
  %1821 = vmatprep.subr.bf16.mxu0 0
  %1822 = vmatpush1.bf16.msra.mxu0 0
  %1823 = vmatprep.subr.bf16.mxu0 0
  %1824 = vmatpush1.bf16.msra.mxu0 0
  %1825 = vmatprep.subr.bf16.mxu0 0
  %1826 = vmatpush1.bf16.msra.mxu0 0
  %1827 = vmatprep.subr.bf16.mxu0 0
  %1828 = vmatpush1.bf16.msra.mxu0 0
  %1829 = vmatprep.subr.bf16.mxu0 0
  %1830 = vmatpush1.bf16.msra.mxu0 0
  %1831 = vmatprep.subr.bf16.mxu0 0
  %1832 = vmatpush1.bf16.msra.mxu0 0
  %1833 = vmatprep.subr.bf16.mxu0 0
  %1834 = vmatpush1.bf16.msra.mxu0 0
  %1835 = vmatprep.subr.bf16.mxu0 0
  %1836 = vmatpush1.bf16.msra.mxu0 0
  %1837 = vmatprep.subr.bf16.mxu0 0
  %1838 = vmatpush1.bf16.msra.mxu0 0
  %1839 = vmatprep.subr.bf16.mxu0 0
  %1840 = vmatpush1.bf16.msra.mxu0 0
  %1841 = vmatprep.subr.bf16.mxu0 0
  %1842 = vmatpush1.bf16.msra.mxu0 0
  %1843 = vmatprep.subr.bf16.mxu0 0
  %1844 = vmatpush1.bf16.msra.mxu0 0
  %1845 = vmatprep.mubr.bf16.mxu0 0
  %1846 = vmatmul.mubr.bf16.gmra.mrb[0].mxu0 %v1439
  %v1847 = vpop.f32.mrb[0].mxu0
  %v1848 = vadd.f32 0.0, %v1847
  %v1849 = vpop.f32.mrb[0].mxu0
  %v1850 = vpop.f32.mrb[0].mxu0
  %v1851 = vpop.f32.mrb[0].mxu0
  %1852 = vdwg.mxu0
  %v1853 = vadd.f32 %v1791, %v1848
  %s1854 = scalar_lea.vmem %s11, 48
  %v1855 = vld [vmem:[%s1854] sm:$0xf]
  %v1856 = vld [vmem:[%s1854 + $0x4] sm:$0xf]
  %v1857 = vld [vmem:[%s1854 + $0x8] sm:$0xf]
  %v1858 = vld [vmem:[%s1854 + $0xc] sm:$0xf]
  %v1860 = vrot.slane %v1414, 4
  %v1865 = vunpack.c.l.b16 %v1855
  %v1866 = vunpack.c.l.b16 %v1856
  %v1867 = vunpack.c.l.b16 %v1857
  %v1868 = vunpack.c.l.b16 %v1858
  %v1869 = vpack.c.b16 %v1866, %v1865
  %v1870 = vpack.c.b16 %v1868, %v1867
  %v1874 = vsel %vm446, %v1860, 0
  %1876 = vmatprep.subr.bf16.mxu0 0
  %1877 = vmatpush1.bf16.msra.mxu0 %v1869
  %1878 = vmatprep.subr.bf16.mxu0 0
  %1879 = vmatpush1.bf16.msra.mxu0 %v1870
  %1880 = vmatprep.subr.bf16.mxu0 0
  %1881 = vmatpush1.bf16.msra.mxu0 0
  %1882 = vmatprep.subr.bf16.mxu0 0
  %1883 = vmatpush1.bf16.msra.mxu0 0
  %1884 = vmatprep.subr.bf16.mxu0 0
  %1885 = vmatpush1.bf16.msra.mxu0 0
  %1886 = vmatprep.subr.bf16.mxu0 0
  %1887 = vmatpush1.bf16.msra.mxu0 0
  %1888 = vmatprep.subr.bf16.mxu0 0
  %1889 = vmatpush1.bf16.msra.mxu0 0
  %1890 = vmatprep.subr.bf16.mxu0 0
  %1891 = vmatpush1.bf16.msra.mxu0 0
  %1892 = vmatprep.subr.bf16.mxu0 0
  %1893 = vmatpush1.bf16.msra.mxu0 0
  %1894 = vmatprep.subr.bf16.mxu0 0
  %1895 = vmatpush1.bf16.msra.mxu0 0
  %1896 = vmatprep.subr.bf16.mxu0 0
  %1897 = vmatpush1.bf16.msra.mxu0 0
  %1898 = vmatprep.subr.bf16.mxu0 0
  %1899 = vmatpush1.bf16.msra.mxu0 0
  %1900 = vmatprep.subr.bf16.mxu0 0
  %1901 = vmatpush1.bf16.msra.mxu0 0
  %1902 = vmatprep.subr.bf16.mxu0 0
  %1903 = vmatpush1.bf16.msra.mxu0 0
  %1904 = vmatprep.subr.bf16.mxu0 0
  %1905 = vmatpush1.bf16.msra.mxu0 0
  %1906 = vmatprep.subr.bf16.mxu0 0
  %1907 = vmatpush1.bf16.msra.mxu0 0
  %1908 = vmatprep.mubr.bf16.mxu0 0
  %1909 = vmatmul.mubr.bf16.gmra.mrb[0].mxu0 %v1874
  %v1910 = vpop.f32.mrb[0].mxu0
  %v1911 = vadd.f32 0.0, %v1910
  %v1912 = vpop.f32.mrb[0].mxu0
  %v1913 = vpop.f32.mrb[0].mxu0
  %v1914 = vpop.f32.mrb[0].mxu0
  %1915 = vdwg.mxu0
  %v1916 = vadd.f32 %v1853, %v1911
  %v1917 = vmul.f32 %v1916, 0.5
  %v1918 = vmul.f32 %v1916, 0.044715
  %v1919 = vmul.f32 %v1918, %v1916
  %v1920 = vmul.f32 %v1919, %v1916
  %v1921 = vadd.f32 %v1916, %v1920
  %v1922 = vmul.f32 %v1921, 0.7978846
  %v1923 = vtanh.pop %v1922
  %v1924 = vadd.f32 %v1923, 1.0
  %v1925 = vmul.f32 %v1917, %v1924
  %v1926 = vpack.c.bf16 %v1925, %v1925
  %v1927 = vld [vmem:[%s12] sm:$0xf]
  %v1928 = vld [vmem:[%s12 + $0x4] sm:$0xf]
  %v1929 = vld [vmem:[%s12 + $0x8] sm:$0xf]
  %v1930 = vld [vmem:[%s12 + $0xc] sm:$0xf]
  %v1931 = vld [vmem:[%s12 + $0x10] sm:$0xf]
  %v1932 = vld [vmem:[%s12 + $0x14] sm:$0xf]
  %v1933 = vld [vmem:[%s12 + $0x18] sm:$0xf]
  %v1934 = vld [vmem:[%s12 + $0x1c] sm:$0xf]
  %v1935 = vld [vmem:[%s13] sm:$0xff]
  %v1944 = vunpack.c.l.b16 %v1927
  %v1945 = vunpack.c.l.b16 %v1928
  %v1946 = vunpack.c.l.b16 %v1929
  %v1947 = vunpack.c.l.b16 %v1930
  %v1948 = vunpack.c.l.b16 %v1931
  %v1949 = vunpack.c.l.b16 %v1932
  %v1950 = vunpack.c.l.b16 %v1933
  %v1951 = vunpack.c.l.b16 %v1934
  %v1952 = vpack.c.b16 %v1945, %v1944
  %v1953 = vpack.c.b16 %v1947, %v1946
  %v1954 = vpack.c.b16 %v1949, %v1948
  %v1955 = vpack.c.b16 %v1951, %v1950
  %v1961 = vsel %vm759, %v1926, 0
  %1963 = vmatprep.subr.bf16.mxu0 0
  %1964 = vmatpush1.bf16.msra.mxu0 %v1952
  %1965 = vmatprep.subr.bf16.mxu0 0
  %1966 = vmatpush1.bf16.msra.mxu0 %v1953
  %1967 = vmatprep.subr.bf16.mxu0 0
  %1968 = vmatpush1.bf16.msra.mxu0 %v1954
  %1969 = vmatprep.subr.bf16.mxu0 0
  %1970 = vmatpush1.bf16.msra.mxu0 %v1955
  %1971 = vmatprep.subr.bf16.mxu0 0
  %1972 = vmatpush1.bf16.msra.mxu0 0
  %1973 = vmatprep.subr.bf16.mxu0 0
  %1974 = vmatpush1.bf16.msra.mxu0 0
  %1975 = vmatprep.subr.bf16.mxu0 0
  %1976 = vmatpush1.bf16.msra.mxu0 0
  %1977 = vmatprep.subr.bf16.mxu0 0
  %1978 = vmatpush1.bf16.msra.mxu0 0
  %1979 = vmatprep.subr.bf16.mxu0 0
  %1980 = vmatpush1.bf16.msra.mxu0 0
  %1981 = vmatprep.subr.bf16.mxu0 0
  %1982 = vmatpush1.bf16.msra.mxu0 0
  %1983 = vmatprep.subr.bf16.mxu0 0
  %1984 = vmatpush1.bf16.msra.mxu0 0
  %1985 = vmatprep.subr.bf16.mxu0 0
  %1986 = vmatpush1.bf16.msra.mxu0 0
  %1987 = vmatprep.subr.bf16.mxu0 0
  %1988 = vmatpush1.bf16.msra.mxu0 0
  %1989 = vmatprep.subr.bf16.mxu0 0
  %1990 = vmatpush1.bf16.msra.mxu0 0
  %1991 = vmatprep.subr.bf16.mxu0 0
  %1992 = vmatpush1.bf16.msra.mxu0 0
  %1993 = vmatprep.subr.bf16.mxu0 0
  %1994 = vmatpush1.bf16.msra.mxu0 0
  %1995 = vmatprep.mubr.bf16.mxu0 0
  %1996 = vmatmul.mubr.bf16.gmra.mrb[0].mxu0 %v1961
  %v1997 = vpop.f32.mrb[0].mxu0
  %v1998 = vadd.f32 %v1935, %v1997
  %v1999 = vpop.f32.mrb[0].mxu0
  %v2000 = vpop.f32.mrb[0].mxu0
  %v2001 = vpop.f32.mrb[0].mxu0
  %2002 = vdwg.mxu0
  %v2003 = vmul.f32 %v1998, 0.5
  %v2004 = vmul.f32 %v1998, 0.044715
  %v2005 = vmul.f32 %v2004, %v1998
  %v2006 = vmul.f32 %v2005, %v1998
  %v2007 = vadd.f32 %v1998, %v2006
  %v2008 = vmul.f32 %v2007, 0.7978846
  %v2009 = vtanh.pop %v2008
  %v2010 = vadd.f32 %v2009, 1.0
  %v2011 = vmul.f32 %v2003, %v2010
  %v2012 = vpack.c.bf16 %v2011, %v2011
  %v2013 = vld [vmem:[%s14] sm:$0xf]
  %v2014 = vld [vmem:[%s14 + $0x4] sm:$0xf]
  %v2015 = vld [vmem:[%s14 + $0x8] sm:$0xf]
  %v2016 = vld [vmem:[%s14 + $0xc] sm:$0xf]
  %v2017 = vld [vmem:[%s14 + $0x10] sm:$0xf]
  %v2018 = vld [vmem:[%s14 + $0x14] sm:$0xf]
  %v2019 = vld [vmem:[%s14 + $0x18] sm:$0xf]
  %v2020 = vld [vmem:[%s14 + $0x1c] sm:$0xf]
  %v2021 = vld [vmem:[%s15] sm:$0x1]
  %v2023 = vlaneseq
  %v2024 = vshrl.u32 %v2023, 7
  %v2025 = vsub.s32 0, %v2024
  %v2026 = vrot.slane %v2021, %v2025
  %v2036 = vunpack.c.l.b16 %v2013
  %v2037 = vunpack.c.l.b16 %v2014
  %v2038 = vunpack.c.l.b16 %v2015
  %v2039 = vunpack.c.l.b16 %v2016
  %v2040 = vunpack.c.l.b16 %v2017
  %v2041 = vunpack.c.l.b16 %v2018
  %v2042 = vunpack.c.l.b16 %v2019
  %v2043 = vunpack.c.l.b16 %v2020
  %v2044 = vpack.c.b16 %v2037, %v2036
  %v2045 = vpack.c.b16 %v2039, %v2038
  %v2046 = vpack.c.b16 %v2041, %v2040
  %v2047 = vpack.c.b16 %v2043, %v2042
  %v2053 = vsel %vm759, %v2012, 0
  %2055 = vmatprep.subr.bf16.mxu0 0
  %2056 = vmatpush1.bf16.msra.mxu0 %v2044
  %2057 = vmatprep.subr.bf16.mxu0 0
  %2058 = vmatpush1.bf16.msra.mxu0 %v2045
  %2059 = vmatprep.subr.bf16.mxu0 0
  %2060 = vmatpush1.bf16.msra.mxu0 %v2046
  %2061 = vmatprep.subr.bf16.mxu0 0
  %2062 = vmatpush1.bf16.msra.mxu0 %v2047
  %2063 = vmatprep.subr.bf16.mxu0 0
  %2064 = vmatpush1.bf16.msra.mxu0 0
  %2065 = vmatprep.subr.bf16.mxu0 0
  %2066 = vmatpush1.bf16.msra.mxu0 0
  %2067 = vmatprep.subr.bf16.mxu0 0
  %2068 = vmatpush1.bf16.msra.mxu0 0
  %2069 = vmatprep.subr.bf16.mxu0 0
  %2070 = vmatpush1.bf16.msra.mxu0 0
  %2071 = vmatprep.subr.bf16.mxu0 0
  %2072 = vmatpush1.bf16.msra.mxu0 0
  %2073 = vmatprep.subr.bf16.mxu0 0
  %2074 = vmatpush1.bf16.msra.mxu0 0
  %2075 = vmatprep.subr.bf16.mxu0 0
  %2076 = vmatpush1.bf16.msra.mxu0 0
  %2077 = vmatprep.subr.bf16.mxu0 0
  %2078 = vmatpush1.bf16.msra.mxu0 0
  %2079 = vmatprep.subr.bf16.mxu0 0
  %2080 = vmatpush1.bf16.msra.mxu0 0
  %2081 = vmatprep.subr.bf16.mxu0 0
  %2082 = vmatpush1.bf16.msra.mxu0 0
  %2083 = vmatprep.subr.bf16.mxu0 0
  %2084 = vmatpush1.bf16.msra.mxu0 0
  %2085 = vmatprep.subr.bf16.mxu0 0
  %2086 = vmatpush1.bf16.msra.mxu0 0
  %2087 = vmatprep.mubr.bf16.mxu0 0
  %2088 = vmatmul.mubr.bf16.gmra.mrb[0].mxu0 %v2053
  %v2089 = vpop.f32.mrb[0].mxu0
  %v2090 = vadd.f32 %v2026, %v2089
  %v2091 = vpop.f32.mrb[0].mxu0
  %v2092 = vpop.f32.mrb[0].mxu0
  %v2093 = vpop.f32.mrb[0].mxu0
  %2094 = vdwg.mxu0
  %v2095 = vmul.f32 %v2090, 0.5
  %v2096 = vmul.f32 %v2090, 0.044715
  %v2097 = vmul.f32 %v2096, %v2090
  %v2098 = vmul.f32 %v2097, %v2090
  %v2099 = vadd.f32 %v2090, %v2098
  %v2100 = vmul.f32 %v2099, 0.7978846
  %v2101 = vtanh.pop %v2100
  %v2102 = vadd.f32 %v2101, 1.0
  %v2103 = vmul.f32 %v2095, %v2102
  %v2104 = vpack.c.bf16 %v2103, %v2103
  %2105 = vst.msk [vmem:[%s23] sm:$0xf] %vm1089, %v2104
  %v2106 = vld [vmem:[%s16] sm:$0xf]
  %v2107 = vld [vmem:[%s16 + $0x4] sm:$0xf]
  %v2108 = vld [vmem:[%s16 + $0x8] sm:$0xf]
  %v2109 = vld [vmem:[%s16 + $0xc] sm:$0xf]
  %v2110 = vld [vmem:[%s16 + $0x10] sm:$0xf]
  %v2111 = vld [vmem:[%s16 + $0x14] sm:$0xf]
  %v2112 = vld [vmem:[%s16 + $0x18] sm:$0xf]
  %v2113 = vld [vmem:[%s16 + $0x1c] sm:$0xf]
  %s2114 = scalar_lea.vmem %s16, 32
  %v2115 = vld [vmem:[%s2114] sm:$0xf]
  %v2116 = vld [vmem:[%s2114 + $0x4] sm:$0xf]
  %v2117 = vld [vmem:[%s2114 + $0x8] sm:$0xf]
  %v2118 = vld [vmem:[%s2114 + $0xc] sm:$0xf]
  %v2119 = vld [vmem:[%s2114 + $0x10] sm:$0xf]
  %v2120 = vld [vmem:[%s2114 + $0x14] sm:$0xf]
  %v2121 = vld [vmem:[%s2114 + $0x18] sm:$0xf]
  %v2122 = vld [vmem:[%s2114 + $0x1c] sm:$0xf]
  %v2124 = vrot.slane %v1926, 1
  %v2133 = vunpack.c.l.b16 %v2115
  %v2134 = vunpack.c.l.b16 %v2116
  %v2135 = vunpack.c.l.b16 %v2117
  %v2136 = vunpack.c.l.b16 %v2118
  %v2137 = vunpack.c.l.b16 %v2119
  %v2138 = vunpack.c.l.b16 %v2120
  %v2139 = vunpack.c.l.b16 %v2121
  %v2140 = vunpack.c.l.b16 %v2122
  %v2141 = vpack.c.b16 %v2134, %v2133
  %v2142 = vpack.c.b16 %v2136, %v2135
  %v2143 = vpack.c.b16 %v2138, %v2137
  %v2144 = vpack.c.b16 %v2140, %v2139
  %v2150 = vsel %vm759, %v2124, 0
  %2152 = vmatprep.subr.bf16.mxu0 0
  %2153 = vmatpush1.bf16.msra.mxu0 %v2141
  %2154 = vmatprep.subr.bf16.mxu0 0
  %2155 = vmatpush1.bf16.msra.mxu0 %v2142
  %2156 = vmatprep.subr.bf16.mxu0 0
  %2157 = vmatpush1.bf16.msra.mxu0 %v2143
  %2158 = vmatprep.subr.bf16.mxu0 0
  %2159 = vmatpush1.bf16.msra.mxu0 %v2144
  %2160 = vmatprep.subr.bf16.mxu0 0
  %2161 = vmatpush1.bf16.msra.mxu0 0
  %2162 = vmatprep.subr.bf16.mxu0 0
  %2163 = vmatpush1.bf16.msra.mxu0 0
  %2164 = vmatprep.subr.bf16.mxu0 0
  %2165 = vmatpush1.bf16.msra.mxu0 0
  %2166 = vmatprep.subr.bf16.mxu0 0
  %2167 = vmatpush1.bf16.msra.mxu0 0
  %2168 = vmatprep.subr.bf16.mxu0 0
  %2169 = vmatpush1.bf16.msra.mxu0 0
  %2170 = vmatprep.subr.bf16.mxu0 0
  %2171 = vmatpush1.bf16.msra.mxu0 0
  %2172 = vmatprep.subr.bf16.mxu0 0
  %2173 = vmatpush1.bf16.msra.mxu0 0
  %2174 = vmatprep.subr.bf16.mxu0 0
  %2175 = vmatpush1.bf16.msra.mxu0 0
  %2176 = vmatprep.subr.bf16.mxu0 0
  %2177 = vmatpush1.bf16.msra.mxu0 0
  %2178 = vmatprep.subr.bf16.mxu0 0
  %2179 = vmatpush1.bf16.msra.mxu0 0
  %2180 = vmatprep.subr.bf16.mxu0 0
  %2181 = vmatpush1.bf16.msra.mxu0 0
  %2182 = vmatprep.subr.bf16.mxu0 0
  %2183 = vmatpush1.bf16.msra.mxu0 0
  %2184 = vmatprep.mubr.bf16.mxu0 0
  %2185 = vmatmul.mubr.bf16.gmra.mrb[0].mxu0 %v2150
  %v2186 = vpop.f32.mrb[0].mxu0
  %v2187 = vadd.f32 0.0, %v2186
  %v2188 = vpop.f32.mrb[0].mxu0
  %v2189 = vpop.f32.mrb[0].mxu0
  %v2190 = vpop.f32.mrb[0].mxu0
  %2191 = vdwg.mxu0
  %v2200 = vunpack.c.l.b16 %v2106
  %v2201 = vunpack.c.l.b16 %v2107
  %v2202 = vunpack.c.l.b16 %v2108
  %v2203 = vunpack.c.l.b16 %v2109
  %v2204 = vunpack.c.l.b16 %v2110
  %v2205 = vunpack.c.l.b16 %v2111
  %v2206 = vunpack.c.l.b16 %v2112
  %v2207 = vunpack.c.l.b16 %v2113
  %v2208 = vpack.c.b16 %v2201, %v2200
  %v2209 = vpack.c.b16 %v2203, %v2202
  %v2210 = vpack.c.b16 %v2205, %v2204
  %v2211 = vpack.c.b16 %v2207, %v2206
  %2216 = vmatprep.subr.bf16.mxu0 0
  %2217 = vmatpush1.bf16.msra.mxu0 %v2208
  %2218 = vmatprep.subr.bf16.mxu0 0
  %2219 = vmatpush1.bf16.msra.mxu0 %v2209
  %2220 = vmatprep.subr.bf16.mxu0 0
  %2221 = vmatpush1.bf16.msra.mxu0 %v2210
  %2222 = vmatprep.subr.bf16.mxu0 0
  %2223 = vmatpush1.bf16.msra.mxu0 %v2211
  %2224 = vmatprep.subr.bf16.mxu0 0
  %2225 = vmatpush1.bf16.msra.mxu0 0
  %2226 = vmatprep.subr.bf16.mxu0 0
  %2227 = vmatpush1.bf16.msra.mxu0 0
  %2228 = vmatprep.subr.bf16.mxu0 0
  %2229 = vmatpush1.bf16.msra.mxu0 0
  %2230 = vmatprep.subr.bf16.mxu0 0
  %2231 = vmatpush1.bf16.msra.mxu0 0
  %2232 = vmatprep.subr.bf16.mxu0 0
  %2233 = vmatpush1.bf16.msra.mxu0 0
  %2234 = vmatprep.subr.bf16.mxu0 0
  %2235 = vmatpush1.bf16.msra.mxu0 0
  %2236 = vmatprep.subr.bf16.mxu0 0
  %2237 = vmatpush1.bf16.msra.mxu0 0
  %2238 = vmatprep.subr.bf16.mxu0 0
  %2239 = vmatpush1.bf16.msra.mxu0 0
  %2240 = vmatprep.subr.bf16.mxu0 0
  %2241 = vmatpush1.bf16.msra.mxu0 0
  %2242 = vmatprep.subr.bf16.mxu0 0
  %2243 = vmatpush1.bf16.msra.mxu0 0
  %2244 = vmatprep.subr.bf16.mxu0 0
  %2245 = vmatpush1.bf16.msra.mxu0 0
  %2246 = vmatprep.subr.bf16.mxu0 0
  %2247 = vmatpush1.bf16.msra.mxu0 0
  %2248 = vmatprep.mubr.bf16.mxu0 0
  %2249 = vmatmul.mubr.bf16.gmra.mrb[0].mxu0 %v1961
  %v2250 = vpop.f32.mrb[0].mxu0
  %v2251 = vadd.f32 %v2187, %v2250
  %v2252 = vpop.f32.mrb[0].mxu0
  %v2253 = vpop.f32.mrb[0].mxu0
  %v2254 = vpop.f32.mrb[0].mxu0
  %2255 = vdwg.mxu0
  %s2256 = scalar_lea.vmem %s16, 64
  %v2257 = vld [vmem:[%s2256] sm:$0xf]
  %v2258 = vld [vmem:[%s2256 + $0x4] sm:$0xf]
  %v2259 = vld [vmem:[%s2256 + $0x8] sm:$0xf]
  %v2260 = vld [vmem:[%s2256 + $0xc] sm:$0xf]
  %v2261 = vld [vmem:[%s2256 + $0x10] sm:$0xf]
  %v2262 = vld [vmem:[%s2256 + $0x14] sm:$0xf]
  %v2263 = vld [vmem:[%s2256 + $0x18] sm:$0xf]
  %v2264 = vld [vmem:[%s2256 + $0x1c] sm:$0xf]
  %v2265 = vrot.slane %v1926, 2
  %v2274 = vunpack.c.l.b16 %v2257
  %v2275 = vunpack.c.l.b16 %v2258
  %v2276 = vunpack.c.l.b16 %v2259
  %v2277 = vunpack.c.l.b16 %v2260
  %v2278 = vunpack.c.l.b16 %v2261
  %v2279 = vunpack.c.l.b16 %v2262
  %v2280 = vunpack.c.l.b16 %v2263
  %v2281 = vunpack.c.l.b16 %v2264
  %v2282 = vpack.c.b16 %v2275, %v2274
  %v2283 = vpack.c.b16 %v2277, %v2276
  %v2284 = vpack.c.b16 %v2279, %v2278
  %v2285 = vpack.c.b16 %v2281, %v2280
  %v2291 = vsel %vm759, %v2265, 0
  %2293 = vmatprep.subr.bf16.mxu0 0
  %2294 = vmatpush1.bf16.msra.mxu0 %v2282
  %2295 = vmatprep.subr.bf16.mxu0 0
  %2296 = vmatpush1.bf16.msra.mxu0 %v2283
  %2297 = vmatprep.subr.bf16.mxu0 0
  %2298 = vmatpush1.bf16.msra.mxu0 %v2284
  %2299 = vmatprep.subr.bf16.mxu0 0
  %2300 = vmatpush1.bf16.msra.mxu0 %v2285
  %2301 = vmatprep.subr.bf16.mxu0 0
  %2302 = vmatpush1.bf16.msra.mxu0 0
  %2303 = vmatprep.subr.bf16.mxu0 0
  %2304 = vmatpush1.bf16.msra.mxu0 0
  %2305 = vmatprep.subr.bf16.mxu0 0
  %2306 = vmatpush1.bf16.msra.mxu0 0
  %2307 = vmatprep.subr.bf16.mxu0 0
  %2308 = vmatpush1.bf16.msra.mxu0 0
  %2309 = vmatprep.subr.bf16.mxu0 0
  %2310 = vmatpush1.bf16.msra.mxu0 0
  %2311 = vmatprep.subr.bf16.mxu0 0
  %2312 = vmatpush1.bf16.msra.mxu0 0
  %2313 = vmatprep.subr.bf16.mxu0 0
  %2314 = vmatpush1.bf16.msra.mxu0 0
  %2315 = vmatprep.subr.bf16.mxu0 0
  %2316 = vmatpush1.bf16.msra.mxu0 0
  %2317 = vmatprep.subr.bf16.mxu0 0
  %2318 = vmatpush1.bf16.msra.mxu0 0
  %2319 = vmatprep.subr.bf16.mxu0 0
  %2320 = vmatpush1.bf16.msra.mxu0 0
  %2321 = vmatprep.subr.bf16.mxu0 0
  %2322 = vmatpush1.bf16.msra.mxu0 0
  %2323 = vmatprep.subr.bf16.mxu0 0
  %2324 = vmatpush1.bf16.msra.mxu0 0
  %2325 = vmatprep.mubr.bf16.mxu0 0
  %2326 = vmatmul.mubr.bf16.gmra.mrb[0].mxu0 %v2291
  %v2327 = vpop.f32.mrb[0].mxu0
  %v2328 = vadd.f32 0.0, %v2327
  %v2329 = vpop.f32.mrb[0].mxu0
  %v2330 = vpop.f32.mrb[0].mxu0
  %v2331 = vpop.f32.mrb[0].mxu0
  %2332 = vdwg.mxu0
  %v2333 = vadd.f32 %v2251, %v2328
  %s2334 = scalar_lea.vmem %s16, 96
  %v2335 = vld [vmem:[%s2334] sm:$0xf]
  %v2336 = vld [vmem:[%s2334 + $0x4] sm:$0xf]
  %v2337 = vld [vmem:[%s2334 + $0x8] sm:$0xf]
  %v2338 = vld [vmem:[%s2334 + $0xc] sm:$0xf]
  %v2339 = vld [vmem:[%s2334 + $0x10] sm:$0xf]
  %v2340 = vld [vmem:[%s2334 + $0x14] sm:$0xf]
  %v2341 = vld [vmem:[%s2334 + $0x18] sm:$0xf]
  %v2342 = vld [vmem:[%s2334 + $0x1c] sm:$0xf]
  %v2343 = vrot.slane %v1926, 3
  %v2352 = vunpack.c.l.b16 %v2335
  %v2353 = vunpack.c.l.b16 %v2336
  %v2354 = vunpack.c.l.b16 %v2337
  %v2355 = vunpack.c.l.b16 %v2338
  %v2356 = vunpack.c.l.b16 %v2339
  %v2357 = vunpack.c.l.b16 %v2340
  %v2358 = vunpack.c.l.b16 %v2341
  %v2359 = vunpack.c.l.b16 %v2342
  %v2360 = vpack.c.b16 %v2353, %v2352
  %v2361 = vpack.c.b16 %v2355, %v2354
  %v2362 = vpack.c.b16 %v2357, %v2356
  %v2363 = vpack.c.b16 %v2359, %v2358
  %v2369 = vsel %vm759, %v2343, 0
  %2371 = vmatprep.subr.bf16.mxu0 0
  %2372 = vmatpush1.bf16.msra.mxu0 %v2360
  %2373 = vmatprep.subr.bf16.mxu0 0
  %2374 = vmatpush1.bf16.msra.mxu0 %v2361
  %2375 = vmatprep.subr.bf16.mxu0 0
  %2376 = vmatpush1.bf16.msra.mxu0 %v2362
  %2377 = vmatprep.subr.bf16.mxu0 0
  %2378 = vmatpush1.bf16.msra.mxu0 %v2363
  %2379 = vmatprep.subr.bf16.mxu0 0
  %2380 = vmatpush1.bf16.msra.mxu0 0
  %2381 = vmatprep.subr.bf16.mxu0 0
  %2382 = vmatpush1.bf16.msra.mxu0 0
  %2383 = vmatprep.subr.bf16.mxu0 0
  %2384 = vmatpush1.bf16.msra.mxu0 0
  %2385 = vmatprep.subr.bf16.mxu0 0
  %2386 = vmatpush1.bf16.msra.mxu0 0
  %2387 = vmatprep.subr.bf16.mxu0 0
  %2388 = vmatpush1.bf16.msra.mxu0 0
  %2389 = vmatprep.subr.bf16.mxu0 0
  %2390 = vmatpush1.bf16.msra.mxu0 0
  %2391 = vmatprep.subr.bf16.mxu0 0
  %2392 = vmatpush1.bf16.msra.mxu0 0
  %2393 = vmatprep.subr.bf16.mxu0 0
  %2394 = vmatpush1.bf16.msra.mxu0 0
  %2395 = vmatprep.subr.bf16.mxu0 0
  %2396 = vmatpush1.bf16.msra.mxu0 0
  %2397 = vmatprep.subr.bf16.mxu0 0
  %2398 = vmatpush1.bf16.msra.mxu0 0
  %2399 = vmatprep.subr.bf16.mxu0 0
  %2400 = vmatpush1.bf16.msra.mxu0 0
  %2401 = vmatprep.subr.bf16.mxu0 0
  %2402 = vmatpush1.bf16.msra.mxu0 0
  %2403 = vmatprep.mubr.bf16.mxu0 0
  %2404 = vmatmul.mubr.bf16.gmra.mrb[0].mxu0 %v2369
  %v2405 = vpop.f32.mrb[0].mxu0
  %v2406 = vadd.f32 0.0, %v2405
  %v2407 = vpop.f32.mrb[0].mxu0
  %v2408 = vpop.f32.mrb[0].mxu0
  %v2409 = vpop.f32.mrb[0].mxu0
  %2410 = vdwg.mxu0
  %v2411 = vadd.f32 %v2333, %v2406
  %v2412 = vmul.f32 %v2411, 0.5
  %v2413 = vmul.f32 %v2411, 0.044715
  %v2414 = vmul.f32 %v2413, %v2411
  %v2415 = vmul.f32 %v2414, %v2411
  %v2416 = vadd.f32 %v2411, %v2415
  %v2417 = vmul.f32 %v2416, 0.7978846
  %v2418 = vtanh.pop %v2417
  %v2419 = vadd.f32 %v2418, 1.0
  %v2420 = vmul.f32 %v2412, %v2419
  %v2421 = vpack.c.bf16 %v2420, %v2420
  %v2422 = vld [vmem:[%s17] sm:$0xf]
  %v2423 = vld [vmem:[%s17 + $0x4] sm:$0xf]
  %v2424 = vld [vmem:[%s17 + $0x8] sm:$0xf]
  %v2425 = vld [vmem:[%s17 + $0xc] sm:$0xf]
  %v2426 = vld [vmem:[%s17 + $0x10] sm:$0xf]
  %v2427 = vld [vmem:[%s17 + $0x14] sm:$0xf]
  %v2428 = vld [vmem:[%s17 + $0x18] sm:$0xf]
  %v2429 = vld [vmem:[%s17 + $0x1c] sm:$0xf]
  %v2430 = vld [vmem:[%s17 + $0x20] sm:$0xf]
  %v2431 = vld [vmem:[%s17 + $0x24] sm:$0xf]
  %v2432 = vld [vmem:[%s17 + $0x28] sm:$0xf]
  %v2433 = vld [vmem:[%s17 + $0x2c] sm:$0xf]
  %v2434 = vld [vmem:[%s18] sm:$0x3]
  %v2447 = vunpack.c.l.b16 %v2422
  %v2448 = vunpack.c.l.b16 %v2423
  %v2449 = vunpack.c.l.b16 %v2424
  %v2450 = vunpack.c.l.b16 %v2425
  %v2451 = vunpack.c.l.b16 %v2426
  %v2452 = vunpack.c.l.b16 %v2427
  %v2453 = vunpack.c.l.b16 %v2428
  %v2454 = vunpack.c.l.b16 %v2429
  %v2455 = vunpack.c.l.b16 %v2430
  %v2456 = vunpack.c.l.b16 %v2431
  %v2457 = vunpack.c.l.b16 %v2432
  %v2458 = vunpack.c.l.b16 %v2433
  %v2459 = vpack.c.b16 %v2448, %v2447
  %v2460 = vpack.c.b16 %v2450, %v2449
  %v2461 = vpack.c.b16 %v2452, %v2451
  %v2462 = vpack.c.b16 %v2454, %v2453
  %v2463 = vpack.c.b16 %v2456, %v2455
  %v2464 = vpack.c.b16 %v2458, %v2457
  %vm2471 = vcmask 785408
  %v2473 = vsel %vm2471, %v2421, 0
  %2475 = vmatprep.subr.bf16.mxu0 0
  %2476 = vmatpush1.bf16.msra.mxu0 %v2459
  %2477 = vmatprep.subr.bf16.mxu0 0
  %2478 = vmatpush1.bf16.msra.mxu0 %v2460
  %2479 = vmatprep.subr.bf16.mxu0 0
  %2480 = vmatpush1.bf16.msra.mxu0 %v2461
  %2481 = vmatprep.subr.bf16.mxu0 0
  %2482 = vmatpush1.bf16.msra.mxu0 %v2462
  %2483 = vmatprep.subr.bf16.mxu0 0
  %2484 = vmatpush1.bf16.msra.mxu0 %v2463
  %2485 = vmatprep.subr.bf16.mxu0 0
  %2486 = vmatpush1.bf16.msra.mxu0 %v2464
  %2487 = vmatprep.subr.bf16.mxu0 0
  %2488 = vmatpush1.bf16.msra.mxu0 0
  %2489 = vmatprep.subr.bf16.mxu0 0
  %2490 = vmatpush1.bf16.msra.mxu0 0
  %2491 = vmatprep.subr.bf16.mxu0 0
  %2492 = vmatpush1.bf16.msra.mxu0 0
  %2493 = vmatprep.subr.bf16.mxu0 0
  %2494 = vmatpush1.bf16.msra.mxu0 0
  %2495 = vmatprep.subr.bf16.mxu0 0
  %2496 = vmatpush1.bf16.msra.mxu0 0
  %2497 = vmatprep.subr.bf16.mxu0 0
  %2498 = vmatpush1.bf16.msra.mxu0 0
  %2499 = vmatprep.subr.bf16.mxu0 0
  %2500 = vmatpush1.bf16.msra.mxu0 0
  %2501 = vmatprep.subr.bf16.mxu0 0
  %2502 = vmatpush1.bf16.msra.mxu0 0
  %2503 = vmatprep.subr.bf16.mxu0 0
  %2504 = vmatpush1.bf16.msra.mxu0 0
  %2505 = vmatprep.subr.bf16.mxu0 0
  %2506 = vmatpush1.bf16.msra.mxu0 0
  %2507 = vmatprep.mubr.bf16.mxu0 0
  %2508 = vmatmul.mubr.bf16.gmra.mrb[0].mxu0 %v2473
  %v2509 = vpop.f32.mrb[0].mxu0
  %v2510 = vadd.f32 %v2434, %v2509
  %v2511 = vpop.f32.mrb[0].mxu0
  %v2512 = vpop.f32.mrb[0].mxu0
  %v2513 = vpop.f32.mrb[0].mxu0
  %2514 = vdwg.mxu0
  %v2515 = vmul.f32 %v2510, 0.5
  %v2516 = vmul.f32 %v2510, 0.044715
  %v2517 = vmul.f32 %v2516, %v2510
  %v2518 = vmul.f32 %v2517, %v2510
  %v2519 = vadd.f32 %v2510, %v2518
  %v2520 = vmul.f32 %v2519, 0.7978846
  %v2521 = vtanh.pop %v2520
  %v2522 = vadd.f32 %v2521, 1.0
  %v2523 = vmul.f32 %v2515, %v2522
  %v2524 = vpack.c.bf16 %v2523, %v2523
  %v2525 = vld [vmem:[%s19] sm:$0xf]
  %v2526 = vld [vmem:[%s19 + $0x4] sm:$0xf]
  %v2527 = vld [vmem:[%s19 + $0x8] sm:$0xf]
  %v2528 = vld [vmem:[%s19 + $0xc] sm:$0xf]
  %v2529 = vld [vmem:[%s19 + $0x10] sm:$0xf]
  %v2530 = vld [vmem:[%s19 + $0x14] sm:$0xf]
  %v2531 = vld [vmem:[%s19 + $0x18] sm:$0xf]
  %v2532 = vld [vmem:[%s19 + $0x1c] sm:$0xf]
  %v2533 = vld [vmem:[%s20] sm:$0x1]
  %v2535 = vlaneseq
  %v2536 = vshrl.u32 %v2535, 7
  %v2537 = vsub.s32 0, %v2536
  %v2538 = vrot.slane %v2533, %v2537
  %v2548 = vunpack.c.l.b16 %v2525
  %v2549 = vunpack.c.l.b16 %v2526
  %v2550 = vunpack.c.l.b16 %v2527
  %v2551 = vunpack.c.l.b16 %v2528
  %v2552 = vunpack.c.l.b16 %v2529
  %v2553 = vunpack.c.l.b16 %v2530
  %v2554 = vunpack.c.l.b16 %v2531
  %v2555 = vunpack.c.l.b16 %v2532
  %v2556 = vpack.c.b16 %v2549, %v2548
  %v2557 = vpack.c.b16 %v2551, %v2550
  %v2558 = vpack.c.b16 %v2553, %v2552
  %v2559 = vpack.c.b16 %v2555, %v2554
  %v2565 = vsel %vm759, %v2524, 0
  %2567 = vmatprep.subr.bf16.mxu0 0
  %2568 = vmatpush1.bf16.msra.mxu0 %v2556
  %2569 = vmatprep.subr.bf16.mxu0 0
  %2570 = vmatpush1.bf16.msra.mxu0 %v2557
  %2571 = vmatprep.subr.bf16.mxu0 0
  %2572 = vmatpush1.bf16.msra.mxu0 %v2558
  %2573 = vmatprep.subr.bf16.mxu0 0
  %2574 = vmatpush1.bf16.msra.mxu0 %v2559
  %2575 = vmatprep.subr.bf16.mxu0 0
  %2576 = vmatpush1.bf16.msra.mxu0 0
  %2577 = vmatprep.subr.bf16.mxu0 0
  %2578 = vmatpush1.bf16.msra.mxu0 0
  %2579 = vmatprep.subr.bf16.mxu0 0
  %2580 = vmatpush1.bf16.msra.mxu0 0
  %2581 = vmatprep.subr.bf16.mxu0 0
  %2582 = vmatpush1.bf16.msra.mxu0 0
  %2583 = vmatprep.subr.bf16.mxu0 0
  %2584 = vmatpush1.bf16.msra.mxu0 0
  %2585 = vmatprep.subr.bf16.mxu0 0
  %2586 = vmatpush1.bf16.msra.mxu0 0
  %2587 = vmatprep.subr.bf16.mxu0 0
  %2588 = vmatpush1.bf16.msra.mxu0 0
  %2589 = vmatprep.subr.bf16.mxu0 0
  %2590 = vmatpush1.bf16.msra.mxu0 0
  %2591 = vmatprep.subr.bf16.mxu0 0
  %2592 = vmatpush1.bf16.msra.mxu0 0
  %2593 = vmatprep.subr.bf16.mxu0 0
  %2594 = vmatpush1.bf16.msra.mxu0 0
  %2595 = vmatprep.subr.bf16.mxu0 0
  %2596 = vmatpush1.bf16.msra.mxu0 0
  %2597 = vmatprep.subr.bf16.mxu0 0
  %2598 = vmatpush1.bf16.msra.mxu0 0
  %2599 = vmatprep.mubr.bf16.mxu0 0
  %2600 = vmatmul.mubr.bf16.gmra.mrb[0].mxu0 %v2565
  %v2601 = vpop.f32.mrb[0].mxu0
  %v2602 = vadd.f32 %v2538, %v2601
  %v2603 = vpop.f32.mrb[0].mxu0
  %v2604 = vpop.f32.mrb[0].mxu0
  %v2605 = vpop.f32.mrb[0].mxu0
  %2606 = vdwg.mxu0
  %v2607 = vmul.f32 %v2602, 0.5
  %v2608 = vmul.f32 %v2602, 0.044715
  %v2609 = vmul.f32 %v2608, %v2602
  %v2610 = vmul.f32 %v2609, %v2602
  %v2611 = vadd.f32 %v2602, %v2610
  %v2612 = vmul.f32 %v2611, 0.7978846
  %v2613 = vtanh.pop %v2612
  %v2614 = vadd.f32 %v2613, 1.0
  %v2615 = vmul.f32 %v2607, %v2614
  %v2616 = vpack.c.bf16 %v2615, %v2615
  %vm2617 = vcmask 122880
  %2618 = vst.msk [vmem:[%s24] sm:$0x1] %vm2617, %v2616
  // Predicated region
  $region86: #{forward.2} parent=0 // pred_check
    _
  $region87: #{forward.2} parent=0 // pred_check_branch
    %2620 = sbr.rel (0) target = $region89
  $region88: #{forward.2} parent=0 // pred_region
    _
  $region89: #{forward.2} parent=0 // pred_fallthru
    _
  // Predicated region
  $region90: #{forward.2} parent=0 // pred_check
    _
  $region91: #{forward.2} parent=0 // pred_check_branch
    %2622 = sbr.rel (0) target = $region93
  $region92: #{forward.2} parent=0 // pred_region
    _
  $region93: #{forward.2} parent=0 // pred_fallthru
    _
  // Predicated region
  $region94: #{forward.2} parent=0 // pred_check
    _
  $region95: #{forward.2} parent=0 // pred_check_branch
    %2624 = sbr.rel (0) target = $region97
  $region96: #{forward.2} parent=0 // pred_region
    _
  $region97: #{forward.2} parent=0 // pred_fallthru
    _
  // Predicated region
  $region98: #{forward.2} parent=0 // pred_check
    _
  $region99: #{forward.2} parent=0 // pred_check_branch
    %2626 = sbr.rel (0) target = $region101
  $region100: #{forward.2} parent=0 // pred_region
    _
  $region101: #{forward.2} parent=0 // pred_fallthru
    _
  // Predicated region
  $region102: #{forward.2} parent=0 // pred_check
    _
  $region103: #{forward.2} parent=0 // pred_check_branch
    %2628 = sbr.rel (0) target = $region105
  $region104: #{forward.2} parent=0 // pred_region
    _
  $region105: #{forward.2} parent=0 // pred_fallthru
    _
  // Predicated region
  $region106: #{forward.2} parent=0 // pred_check
    _
  $region107: #{forward.2} parent=0 // pred_check_branch
    %2630 = sbr.rel (0) target = $region109
  $region108: #{forward.2} parent=0 // pred_region
    _
  $region109: #{forward.2} parent=0 // pred_fallthru
    _
  // Predicated region
  $region110: #{forward.2} parent=0 // pred_check
    _
  $region111: #{forward.2} parent=0 // pred_check_branch
    %2632 = sbr.rel (0) target = $region113
  $region112: #{forward.2} parent=0 // pred_region
    _
  $region113: #{forward.2} parent=0 // pred_fallthru
    _
  // Predicated region
  $region114: #{forward.2} parent=0 // pred_check
    _
  $region115: #{forward.2} parent=0 // pred_check_branch
    %2634 = sbr.rel (0) target = $region117
  $region116: #{forward.2} parent=0 // pred_region
    _
  $region117: #{forward.2} parent=0 // pred_fallthru
    _

</llo_original>
